<compile_context>
chip_gen: v7x
topology: tpu7x:2x2x1
jax: 0.10.0
libtpu: 0.0.40
codegen_flags: <defaults>
</compile_context>

<pallas_src>
import jax
import jax.numpy as jnp
import numpy as np
from jax.experimental import pallas as pl
from jax.experimental.pallas import tpu as pltpu

D_MODEL = 128
D_FF = 4 * D_MODEL
NUM_LAYERS = 6
NUM_HEADS = 8
LN_EPS = 1e-5


def _gelu(x):
    # exact (erf) GELU — matches torch's F.gelu / nn.GELU() default
    return 0.5 * x * (1.0 + jax.lax.erf(x * 0.7071067811865476))


def _layer_norm(x, gamma, beta):
    mu = jnp.mean(x, axis=-1, keepdims=True)
    xc = x - mu
    var = jnp.mean(xc * xc, axis=-1, keepdims=True)
    return xc * jax.lax.rsqrt(var + LN_EPS) * gamma + beta


# ----------------------------------------------------------------------------
# Single-invocation Pallas kernel: no grid, all weights resident in VMEM,
# layer loop unrolled inside the kernel body.
#
#   misc_ref      : (4, D)  f32   rows = [b_in, w_t1, b_t1, b_t2]
#   layer_vec_ref : (NL, 6, D) f32 rows = [b_attn, bf2, ln1g, ln1b, ln2g, ln2b]
#   weight refs   : bf16, biases/activations/accumulation f32
# ----------------------------------------------------------------------------
def _latent_diffusion_kernel(
    z_ref, t_ref, misc_ref,
    w_in_ref, w_t2_ref,
    w_attn_ref, wf1_ref, bf1_ref, wf2_ref,
    layer_vec_ref,
    w_out_ref, b_out_ref,
    eps_ref,
):
    misc = misc_ref[...]                                   # (4, D) f32
    b_in, w_t1, b_t1, b_t2 = misc[0:1], misc[1:2], misc[2:3], misc[3:4]

    # h = input_proj(z_t) + time_embed(t)
    h = jnp.dot(z_ref[...], w_in_ref[...],
                preferred_element_type=jnp.float32) + b_in
    # Linear(1, d_model): inner dim is 1 -> broadcasted outer product
    te = _gelu(t_ref[...] * w_t1 + b_t1)
    te = jnp.dot(te, w_t2_ref[...],
                 preferred_element_type=jnp.float32) + b_t2
    h = h + te

    # Unrolled transformer-encoder layers (post-LN, seq_len == 1 identity).
    for l in range(NUM_LAYERS):
        lv = layer_vec_ref[l]                              # (6, D) f32
        b_attn, bf2 = lv[0:1], lv[1:2]
        ln1g, ln1b, ln2g, ln2b = lv[2:3], lv[3:4], lv[4:5], lv[5:6]

        # --- self-attention, folded: softmax over 1 key == 1 exactly, so
        #     attn = out_proj(v_proj(h)) = h @ (wv @ wo) + (bv @ wo + bo) ----
        attn = jnp.dot(h, w_attn_ref[l],
                       preferred_element_type=jnp.float32) + b_attn
        x = _layer_norm(h + attn, ln1g, ln1b)

        # --- feed-forward --------------------------------------------------
        f = jnp.dot(x, wf1_ref[l],
                    preferred_element_type=jnp.float32) + bf1_ref[l]
        f = _gelu(f)
        f = jnp.dot(f, wf2_ref[l],
                    preferred_element_type=jnp.float32) + bf2
        h = _layer_norm(x + f, ln2g, ln2b)

    eps_ref[...] = jnp.dot(h, w_out_ref[...],
                           preferred_element_type=jnp.float32) + b_out_ref[...]


# ----------------------------------------------------------------------------
# Wrapper: offline param prep (attention fold, bf16 weights, packed vectors)
# + pallas_call.  In a real sampler prepare_params() runs once, not per step.
# ----------------------------------------------------------------------------
def prepare_params(p, weight_dtype=jnp.bfloat16):
    wd = lambda w: w.astype(weight_dtype)
    # Fold seq-len-1 attention into a single affine map (exact identity).
    w_attn = jnp.einsum("lij,ljk->lik", p["wv"], p["wo"])              # (NL,D,D)
    b_attn = jnp.einsum("lij,ljk->lik", p["bv"], p["wo"]) + p["bo"]    # (NL,1,D)
    # Pack tiny vectors -> fewer HBM->VMEM DMA descriptors at kernel start.
    misc = jnp.concatenate(
        [p["b_in"], p["w_t1"], p["b_t1"], p["b_t2"]], axis=0)          # (4, D)
    layer_vecs = jnp.concatenate(
        [b_attn, p["bf2"], p["ln1g"], p["ln1b"], p["ln2g"], p["ln2b"]],
        axis=1)                                                        # (NL,6,D)
    return dict(
        misc=misc.astype(jnp.float32),
        w_in=wd(p["w_in"]), w_t2=wd(p["w_t2"]),
        w_attn=wd(w_attn),
        wf1=wd(p["wf1"]), bf1=p["bf1"], wf2=wd(p["wf2"]),
        layer_vecs=layer_vecs.astype(jnp.float32),
        w_out=wd(p["w_out"]), b_out=p["b_out"],
    )


def latent_diffusion_forward(z_t, t, p):
    B, latent_dim = z_t.shape
    kp = prepare_params(p)

    args = (
        z_t, t, kp["misc"],
        kp["w_in"], kp["w_t2"],
        kp["w_attn"], kp["wf1"], kp["bf1"], kp["wf2"],
        kp["layer_vecs"],
        kp["w_out"], kp["b_out"],
    )

    # Advisory cost estimate so XLA can overlap this latency-bound call.
    flops = 2 * B * (latent_dim * D_MODEL + D_MODEL * D_MODEL
                     + NUM_LAYERS * (D_MODEL * D_MODEL + 2 * D_MODEL * D_FF)
                     + D_MODEL * latent_dim)
    transcendentals = B * (D_MODEL + NUM_LAYERS * D_FF)          # erf calls
    bytes_accessed = int(sum(int(a.size) * a.dtype.itemsize for a in args)
                         + B * latent_dim * 4)

    return pl.pallas_call(
        _latent_diffusion_kernel,
        out_shape=jax.ShapeDtypeStruct((B, latent_dim), jnp.float32),
        in_specs=[pl.BlockSpec(memory_space=pltpu.MemorySpace.VMEM)
                  for _ in range(len(args))],
        out_specs=pl.BlockSpec(memory_space=pltpu.MemorySpace.VMEM),
        compiler_params=pltpu.CompilerParams(
            vmem_limit_bytes=16 << 20,   # actual footprint ~2.5 MiB
        ),
        cost_estimate=pl.CostEstimate(
            flops=flops,
            transcendentals=transcendentals,
            bytes_accessed=bytes_accessed),
    )(*args)


# ----------------------------------------------------------------------------
# Pure-JAX reference (keeps the full multi-head Q/K/softmax path) for checking.
# ----------------------------------------------------------------------------
def reference_forward(z_t, t, p):
    B = z_t.shape[0]
    dh = D_MODEL // NUM_HEADS
    h = z_t @ p["w_in"] + p["b_in"]
    te = _gelu(t @ p["w_t1"] + p["b_t1"])
    te = te @ p["w_t2"] + p["b_t2"]
    h = h + te
    for l in range(NUM_LAYERS):
        q = (h @ p["wq"][l] + p["bq"][l]).reshape(B, NUM_HEADS, 1, dh)
        k = (h @ p["wk"][l] + p["bk"][l]).reshape(B, NUM_HEADS, 1, dh)
        v = (h @ p["wv"][l] + p["bv"][l]).reshape(B, NUM_HEADS, 1, dh)
        scores = (q @ jnp.swapaxes(k, -1, -2)) / jnp.sqrt(float(dh))
        w = jax.nn.softmax(scores, axis=-1)          # shape (B, H, 1, 1) == 1.0
        o = (w @ v).reshape(B, D_MODEL)
        attn = o @ p["wo"][l] + p["bo"][l]
        x = _layer_norm(h + attn, p["ln1g"][l], p["ln1b"][l])
        f = _gelu(x @ p["wf1"][l] + p["bf1"][l])
        f = f @ p["wf2"][l] + p["bf2"][l]
        h = _layer_norm(x + f, p["ln2g"][l], p["ln2b"][l])
    return h @ p["w_out"] + p["b_out"]


def _quantize_like_kernel(p):
    """Round the weight matrices through bf16, as the kernel streams them."""
    q = lambda w: w.astype(jnp.bfloat16).astype(jnp.float32)
    out = dict(p)
    for k in ("w_in", "w_t2", "wv", "wo", "wf1", "wf2", "w_out"):
        out[k] = q(p[k])
    return out


def init_params(key, latent_dim):
    D, NL = D_MODEL, NUM_LAYERS
    ks = jax.random.split(key, 32)
    n = lambda k, s, scale=0.02: (scale * jax.random.normal(k, s)).astype(jnp.float32)
    p = {
        "w_in": n(ks[0], (latent_dim, D)), "b_in": n(ks[1], (1, D)),
        "w_t1": n(ks[2], (1, D)),          "b_t1": n(ks[3], (1, D)),
        "w_t2": n(ks[4], (D, D)),          "b_t2": n(ks[5], (1, D)),
        "wq": n(ks[6], (NL, D, D)),  "bq": n(ks[7], (NL, 1, D)),
        "wk": n(ks[8], (NL, D, D)),  "bk": n(ks[9], (NL, 1, D)),
        "wv": n(ks[10], (NL, D, D)), "bv": n(ks[11], (NL, 1, D)),
        "wo": n(ks[12], (NL, D, D)), "bo": n(ks[13], (NL, 1, D)),
        "ln1g": jnp.ones((NL, 1, D), jnp.float32),
        "ln1b": jnp.zeros((NL, 1, D), jnp.float32),
        "wf1": n(ks[14], (NL, D, D_FF)), "bf1": n(ks[15], (NL, 1, D_FF)),
        "wf2": n(ks[16], (NL, D_FF, D)), "bf2": n(ks[17], (NL, 1, D)),
        "ln2g": jnp.ones((NL, 1, D), jnp.float32),
        "ln2b": jnp.zeros((NL, 1, D), jnp.float32),
        "w_out": n(ks[18], (D, latent_dim)), "b_out": n(ks[19], (1, latent_dim)),
    }
    return p


if __name__ == "__main__":
    LATENT_DIM = 16
    BATCH = 8

    key = jax.random.PRNGKey(0)
    k_p, k_z, k_t = jax.random.split(key, 3)
    params = init_params(k_p, LATENT_DIM)

    z_t = jax.random.normal(k_z, (BATCH, LATENT_DIM), jnp.float32)
    t = jax.random.uniform(k_t, (BATCH, 1), jnp.float32)

    out = jax.block_until_ready(latent_diffusion_forward(z_t, t, params))
    assert out.shape == (BATCH, LATENT_DIM) and out.dtype == jnp.float32

    # Tight check: kernel vs full-softmax-path reference computed with the
    # SAME bf16-rounded weights — validates the attention fold, LayerNorm,
    # GELU and the packed-vector plumbing to 5e-3.
    ref_q = jax.block_until_ready(
        reference_forward(z_t, t, _quantize_like_kernel(params)))
    np.testing.assert_allclose(np.asarray(out), np.asarray(ref_q),
                               rtol=5e-3, atol=5e-3)

    # Drift check: bounds the bf16 weight-quantization error vs the f32
    # master weights (measured ~1e-3; 2e-2 leaves ample margin).
    ref_f32 = jax.block_until_ready(reference_forward(z_t, t, params))
    np.testing.assert_allclose(np.asarray(out), np.asarray(ref_f32),
                               rtol=2e-2, atol=2e-2)

    print("KERNEL_OK")
</pallas_src>

<mosaic_0001>
module attributes {stable_mosaic.version = 11 : i64} {
  func.func @_latent_diffusion_kernel(%arg0: memref<8x16xf32, #tpu.memory_space<vmem>>, %arg1: memref<8x1xf32, #tpu.memory_space<vmem>>, %arg2: memref<4x128xf32, #tpu.memory_space<vmem>>, %arg3: memref<16x128xbf16, #tpu.memory_space<vmem>>, %arg4: memref<128x128xbf16, #tpu.memory_space<vmem>>, %arg5: memref<6x128x128xbf16, #tpu.memory_space<vmem>>, %arg6: memref<6x128x512xbf16, #tpu.memory_space<vmem>>, %arg7: memref<6x1x512xf32, #tpu.memory_space<vmem>>, %arg8: memref<6x512x128xbf16, #tpu.memory_space<vmem>>, %arg9: memref<6x6x128xf32, #tpu.memory_space<vmem>>, %arg10: memref<128x16xbf16, #tpu.memory_space<vmem>>, %arg11: memref<1x16xf32, #tpu.memory_space<vmem>>, %arg12: memref<8x16xf32, #tpu.memory_space<vmem>>) attributes {dimension_semantics = [], scalar_prefetch = 0 : i64, scratch_operands = 0 : i64, tpu.core_type = #tpu.core_type<tc>} {
    %c0 = arith.constant 0 : index
    %c0_0 = arith.constant 0 : index
    %0 = vector.load %arg2[%c0, %c0_0] : memref<4x128xf32, #tpu.memory_space<vmem>>, vector<4x128xf32>
    %1 = vector.extract_strided_slice %0 {offsets = [0, 0], sizes = [1, 128], strides = [1, 1]} : vector<4x128xf32> to vector<1x128xf32>
    %2 = vector.extract_strided_slice %0 {offsets = [1, 0], sizes = [1, 128], strides = [1, 1]} : vector<4x128xf32> to vector<1x128xf32>
    %3 = vector.extract_strided_slice %0 {offsets = [2, 0], sizes = [1, 128], strides = [1, 1]} : vector<4x128xf32> to vector<1x128xf32>
    %4 = vector.extract_strided_slice %0 {offsets = [3, 0], sizes = [1, 128], strides = [1, 1]} : vector<4x128xf32> to vector<1x128xf32>
    %c0_1 = arith.constant 0 : index
    %c0_2 = arith.constant 0 : index
    %5 = vector.load %arg0[%c0_1, %c0_2] : memref<8x16xf32, #tpu.memory_space<vmem>>, vector<8x16xf32>
    %c0_3 = arith.constant 0 : index
    %c0_4 = arith.constant 0 : index
    %6 = vector.load %arg3[%c0_3, %c0_4] : memref<16x128xbf16, #tpu.memory_space<vmem>>, vector<16x128xbf16>
    %cst = arith.constant dense<0.000000e+00> : vector<8x128xf32>
    %7 = tpu.matmul %5, %6, %cst {dimension_numbers = #tpu.dot_dimension_numbers<[1], [0], [0], [1], [0, 0, 1, 1], [], []>} : vector<8x16xf32>, vector<16x128xbf16>, vector<8x128xf32> -> vector<8x128xf32>
    %8 = vector.broadcast %1 : vector<1x128xf32> to vector<8x128xf32>
    %9 = arith.addf %7, %8 : vector<8x128xf32>
    %c0_5 = arith.constant 0 : index
    %c0_6 = arith.constant 0 : index
    %10 = vector.load %arg1[%c0_5, %c0_6] : memref<8x1xf32, #tpu.memory_space<vmem>>, vector<8x1xf32>
    %11 = vector.broadcast %10 : vector<8x1xf32> to vector<8x128xf32>
    %12 = vector.broadcast %2 : vector<1x128xf32> to vector<8x128xf32>
    %13 = arith.mulf %11, %12 : vector<8x128xf32>
    %14 = vector.broadcast %3 : vector<1x128xf32> to vector<8x128xf32>
    %15 = arith.addf %13, %14 : vector<8x128xf32>
    %cst_7 = arith.constant 5.000000e-01 : f32
    %16 = vector.broadcast %cst_7 : f32 to vector<8x128xf32>
    %17 = arith.mulf %16, %15 : vector<8x128xf32>
    %cst_8 = arith.constant 0.707106769 : f32
    %18 = vector.broadcast %cst_8 : f32 to vector<8x128xf32>
    %19 = arith.mulf %15, %18 : vector<8x128xf32>
    %20 = math.erf %19 : vector<8x128xf32>
    %cst_9 = arith.constant 1.000000e+00 : f32
    %21 = vector.broadcast %cst_9 : f32 to vector<8x128xf32>
    %22 = arith.addf %21, %20 : vector<8x128xf32>
    %23 = arith.mulf %17, %22 : vector<8x128xf32>
    %c0_10 = arith.constant 0 : index
    %c0_11 = arith.constant 0 : index
    %24 = vector.load %arg4[%c0_10, %c0_11] : memref<128x128xbf16, #tpu.memory_space<vmem>>, vector<128x128xbf16>
    %cst_12 = arith.constant dense<0.000000e+00> : vector<8x128xf32>
    %25 = tpu.matmul %23, %24, %cst_12 {dimension_numbers = #tpu.dot_dimension_numbers<[1], [0], [0], [1], [0, 0, 1, 1], [], []>} : vector<8x128xf32>, vector<128x128xbf16>, vector<8x128xf32> -> vector<8x128xf32>
    %26 = vector.broadcast %4 : vector<1x128xf32> to vector<8x128xf32>
    %27 = arith.addf %25, %26 : vector<8x128xf32>
    %28 = arith.addf %9, %27 : vector<8x128xf32>
    %c0_13 = arith.constant 0 : index
    %c0_14 = arith.constant 0 : index
    %c0_15 = arith.constant 0 : index
    %29 = vector.load %arg9[%c0_13, %c0_14, %c0_15] : memref<6x6x128xf32, #tpu.memory_space<vmem>>, vector<1x6x128xf32>
    %30 = vector.shape_cast %29 : vector<1x6x128xf32> to vector<6x128xf32>
    %31 = vector.extract_strided_slice %30 {offsets = [0, 0], sizes = [1, 128], strides = [1, 1]} : vector<6x128xf32> to vector<1x128xf32>
    %32 = vector.extract_strided_slice %30 {offsets = [1, 0], sizes = [1, 128], strides = [1, 1]} : vector<6x128xf32> to vector<1x128xf32>
    %33 = vector.extract_strided_slice %30 {offsets = [2, 0], sizes = [1, 128], strides = [1, 1]} : vector<6x128xf32> to vector<1x128xf32>
    %34 = vector.extract_strided_slice %30 {offsets = [3, 0], sizes = [1, 128], strides = [1, 1]} : vector<6x128xf32> to vector<1x128xf32>
    %35 = vector.extract_strided_slice %30 {offsets = [4, 0], sizes = [1, 128], strides = [1, 1]} : vector<6x128xf32> to vector<1x128xf32>
    %36 = vector.extract_strided_slice %30 {offsets = [5, 0], sizes = [1, 128], strides = [1, 1]} : vector<6x128xf32> to vector<1x128xf32>
    %c0_16 = arith.constant 0 : index
    %c0_17 = arith.constant 0 : index
    %c0_18 = arith.constant 0 : index
    %37 = vector.load %arg5[%c0_16, %c0_17, %c0_18] : memref<6x128x128xbf16, #tpu.memory_space<vmem>>, vector<1x128x128xbf16>
    %38 = vector.shape_cast %37 : vector<1x128x128xbf16> to vector<128x128xbf16>
    %cst_19 = arith.constant dense<0.000000e+00> : vector<8x128xf32>
    %39 = tpu.matmul %28, %38, %cst_19 {dimension_numbers = #tpu.dot_dimension_numbers<[1], [0], [0], [1], [0, 0, 1, 1], [], []>} : vector<8x128xf32>, vector<128x128xbf16>, vector<8x128xf32> -> vector<8x128xf32>
    %40 = vector.broadcast %31 : vector<1x128xf32> to vector<8x128xf32>
    %41 = arith.addf %39, %40 : vector<8x128xf32>
    %42 = arith.addf %28, %41 : vector<8x128xf32>
    %cst_20 = arith.constant dense<0.000000e+00> : vector<8xf32>
    %43 = vector.multi_reduction <add>, %42, %cst_20 [1] : vector<8x128xf32> to vector<8xf32>
    %44 = vector.shape_cast %43 : vector<8xf32> to vector<8x1xf32>
    %cst_21 = arith.constant 1.280000e+02 : f32
    %45 = vector.broadcast %cst_21 : f32 to vector<8x1xf32>
    %46 = arith.divf %44, %45 : vector<8x1xf32>
    %47 = vector.broadcast %46 : vector<8x1xf32> to vector<8x128xf32>
    %48 = arith.subf %42, %47 : vector<8x128xf32>
    %49 = arith.mulf %48, %48 : vector<8x128xf32>
    %cst_22 = arith.constant dense<0.000000e+00> : vector<8xf32>
    %50 = vector.multi_reduction <add>, %49, %cst_22 [1] : vector<8x128xf32> to vector<8xf32>
    %51 = vector.shape_cast %50 : vector<8xf32> to vector<8x1xf32>
    %cst_23 = arith.constant 1.280000e+02 : f32
    %52 = vector.broadcast %cst_23 : f32 to vector<8x1xf32>
    %53 = arith.divf %51, %52 : vector<8x1xf32>
    %cst_24 = arith.constant 9.99999974E-6 : f32
    %54 = vector.broadcast %cst_24 : f32 to vector<8x1xf32>
    %55 = arith.addf %53, %54 : vector<8x1xf32>
    %56 = math.rsqrt %55 : vector<8x1xf32>
    %57 = vector.broadcast %56 : vector<8x1xf32> to vector<8x128xf32>
    %58 = arith.mulf %48, %57 : vector<8x128xf32>
    %59 = vector.broadcast %33 : vector<1x128xf32> to vector<8x128xf32>
    %60 = arith.mulf %58, %59 : vector<8x128xf32>
    %61 = vector.broadcast %34 : vector<1x128xf32> to vector<8x128xf32>
    %62 = arith.addf %60, %61 : vector<8x128xf32>
    %c0_25 = arith.constant 0 : index
    %c0_26 = arith.constant 0 : index
    %c0_27 = arith.constant 0 : index
    %63 = vector.load %arg6[%c0_25, %c0_26, %c0_27] : memref<6x128x512xbf16, #tpu.memory_space<vmem>>, vector<1x128x512xbf16>
    %64 = vector.shape_cast %63 : vector<1x128x512xbf16> to vector<128x512xbf16>
    %cst_28 = arith.constant dense<0.000000e+00> : vector<8x512xf32>
    %65 = tpu.matmul %62, %64, %cst_28 {dimension_numbers = #tpu.dot_dimension_numbers<[1], [0], [0], [1], [0, 0, 1, 1], [], []>} : vector<8x128xf32>, vector<128x512xbf16>, vector<8x512xf32> -> vector<8x512xf32>
    %c0_29 = arith.constant 0 : index
    %c0_30 = arith.constant 0 : index
    %c0_31 = arith.constant 0 : index
    %66 = vector.load %arg7[%c0_29, %c0_30, %c0_31] : memref<6x1x512xf32, #tpu.memory_space<vmem>>, vector<1x1x512xf32>
    %67 = vector.shape_cast %66 : vector<1x1x512xf32> to vector<1x512xf32>
    %68 = vector.broadcast %67 : vector<1x512xf32> to vector<8x512xf32>
    %69 = arith.addf %65, %68 : vector<8x512xf32>
    %cst_32 = arith.constant 5.000000e-01 : f32
    %70 = vector.broadcast %cst_32 : f32 to vector<8x512xf32>
    %71 = arith.mulf %70, %69 : vector<8x512xf32>
    %cst_33 = arith.constant 0.707106769 : f32
    %72 = vector.broadcast %cst_33 : f32 to vector<8x512xf32>
    %73 = arith.mulf %69, %72 : vector<8x512xf32>
    %74 = math.erf %73 : vector<8x512xf32>
    %cst_34 = arith.constant 1.000000e+00 : f32
    %75 = vector.broadcast %cst_34 : f32 to vector<8x512xf32>
    %76 = arith.addf %75, %74 : vector<8x512xf32>
    %77 = arith.mulf %71, %76 : vector<8x512xf32>
    %c0_35 = arith.constant 0 : index
    %c0_36 = arith.constant 0 : index
    %c0_37 = arith.constant 0 : index
    %78 = vector.load %arg8[%c0_35, %c0_36, %c0_37] : memref<6x512x128xbf16, #tpu.memory_space<vmem>>, vector<1x512x128xbf16>
    %79 = vector.shape_cast %78 : vector<1x512x128xbf16> to vector<512x128xbf16>
    %cst_38 = arith.constant dense<0.000000e+00> : vector<8x128xf32>
    %80 = tpu.matmul %77, %79, %cst_38 {dimension_numbers = #tpu.dot_dimension_numbers<[1], [0], [0], [1], [0, 0, 1, 1], [], []>} : vector<8x512xf32>, vector<512x128xbf16>, vector<8x128xf32> -> vector<8x128xf32>
    %81 = vector.broadcast %32 : vector<1x128xf32> to vector<8x128xf32>
    %82 = arith.addf %80, %81 : vector<8x128xf32>
    %83 = arith.addf %62, %82 : vector<8x128xf32>
    %cst_39 = arith.constant dense<0.000000e+00> : vector<8xf32>
    %84 = vector.multi_reduction <add>, %83, %cst_39 [1] : vector<8x128xf32> to vector<8xf32>
    %85 = vector.shape_cast %84 : vector<8xf32> to vector<8x1xf32>
    %cst_40 = arith.constant 1.280000e+02 : f32
    %86 = vector.broadcast %cst_40 : f32 to vector<8x1xf32>
    %87 = arith.divf %85, %86 : vector<8x1xf32>
    %88 = vector.broadcast %87 : vector<8x1xf32> to vector<8x128xf32>
    %89 = arith.subf %83, %88 : vector<8x128xf32>
    %90 = arith.mulf %89, %89 : vector<8x128xf32>
    %cst_41 = arith.constant dense<0.000000e+00> : vector<8xf32>
    %91 = vector.multi_reduction <add>, %90, %cst_41 [1] : vector<8x128xf32> to vector<8xf32>
    %92 = vector.shape_cast %91 : vector<8xf32> to vector<8x1xf32>
    %cst_42 = arith.constant 1.280000e+02 : f32
    %93 = vector.broadcast %cst_42 : f32 to vector<8x1xf32>
    %94 = arith.divf %92, %93 : vector<8x1xf32>
    %cst_43 = arith.constant 9.99999974E-6 : f32
    %95 = vector.broadcast %cst_43 : f32 to vector<8x1xf32>
    %96 = arith.addf %94, %95 : vector<8x1xf32>
    %97 = math.rsqrt %96 : vector<8x1xf32>
    %98 = vector.broadcast %97 : vector<8x1xf32> to vector<8x128xf32>
    %99 = arith.mulf %89, %98 : vector<8x128xf32>
    %100 = vector.broadcast %35 : vector<1x128xf32> to vector<8x128xf32>
    %101 = arith.mulf %99, %100 : vector<8x128xf32>
    %102 = vector.broadcast %36 : vector<1x128xf32> to vector<8x128xf32>
    %103 = arith.addf %101, %102 : vector<8x128xf32>
    %c1 = arith.constant 1 : index
    %c0_44 = arith.constant 0 : index
    %c0_45 = arith.constant 0 : index
    %104 = vector.load %arg9[%c1, %c0_44, %c0_45] : memref<6x6x128xf32, #tpu.memory_space<vmem>>, vector<1x6x128xf32>
    %105 = vector.shape_cast %104 : vector<1x6x128xf32> to vector<6x128xf32>
    %106 = vector.extract_strided_slice %105 {offsets = [0, 0], sizes = [1, 128], strides = [1, 1]} : vector<6x128xf32> to vector<1x128xf32>
    %107 = vector.extract_strided_slice %105 {offsets = [1, 0], sizes = [1, 128], strides = [1, 1]} : vector<6x128xf32> to vector<1x128xf32>
    %108 = vector.extract_strided_slice %105 {offsets = [2, 0], sizes = [1, 128], strides = [1, 1]} : vector<6x128xf32> to vector<1x128xf32>
    %109 = vector.extract_strided_slice %105 {offsets = [3, 0], sizes = [1, 128], strides = [1, 1]} : vector<6x128xf32> to vector<1x128xf32>
    %110 = vector.extract_strided_slice %105 {offsets = [4, 0], sizes = [1, 128], strides = [1, 1]} : vector<6x128xf32> to vector<1x128xf32>
    %111 = vector.extract_strided_slice %105 {offsets = [5, 0], sizes = [1, 128], strides = [1, 1]} : vector<6x128xf32> to vector<1x128xf32>
    %c1_46 = arith.constant 1 : index
    %c0_47 = arith.constant 0 : index
    %c0_48 = arith.constant 0 : index
    %112 = vector.load %arg5[%c1_46, %c0_47, %c0_48] : memref<6x128x128xbf16, #tpu.memory_space<vmem>>, vector<1x128x128xbf16>
    %113 = vector.shape_cast %112 : vector<1x128x128xbf16> to vector<128x128xbf16>
    %cst_49 = arith.constant dense<0.000000e+00> : vector<8x128xf32>
    %114 = tpu.matmul %103, %113, %cst_49 {dimension_numbers = #tpu.dot_dimension_numbers<[1], [0], [0], [1], [0, 0, 1, 1], [], []>} : vector<8x128xf32>, vector<128x128xbf16>, vector<8x128xf32> -> vector<8x128xf32>
    %115 = vector.broadcast %106 : vector<1x128xf32> to vector<8x128xf32>
    %116 = arith.addf %114, %115 : vector<8x128xf32>
    %117 = arith.addf %103, %116 : vector<8x128xf32>
    %cst_50 = arith.constant dense<0.000000e+00> : vector<8xf32>
    %118 = vector.multi_reduction <add>, %117, %cst_50 [1] : vector<8x128xf32> to vector<8xf32>
    %119 = vector.shape_cast %118 : vector<8xf32> to vector<8x1xf32>
    %cst_51 = arith.constant 1.280000e+02 : f32
    %120 = vector.broadcast %cst_51 : f32 to vector<8x1xf32>
    %121 = arith.divf %119, %120 : vector<8x1xf32>
    %122 = vector.broadcast %121 : vector<8x1xf32> to vector<8x128xf32>
    %123 = arith.subf %117, %122 : vector<8x128xf32>
    %124 = arith.mulf %123, %123 : vector<8x128xf32>
    %cst_52 = arith.constant dense<0.000000e+00> : vector<8xf32>
    %125 = vector.multi_reduction <add>, %124, %cst_52 [1] : vector<8x128xf32> to vector<8xf32>
    %126 = vector.shape_cast %125 : vector<8xf32> to vector<8x1xf32>
    %cst_53 = arith.constant 1.280000e+02 : f32
    %127 = vector.broadcast %cst_53 : f32 to vector<8x1xf32>
    %128 = arith.divf %126, %127 : vector<8x1xf32>
    %cst_54 = arith.constant 9.99999974E-6 : f32
    %129 = vector.broadcast %cst_54 : f32 to vector<8x1xf32>
    %130 = arith.addf %128, %129 : vector<8x1xf32>
    %131 = math.rsqrt %130 : vector<8x1xf32>
    %132 = vector.broadcast %131 : vector<8x1xf32> to vector<8x128xf32>
    %133 = arith.mulf %123, %132 : vector<8x128xf32>
    %134 = vector.broadcast %108 : vector<1x128xf32> to vector<8x128xf32>
    %135 = arith.mulf %133, %134 : vector<8x128xf32>
    %136 = vector.broadcast %109 : vector<1x128xf32> to vector<8x128xf32>
    %137 = arith.addf %135, %136 : vector<8x128xf32>
    %c1_55 = arith.constant 1 : index
    %c0_56 = arith.constant 0 : index
    %c0_57 = arith.constant 0 : index
    %138 = vector.load %arg6[%c1_55, %c0_56, %c0_57] : memref<6x128x512xbf16, #tpu.memory_space<vmem>>, vector<1x128x512xbf16>
    %139 = vector.shape_cast %138 : vector<1x128x512xbf16> to vector<128x512xbf16>
    %cst_58 = arith.constant dense<0.000000e+00> : vector<8x512xf32>
    %140 = tpu.matmul %137, %139, %cst_58 {dimension_numbers = #tpu.dot_dimension_numbers<[1], [0], [0], [1], [0, 0, 1, 1], [], []>} : vector<8x128xf32>, vector<128x512xbf16>, vector<8x512xf32> -> vector<8x512xf32>
    %c1_59 = arith.constant 1 : index
    %c0_60 = arith.constant 0 : index
    %c0_61 = arith.constant 0 : index
    %141 = vector.load %arg7[%c1_59, %c0_60, %c0_61] : memref<6x1x512xf32, #tpu.memory_space<vmem>>, vector<1x1x512xf32>
    %142 = vector.shape_cast %141 : vector<1x1x512xf32> to vector<1x512xf32>
    %143 = vector.broadcast %142 : vector<1x512xf32> to vector<8x512xf32>
    %144 = arith.addf %140, %143 : vector<8x512xf32>
    %cst_62 = arith.constant 5.000000e-01 : f32
    %145 = vector.broadcast %cst_62 : f32 to vector<8x512xf32>
    %146 = arith.mulf %145, %144 : vector<8x512xf32>
    %cst_63 = arith.constant 0.707106769 : f32
    %147 = vector.broadcast %cst_63 : f32 to vector<8x512xf32>
    %148 = arith.mulf %144, %147 : vector<8x512xf32>
    %149 = math.erf %148 : vector<8x512xf32>
    %cst_64 = arith.constant 1.000000e+00 : f32
    %150 = vector.broadcast %cst_64 : f32 to vector<8x512xf32>
    %151 = arith.addf %150, %149 : vector<8x512xf32>
    %152 = arith.mulf %146, %151 : vector<8x512xf32>
    %c1_65 = arith.constant 1 : index
    %c0_66 = arith.constant 0 : index
    %c0_67 = arith.constant 0 : index
    %153 = vector.load %arg8[%c1_65, %c0_66, %c0_67] : memref<6x512x128xbf16, #tpu.memory_space<vmem>>, vector<1x512x128xbf16>
    %154 = vector.shape_cast %153 : vector<1x512x128xbf16> to vector<512x128xbf16>
    %cst_68 = arith.constant dense<0.000000e+00> : vector<8x128xf32>
    %155 = tpu.matmul %152, %154, %cst_68 {dimension_numbers = #tpu.dot_dimension_numbers<[1], [0], [0], [1], [0, 0, 1, 1], [], []>} : vector<8x512xf32>, vector<512x128xbf16>, vector<8x128xf32> -> vector<8x128xf32>
    %156 = vector.broadcast %107 : vector<1x128xf32> to vector<8x128xf32>
    %157 = arith.addf %155, %156 : vector<8x128xf32>
    %158 = arith.addf %137, %157 : vector<8x128xf32>
    %cst_69 = arith.constant dense<0.000000e+00> : vector<8xf32>
    %159 = vector.multi_reduction <add>, %158, %cst_69 [1] : vector<8x128xf32> to vector<8xf32>
    %160 = vector.shape_cast %159 : vector<8xf32> to vector<8x1xf32>
    %cst_70 = arith.constant 1.280000e+02 : f32
    %161 = vector.broadcast %cst_70 : f32 to vector<8x1xf32>
    %162 = arith.divf %160, %161 : vector<8x1xf32>
    %163 = vector.broadcast %162 : vector<8x1xf32> to vector<8x128xf32>
    %164 = arith.subf %158, %163 : vector<8x128xf32>
    %165 = arith.mulf %164, %164 : vector<8x128xf32>
    %cst_71 = arith.constant dense<0.000000e+00> : vector<8xf32>
    %166 = vector.multi_reduction <add>, %165, %cst_71 [1] : vector<8x128xf32> to vector<8xf32>
    %167 = vector.shape_cast %166 : vector<8xf32> to vector<8x1xf32>
    %cst_72 = arith.constant 1.280000e+02 : f32
    %168 = vector.broadcast %cst_72 : f32 to vector<8x1xf32>
    %169 = arith.divf %167, %168 : vector<8x1xf32>
    %cst_73 = arith.constant 9.99999974E-6 : f32
    %170 = vector.broadcast %cst_73 : f32 to vector<8x1xf32>
    %171 = arith.addf %169, %170 : vector<8x1xf32>
    %172 = math.rsqrt %171 : vector<8x1xf32>
    %173 = vector.broadcast %172 : vector<8x1xf32> to vector<8x128xf32>
    %174 = arith.mulf %164, %173 : vector<8x128xf32>
    %175 = vector.broadcast %110 : vector<1x128xf32> to vector<8x128xf32>
    %176 = arith.mulf %174, %175 : vector<8x128xf32>
    %177 = vector.broadcast %111 : vector<1x128xf32> to vector<8x128xf32>
    %178 = arith.addf %176, %177 : vector<8x128xf32>
    %c2 = arith.constant 2 : index
    %c0_74 = arith.constant 0 : index
    %c0_75 = arith.constant 0 : index
    %179 = vector.load %arg9[%c2, %c0_74, %c0_75] : memref<6x6x128xf32, #tpu.memory_space<vmem>>, vector<1x6x128xf32>
    %180 = vector.shape_cast %179 : vector<1x6x128xf32> to vector<6x128xf32>
    %181 = vector.extract_strided_slice %180 {offsets = [0, 0], sizes = [1, 128], strides = [1, 1]} : vector<6x128xf32> to vector<1x128xf32>
    %182 = vector.extract_strided_slice %180 {offsets = [1, 0], sizes = [1, 128], strides = [1, 1]} : vector<6x128xf32> to vector<1x128xf32>
    %183 = vector.extract_strided_slice %180 {offsets = [2, 0], sizes = [1, 128], strides = [1, 1]} : vector<6x128xf32> to vector<1x128xf32>
    %184 = vector.extract_strided_slice %180 {offsets = [3, 0], sizes = [1, 128], strides = [1, 1]} : vector<6x128xf32> to vector<1x128xf32>
    %185 = vector.extract_strided_slice %180 {offsets = [4, 0], sizes = [1, 128], strides = [1, 1]} : vector<6x128xf32> to vector<1x128xf32>
    %186 = vector.extract_strided_slice %180 {offsets = [5, 0], sizes = [1, 128], strides = [1, 1]} : vector<6x128xf32> to vector<1x128xf32>
    %c2_76 = arith.constant 2 : index
    %c0_77 = arith.constant 0 : index
    %c0_78 = arith.constant 0 : index
    %187 = vector.load %arg5[%c2_76, %c0_77, %c0_78] : memref<6x128x128xbf16, #tpu.memory_space<vmem>>, vector<1x128x128xbf16>
    %188 = vector.shape_cast %187 : vector<1x128x128xbf16> to vector<128x128xbf16>
    %cst_79 = arith.constant dense<0.000000e+00> : vector<8x128xf32>
    %189 = tpu.matmul %178, %188, %cst_79 {dimension_numbers = #tpu.dot_dimension_numbers<[1], [0], [0], [1], [0, 0, 1, 1], [], []>} : vector<8x128xf32>, vector<128x128xbf16>, vector<8x128xf32> -> vector<8x128xf32>
    %190 = vector.broadcast %181 : vector<1x128xf32> to vector<8x128xf32>
    %191 = arith.addf %189, %190 : vector<8x128xf32>
    %192 = arith.addf %178, %191 : vector<8x128xf32>
    %cst_80 = arith.constant dense<0.000000e+00> : vector<8xf32>
    %193 = vector.multi_reduction <add>, %192, %cst_80 [1] : vector<8x128xf32> to vector<8xf32>
    %194 = vector.shape_cast %193 : vector<8xf32> to vector<8x1xf32>
    %cst_81 = arith.constant 1.280000e+02 : f32
    %195 = vector.broadcast %cst_81 : f32 to vector<8x1xf32>
    %196 = arith.divf %194, %195 : vector<8x1xf32>
    %197 = vector.broadcast %196 : vector<8x1xf32> to vector<8x128xf32>
    %198 = arith.subf %192, %197 : vector<8x128xf32>
    %199 = arith.mulf %198, %198 : vector<8x128xf32>
    %cst_82 = arith.constant dense<0.000000e+00> : vector<8xf32>
    %200 = vector.multi_reduction <add>, %199, %cst_82 [1] : vector<8x128xf32> to vector<8xf32>
    %201 = vector.shape_cast %200 : vector<8xf32> to vector<8x1xf32>
    %cst_83 = arith.constant 1.280000e+02 : f32
    %202 = vector.broadcast %cst_83 : f32 to vector<8x1xf32>
    %203 = arith.divf %201, %202 : vector<8x1xf32>
    %cst_84 = arith.constant 9.99999974E-6 : f32
    %204 = vector.broadcast %cst_84 : f32 to vector<8x1xf32>
    %205 = arith.addf %203, %204 : vector<8x1xf32>
    %206 = math.rsqrt %205 : vector<8x1xf32>
    %207 = vector.broadcast %206 : vector<8x1xf32> to vector<8x128xf32>
    %208 = arith.mulf %198, %207 : vector<8x128xf32>
    %209 = vector.broadcast %183 : vector<1x128xf32> to vector<8x128xf32>
    %210 = arith.mulf %208, %209 : vector<8x128xf32>
    %211 = vector.broadcast %184 : vector<1x128xf32> to vector<8x128xf32>
    %212 = arith.addf %210, %211 : vector<8x128xf32>
    %c2_85 = arith.constant 2 : index
    %c0_86 = arith.constant 0 : index
    %c0_87 = arith.constant 0 : index
    %213 = vector.load %arg6[%c2_85, %c0_86, %c0_87] : memref<6x128x512xbf16, #tpu.memory_space<vmem>>, vector<1x128x512xbf16>
    %214 = vector.shape_cast %213 : vector<1x128x512xbf16> to vector<128x512xbf16>
    %cst_88 = arith.constant dense<0.000000e+00> : vector<8x512xf32>
    %215 = tpu.matmul %212, %214, %cst_88 {dimension_numbers = #tpu.dot_dimension_numbers<[1], [0], [0], [1], [0, 0, 1, 1], [], []>} : vector<8x128xf32>, vector<128x512xbf16>, vector<8x512xf32> -> vector<8x512xf32>
    %c2_89 = arith.constant 2 : index
    %c0_90 = arith.constant 0 : index
    %c0_91 = arith.constant 0 : index
    %216 = vector.load %arg7[%c2_89, %c0_90, %c0_91] : memref<6x1x512xf32, #tpu.memory_space<vmem>>, vector<1x1x512xf32>
    %217 = vector.shape_cast %216 : vector<1x1x512xf32> to vector<1x512xf32>
    %218 = vector.broadcast %217 : vector<1x512xf32> to vector<8x512xf32>
    %219 = arith.addf %215, %218 : vector<8x512xf32>
    %cst_92 = arith.constant 5.000000e-01 : f32
    %220 = vector.broadcast %cst_92 : f32 to vector<8x512xf32>
    %221 = arith.mulf %220, %219 : vector<8x512xf32>
    %cst_93 = arith.constant 0.707106769 : f32
    %222 = vector.broadcast %cst_93 : f32 to vector<8x512xf32>
    %223 = arith.mulf %219, %222 : vector<8x512xf32>
    %224 = math.erf %223 : vector<8x512xf32>
    %cst_94 = arith.constant 1.000000e+00 : f32
    %225 = vector.broadcast %cst_94 : f32 to vector<8x512xf32>
    %226 = arith.addf %225, %224 : vector<8x512xf32>
    %227 = arith.mulf %221, %226 : vector<8x512xf32>
    %c2_95 = arith.constant 2 : index
    %c0_96 = arith.constant 0 : index
    %c0_97 = arith.constant 0 : index
    %228 = vector.load %arg8[%c2_95, %c0_96, %c0_97] : memref<6x512x128xbf16, #tpu.memory_space<vmem>>, vector<1x512x128xbf16>
    %229 = vector.shape_cast %228 : vector<1x512x128xbf16> to vector<512x128xbf16>
    %cst_98 = arith.constant dense<0.000000e+00> : vector<8x128xf32>
    %230 = tpu.matmul %227, %229, %cst_98 {dimension_numbers = #tpu.dot_dimension_numbers<[1], [0], [0], [1], [0, 0, 1, 1], [], []>} : vector<8x512xf32>, vector<512x128xbf16>, vector<8x128xf32> -> vector<8x128xf32>
    %231 = vector.broadcast %182 : vector<1x128xf32> to vector<8x128xf32>
    %232 = arith.addf %230, %231 : vector<8x128xf32>
    %233 = arith.addf %212, %232 : vector<8x128xf32>
    %cst_99 = arith.constant dense<0.000000e+00> : vector<8xf32>
    %234 = vector.multi_reduction <add>, %233, %cst_99 [1] : vector<8x128xf32> to vector<8xf32>
    %235 = vector.shape_cast %234 : vector<8xf32> to vector<8x1xf32>
    %cst_100 = arith.constant 1.280000e+02 : f32
    %236 = vector.broadcast %cst_100 : f32 to vector<8x1xf32>
    %237 = arith.divf %235, %236 : vector<8x1xf32>
    %238 = vector.broadcast %237 : vector<8x1xf32> to vector<8x128xf32>
    %239 = arith.subf %233, %238 : vector<8x128xf32>
    %240 = arith.mulf %239, %239 : vector<8x128xf32>
    %cst_101 = arith.constant dense<0.000000e+00> : vector<8xf32>
    %241 = vector.multi_reduction <add>, %240, %cst_101 [1] : vector<8x128xf32> to vector<8xf32>
    %242 = vector.shape_cast %241 : vector<8xf32> to vector<8x1xf32>
    %cst_102 = arith.constant 1.280000e+02 : f32
    %243 = vector.broadcast %cst_102 : f32 to vector<8x1xf32>
    %244 = arith.divf %242, %243 : vector<8x1xf32>
    %cst_103 = arith.constant 9.99999974E-6 : f32
    %245 = vector.broadcast %cst_103 : f32 to vector<8x1xf32>
    %246 = arith.addf %244, %245 : vector<8x1xf32>
    %247 = math.rsqrt %246 : vector<8x1xf32>
    %248 = vector.broadcast %247 : vector<8x1xf32> to vector<8x128xf32>
    %249 = arith.mulf %239, %248 : vector<8x128xf32>
    %250 = vector.broadcast %185 : vector<1x128xf32> to vector<8x128xf32>
    %251 = arith.mulf %249, %250 : vector<8x128xf32>
    %252 = vector.broadcast %186 : vector<1x128xf32> to vector<8x128xf32>
    %253 = arith.addf %251, %252 : vector<8x128xf32>
    %c3 = arith.constant 3 : index
    %c0_104 = arith.constant 0 : index
    %c0_105 = arith.constant 0 : index
    %254 = vector.load %arg9[%c3, %c0_104, %c0_105] : memref<6x6x128xf32, #tpu.memory_space<vmem>>, vector<1x6x128xf32>
    %255 = vector.shape_cast %254 : vector<1x6x128xf32> to vector<6x128xf32>
    %256 = vector.extract_strided_slice %255 {offsets = [0, 0], sizes = [1, 128], strides = [1, 1]} : vector<6x128xf32> to vector<1x128xf32>
    %257 = vector.extract_strided_slice %255 {offsets = [1, 0], sizes = [1, 128], strides = [1, 1]} : vector<6x128xf32> to vector<1x128xf32>
    %258 = vector.extract_strided_slice %255 {offsets = [2, 0], sizes = [1, 128], strides = [1, 1]} : vector<6x128xf32> to vector<1x128xf32>
    %259 = vector.extract_strided_slice %255 {offsets = [3, 0], sizes = [1, 128], strides = [1, 1]} : vector<6x128xf32> to vector<1x128xf32>
    %260 = vector.extract_strided_slice %255 {offsets = [4, 0], sizes = [1, 128], strides = [1, 1]} : vector<6x128xf32> to vector<1x128xf32>
    %261 = vector.extract_strided_slice %255 {offsets = [5, 0], sizes = [1, 128], strides = [1, 1]} : vector<6x128xf32> to vector<1x128xf32>
    %c3_106 = arith.constant 3 : index
    %c0_107 = arith.constant 0 : index
    %c0_108 = arith.constant 0 : index
    %262 = vector.load %arg5[%c3_106, %c0_107, %c0_108] : memref<6x128x128xbf16, #tpu.memory_space<vmem>>, vector<1x128x128xbf16>
    %263 = vector.shape_cast %262 : vector<1x128x128xbf16> to vector<128x128xbf16>
    %cst_109 = arith.constant dense<0.000000e+00> : vector<8x128xf32>
    %264 = tpu.matmul %253, %263, %cst_109 {dimension_numbers = #tpu.dot_dimension_numbers<[1], [0], [0], [1], [0, 0, 1, 1], [], []>} : vector<8x128xf32>, vector<128x128xbf16>, vector<8x128xf32> -> vector<8x128xf32>
    %265 = vector.broadcast %256 : vector<1x128xf32> to vector<8x128xf32>
    %266 = arith.addf %264, %265 : vector<8x128xf32>
    %267 = arith.addf %253, %266 : vector<8x128xf32>
    %cst_110 = arith.constant dense<0.000000e+00> : vector<8xf32>
    %268 = vector.multi_reduction <add>, %267, %cst_110 [1] : vector<8x128xf32> to vector<8xf32>
    %269 = vector.shape_cast %268 : vector<8xf32> to vector<8x1xf32>
    %cst_111 = arith.constant 1.280000e+02 : f32
    %270 = vector.broadcast %cst_111 : f32 to vector<8x1xf32>
    %271 = arith.divf %269, %270 : vector<8x1xf32>
    %272 = vector.broadcast %271 : vector<8x1xf32> to vector<8x128xf32>
    %273 = arith.subf %267, %272 : vector<8x128xf32>
    %274 = arith.mulf %273, %273 : vector<8x128xf32>
    %cst_112 = arith.constant dense<0.000000e+00> : vector<8xf32>
    %275 = vector.multi_reduction <add>, %274, %cst_112 [1] : vector<8x128xf32> to vector<8xf32>
    %276 = vector.shape_cast %275 : vector<8xf32> to vector<8x1xf32>
    %cst_113 = arith.constant 1.280000e+02 : f32
    %277 = vector.broadcast %cst_113 : f32 to vector<8x1xf32>
    %278 = arith.divf %276, %277 : vector<8x1xf32>
    %cst_114 = arith.constant 9.99999974E-6 : f32
    %279 = vector.broadcast %cst_114 : f32 to vector<8x1xf32>
    %280 = arith.addf %278, %279 : vector<8x1xf32>
    %281 = math.rsqrt %280 : vector<8x1xf32>
    %282 = vector.broadcast %281 : vector<8x1xf32> to vector<8x128xf32>
    %283 = arith.mulf %273, %282 : vector<8x128xf32>
    %284 = vector.broadcast %258 : vector<1x128xf32> to vector<8x128xf32>
    %285 = arith.mulf %283, %284 : vector<8x128xf32>
    %286 = vector.broadcast %259 : vector<1x128xf32> to vector<8x128xf32>
    %287 = arith.addf %285, %286 : vector<8x128xf32>
    %c3_115 = arith.constant 3 : index
    %c0_116 = arith.constant 0 : index
    %c0_117 = arith.constant 0 : index
    %288 = vector.load %arg6[%c3_115, %c0_116, %c0_117] : memref<6x128x512xbf16, #tpu.memory_space<vmem>>, vector<1x128x512xbf16>
    %289 = vector.shape_cast %288 : vector<1x128x512xbf16> to vector<128x512xbf16>
    %cst_118 = arith.constant dense<0.000000e+00> : vector<8x512xf32>
    %290 = tpu.matmul %287, %289, %cst_118 {dimension_numbers = #tpu.dot_dimension_numbers<[1], [0], [0], [1], [0, 0, 1, 1], [], []>} : vector<8x128xf32>, vector<128x512xbf16>, vector<8x512xf32> -> vector<8x512xf32>
    %c3_119 = arith.constant 3 : index
    %c0_120 = arith.constant 0 : index
    %c0_121 = arith.constant 0 : index
    %291 = vector.load %arg7[%c3_119, %c0_120, %c0_121] : memref<6x1x512xf32, #tpu.memory_space<vmem>>, vector<1x1x512xf32>
    %292 = vector.shape_cast %291 : vector<1x1x512xf32> to vector<1x512xf32>
    %293 = vector.broadcast %292 : vector<1x512xf32> to vector<8x512xf32>
    %294 = arith.addf %290, %293 : vector<8x512xf32>
    %cst_122 = arith.constant 5.000000e-01 : f32
    %295 = vector.broadcast %cst_122 : f32 to vector<8x512xf32>
    %296 = arith.mulf %295, %294 : vector<8x512xf32>
    %cst_123 = arith.constant 0.707106769 : f32
    %297 = vector.broadcast %cst_123 : f32 to vector<8x512xf32>
    %298 = arith.mulf %294, %297 : vector<8x512xf32>
    %299 = math.erf %298 : vector<8x512xf32>
    %cst_124 = arith.constant 1.000000e+00 : f32
    %300 = vector.broadcast %cst_124 : f32 to vector<8x512xf32>
    %301 = arith.addf %300, %299 : vector<8x512xf32>
    %302 = arith.mulf %296, %301 : vector<8x512xf32>
    %c3_125 = arith.constant 3 : index
    %c0_126 = arith.constant 0 : index
    %c0_127 = arith.constant 0 : index
    %303 = vector.load %arg8[%c3_125, %c0_126, %c0_127] : memref<6x512x128xbf16, #tpu.memory_space<vmem>>, vector<1x512x128xbf16>
    %304 = vector.shape_cast %303 : vector<1x512x128xbf16> to vector<512x128xbf16>
    %cst_128 = arith.constant dense<0.000000e+00> : vector<8x128xf32>
    %305 = tpu.matmul %302, %304, %cst_128 {dimension_numbers = #tpu.dot_dimension_numbers<[1], [0], [0], [1], [0, 0, 1, 1], [], []>} : vector<8x512xf32>, vector<512x128xbf16>, vector<8x128xf32> -> vector<8x128xf32>
    %306 = vector.broadcast %257 : vector<1x128xf32> to vector<8x128xf32>
    %307 = arith.addf %305, %306 : vector<8x128xf32>
    %308 = arith.addf %287, %307 : vector<8x128xf32>
    %cst_129 = arith.constant dense<0.000000e+00> : vector<8xf32>
    %309 = vector.multi_reduction <add>, %308, %cst_129 [1] : vector<8x128xf32> to vector<8xf32>
    %310 = vector.shape_cast %309 : vector<8xf32> to vector<8x1xf32>
    %cst_130 = arith.constant 1.280000e+02 : f32
    %311 = vector.broadcast %cst_130 : f32 to vector<8x1xf32>
    %312 = arith.divf %310, %311 : vector<8x1xf32>
    %313 = vector.broadcast %312 : vector<8x1xf32> to vector<8x128xf32>
    %314 = arith.subf %308, %313 : vector<8x128xf32>
    %315 = arith.mulf %314, %314 : vector<8x128xf32>
    %cst_131 = arith.constant dense<0.000000e+00> : vector<8xf32>
    %316 = vector.multi_reduction <add>, %315, %cst_131 [1] : vector<8x128xf32> to vector<8xf32>
    %317 = vector.shape_cast %316 : vector<8xf32> to vector<8x1xf32>
    %cst_132 = arith.constant 1.280000e+02 : f32
    %318 = vector.broadcast %cst_132 : f32 to vector<8x1xf32>
    %319 = arith.divf %317, %318 : vector<8x1xf32>
    %cst_133 = arith.constant 9.99999974E-6 : f32
    %320 = vector.broadcast %cst_133 : f32 to vector<8x1xf32>
    %321 = arith.addf %319, %320 : vector<8x1xf32>
    %322 = math.rsqrt %321 : vector<8x1xf32>
    %323 = vector.broadcast %322 : vector<8x1xf32> to vector<8x128xf32>
    %324 = arith.mulf %314, %323 : vector<8x128xf32>
    %325 = vector.broadcast %260 : vector<1x128xf32> to vector<8x128xf32>
    %326 = arith.mulf %324, %325 : vector<8x128xf32>
    %327 = vector.broadcast %261 : vector<1x128xf32> to vector<8x128xf32>
    %328 = arith.addf %326, %327 : vector<8x128xf32>
    %c4 = arith.constant 4 : index
    %c0_134 = arith.constant 0 : index
    %c0_135 = arith.constant 0 : index
    %329 = vector.load %arg9[%c4, %c0_134, %c0_135] : memref<6x6x128xf32, #tpu.memory_space<vmem>>, vector<1x6x128xf32>
    %330 = vector.shape_cast %329 : vector<1x6x128xf32> to vector<6x128xf32>
    %331 = vector.extract_strided_slice %330 {offsets = [0, 0], sizes = [1, 128], strides = [1, 1]} : vector<6x128xf32> to vector<1x128xf32>
    %332 = vector.extract_strided_slice %330 {offsets = [1, 0], sizes = [1, 128], strides = [1, 1]} : vector<6x128xf32> to vector<1x128xf32>
    %333 = vector.extract_strided_slice %330 {offsets = [2, 0], sizes = [1, 128], strides = [1, 1]} : vector<6x128xf32> to vector<1x128xf32>
    %334 = vector.extract_strided_slice %330 {offsets = [3, 0], sizes = [1, 128], strides = [1, 1]} : vector<6x128xf32> to vector<1x128xf32>
    %335 = vector.extract_strided_slice %330 {offsets = [4, 0], sizes = [1, 128], strides = [1, 1]} : vector<6x128xf32> to vector<1x128xf32>
    %336 = vector.extract_strided_slice %330 {offsets = [5, 0], sizes = [1, 128], strides = [1, 1]} : vector<6x128xf32> to vector<1x128xf32>
    %c4_136 = arith.constant 4 : index
    %c0_137 = arith.constant 0 : index
    %c0_138 = arith.constant 0 : index
    %337 = vector.load %arg5[%c4_136, %c0_137, %c0_138] : memref<6x128x128xbf16, #tpu.memory_space<vmem>>, vector<1x128x128xbf16>
    %338 = vector.shape_cast %337 : vector<1x128x128xbf16> to vector<128x128xbf16>
    %cst_139 = arith.constant dense<0.000000e+00> : vector<8x128xf32>
    %339 = tpu.matmul %328, %338, %cst_139 {dimension_numbers = #tpu.dot_dimension_numbers<[1], [0], [0], [1], [0, 0, 1, 1], [], []>} : vector<8x128xf32>, vector<128x128xbf16>, vector<8x128xf32> -> vector<8x128xf32>
    %340 = vector.broadcast %331 : vector<1x128xf32> to vector<8x128xf32>
    %341 = arith.addf %339, %340 : vector<8x128xf32>
    %342 = arith.addf %328, %341 : vector<8x128xf32>
    %cst_140 = arith.constant dense<0.000000e+00> : vector<8xf32>
    %343 = vector.multi_reduction <add>, %342, %cst_140 [1] : vector<8x128xf32> to vector<8xf32>
    %344 = vector.shape_cast %343 : vector<8xf32> to vector<8x1xf32>
    %cst_141 = arith.constant 1.280000e+02 : f32
    %345 = vector.broadcast %cst_141 : f32 to vector<8x1xf32>
    %346 = arith.divf %344, %345 : vector<8x1xf32>
    %347 = vector.broadcast %346 : vector<8x1xf32> to vector<8x128xf32>
    %348 = arith.subf %342, %347 : vector<8x128xf32>
    %349 = arith.mulf %348, %348 : vector<8x128xf32>
    %cst_142 = arith.constant dense<0.000000e+00> : vector<8xf32>
    %350 = vector.multi_reduction <add>, %349, %cst_142 [1] : vector<8x128xf32> to vector<8xf32>
    %351 = vector.shape_cast %350 : vector<8xf32> to vector<8x1xf32>
    %cst_143 = arith.constant 1.280000e+02 : f32
    %352 = vector.broadcast %cst_143 : f32 to vector<8x1xf32>
    %353 = arith.divf %351, %352 : vector<8x1xf32>
    %cst_144 = arith.constant 9.99999974E-6 : f32
    %354 = vector.broadcast %cst_144 : f32 to vector<8x1xf32>
    %355 = arith.addf %353, %354 : vector<8x1xf32>
    %356 = math.rsqrt %355 : vector<8x1xf32>
    %357 = vector.broadcast %356 : vector<8x1xf32> to vector<8x128xf32>
    %358 = arith.mulf %348, %357 : vector<8x128xf32>
    %359 = vector.broadcast %333 : vector<1x128xf32> to vector<8x128xf32>
    %360 = arith.mulf %358, %359 : vector<8x128xf32>
    %361 = vector.broadcast %334 : vector<1x128xf32> to vector<8x128xf32>
    %362 = arith.addf %360, %361 : vector<8x128xf32>
    %c4_145 = arith.constant 4 : index
    %c0_146 = arith.constant 0 : index
    %c0_147 = arith.constant 0 : index
    %363 = vector.load %arg6[%c4_145, %c0_146, %c0_147] : memref<6x128x512xbf16, #tpu.memory_space<vmem>>, vector<1x128x512xbf16>
    %364 = vector.shape_cast %363 : vector<1x128x512xbf16> to vector<128x512xbf16>
    %cst_148 = arith.constant dense<0.000000e+00> : vector<8x512xf32>
    %365 = tpu.matmul %362, %364, %cst_148 {dimension_numbers = #tpu.dot_dimension_numbers<[1], [0], [0], [1], [0, 0, 1, 1], [], []>} : vector<8x128xf32>, vector<128x512xbf16>, vector<8x512xf32> -> vector<8x512xf32>
    %c4_149 = arith.constant 4 : index
    %c0_150 = arith.constant 0 : index
    %c0_151 = arith.constant 0 : index
    %366 = vector.load %arg7[%c4_149, %c0_150, %c0_151] : memref<6x1x512xf32, #tpu.memory_space<vmem>>, vector<1x1x512xf32>
    %367 = vector.shape_cast %366 : vector<1x1x512xf32> to vector<1x512xf32>
    %368 = vector.broadcast %367 : vector<1x512xf32> to vector<8x512xf32>
    %369 = arith.addf %365, %368 : vector<8x512xf32>
    %cst_152 = arith.constant 5.000000e-01 : f32
    %370 = vector.broadcast %cst_152 : f32 to vector<8x512xf32>
    %371 = arith.mulf %370, %369 : vector<8x512xf32>
    %cst_153 = arith.constant 0.707106769 : f32
    %372 = vector.broadcast %cst_153 : f32 to vector<8x512xf32>
    %373 = arith.mulf %369, %372 : vector<8x512xf32>
    %374 = math.erf %373 : vector<8x512xf32>
    %cst_154 = arith.constant 1.000000e+00 : f32
    %375 = vector.broadcast %cst_154 : f32 to vector<8x512xf32>
    %376 = arith.addf %375, %374 : vector<8x512xf32>
    %377 = arith.mulf %371, %376 : vector<8x512xf32>
    %c4_155 = arith.constant 4 : index
    %c0_156 = arith.constant 0 : index
    %c0_157 = arith.constant 0 : index
    %378 = vector.load %arg8[%c4_155, %c0_156, %c0_157] : memref<6x512x128xbf16, #tpu.memory_space<vmem>>, vector<1x512x128xbf16>
    %379 = vector.shape_cast %378 : vector<1x512x128xbf16> to vector<512x128xbf16>
    %cst_158 = arith.constant dense<0.000000e+00> : vector<8x128xf32>
    %380 = tpu.matmul %377, %379, %cst_158 {dimension_numbers = #tpu.dot_dimension_numbers<[1], [0], [0], [1], [0, 0, 1, 1], [], []>} : vector<8x512xf32>, vector<512x128xbf16>, vector<8x128xf32> -> vector<8x128xf32>
    %381 = vector.broadcast %332 : vector<1x128xf32> to vector<8x128xf32>
    %382 = arith.addf %380, %381 : vector<8x128xf32>
    %383 = arith.addf %362, %382 : vector<8x128xf32>
    %cst_159 = arith.constant dense<0.000000e+00> : vector<8xf32>
    %384 = vector.multi_reduction <add>, %383, %cst_159 [1] : vector<8x128xf32> to vector<8xf32>
    %385 = vector.shape_cast %384 : vector<8xf32> to vector<8x1xf32>
    %cst_160 = arith.constant 1.280000e+02 : f32
    %386 = vector.broadcast %cst_160 : f32 to vector<8x1xf32>
    %387 = arith.divf %385, %386 : vector<8x1xf32>
    %388 = vector.broadcast %387 : vector<8x1xf32> to vector<8x128xf32>
    %389 = arith.subf %383, %388 : vector<8x128xf32>
    %390 = arith.mulf %389, %389 : vector<8x128xf32>
    %cst_161 = arith.constant dense<0.000000e+00> : vector<8xf32>
    %391 = vector.multi_reduction <add>, %390, %cst_161 [1] : vector<8x128xf32> to vector<8xf32>
    %392 = vector.shape_cast %391 : vector<8xf32> to vector<8x1xf32>
    %cst_162 = arith.constant 1.280000e+02 : f32
    %393 = vector.broadcast %cst_162 : f32 to vector<8x1xf32>
    %394 = arith.divf %392, %393 : vector<8x1xf32>
    %cst_163 = arith.constant 9.99999974E-6 : f32
    %395 = vector.broadcast %cst_163 : f32 to vector<8x1xf32>
    %396 = arith.addf %394, %395 : vector<8x1xf32>
    %397 = math.rsqrt %396 : vector<8x1xf32>
    %398 = vector.broadcast %397 : vector<8x1xf32> to vector<8x128xf32>
    %399 = arith.mulf %389, %398 : vector<8x128xf32>
    %400 = vector.broadcast %335 : vector<1x128xf32> to vector<8x128xf32>
    %401 = arith.mulf %399, %400 : vector<8x128xf32>
    %402 = vector.broadcast %336 : vector<1x128xf32> to vector<8x128xf32>
    %403 = arith.addf %401, %402 : vector<8x128xf32>
    %c5 = arith.constant 5 : index
    %c0_164 = arith.constant 0 : index
    %c0_165 = arith.constant 0 : index
    %404 = vector.load %arg9[%c5, %c0_164, %c0_165] : memref<6x6x128xf32, #tpu.memory_space<vmem>>, vector<1x6x128xf32>
    %405 = vector.shape_cast %404 : vector<1x6x128xf32> to vector<6x128xf32>
    %406 = vector.extract_strided_slice %405 {offsets = [0, 0], sizes = [1, 128], strides = [1, 1]} : vector<6x128xf32> to vector<1x128xf32>
    %407 = vector.extract_strided_slice %405 {offsets = [1, 0], sizes = [1, 128], strides = [1, 1]} : vector<6x128xf32> to vector<1x128xf32>
    %408 = vector.extract_strided_slice %405 {offsets = [2, 0], sizes = [1, 128], strides = [1, 1]} : vector<6x128xf32> to vector<1x128xf32>
    %409 = vector.extract_strided_slice %405 {offsets = [3, 0], sizes = [1, 128], strides = [1, 1]} : vector<6x128xf32> to vector<1x128xf32>
    %410 = vector.extract_strided_slice %405 {offsets = [4, 0], sizes = [1, 128], strides = [1, 1]} : vector<6x128xf32> to vector<1x128xf32>
    %411 = vector.extract_strided_slice %405 {offsets = [5, 0], sizes = [1, 128], strides = [1, 1]} : vector<6x128xf32> to vector<1x128xf32>
    %c5_166 = arith.constant 5 : index
    %c0_167 = arith.constant 0 : index
    %c0_168 = arith.constant 0 : index
    %412 = vector.load %arg5[%c5_166, %c0_167, %c0_168] : memref<6x128x128xbf16, #tpu.memory_space<vmem>>, vector<1x128x128xbf16>
    %413 = vector.shape_cast %412 : vector<1x128x128xbf16> to vector<128x128xbf16>
    %cst_169 = arith.constant dense<0.000000e+00> : vector<8x128xf32>
    %414 = tpu.matmul %403, %413, %cst_169 {dimension_numbers = #tpu.dot_dimension_numbers<[1], [0], [0], [1], [0, 0, 1, 1], [], []>} : vector<8x128xf32>, vector<128x128xbf16>, vector<8x128xf32> -> vector<8x128xf32>
    %415 = vector.broadcast %406 : vector<1x128xf32> to vector<8x128xf32>
    %416 = arith.addf %414, %415 : vector<8x128xf32>
    %417 = arith.addf %403, %416 : vector<8x128xf32>
    %cst_170 = arith.constant dense<0.000000e+00> : vector<8xf32>
    %418 = vector.multi_reduction <add>, %417, %cst_170 [1] : vector<8x128xf32> to vector<8xf32>
    %419 = vector.shape_cast %418 : vector<8xf32> to vector<8x1xf32>
    %cst_171 = arith.constant 1.280000e+02 : f32
    %420 = vector.broadcast %cst_171 : f32 to vector<8x1xf32>
    %421 = arith.divf %419, %420 : vector<8x1xf32>
    %422 = vector.broadcast %421 : vector<8x1xf32> to vector<8x128xf32>
    %423 = arith.subf %417, %422 : vector<8x128xf32>
    %424 = arith.mulf %423, %423 : vector<8x128xf32>
    %cst_172 = arith.constant dense<0.000000e+00> : vector<8xf32>
    %425 = vector.multi_reduction <add>, %424, %cst_172 [1] : vector<8x128xf32> to vector<8xf32>
    %426 = vector.shape_cast %425 : vector<8xf32> to vector<8x1xf32>
    %cst_173 = arith.constant 1.280000e+02 : f32
    %427 = vector.broadcast %cst_173 : f32 to vector<8x1xf32>
    %428 = arith.divf %426, %427 : vector<8x1xf32>
    %cst_174 = arith.constant 9.99999974E-6 : f32
    %429 = vector.broadcast %cst_174 : f32 to vector<8x1xf32>
    %430 = arith.addf %428, %429 : vector<8x1xf32>
    %431 = math.rsqrt %430 : vector<8x1xf32>
    %432 = vector.broadcast %431 : vector<8x1xf32> to vector<8x128xf32>
    %433 = arith.mulf %423, %432 : vector<8x128xf32>
    %434 = vector.broadcast %408 : vector<1x128xf32> to vector<8x128xf32>
    %435 = arith.mulf %433, %434 : vector<8x128xf32>
    %436 = vector.broadcast %409 : vector<1x128xf32> to vector<8x128xf32>
    %437 = arith.addf %435, %436 : vector<8x128xf32>
    %c5_175 = arith.constant 5 : index
    %c0_176 = arith.constant 0 : index
    %c0_177 = arith.constant 0 : index
    %438 = vector.load %arg6[%c5_175, %c0_176, %c0_177] : memref<6x128x512xbf16, #tpu.memory_space<vmem>>, vector<1x128x512xbf16>
    %439 = vector.shape_cast %438 : vector<1x128x512xbf16> to vector<128x512xbf16>
    %cst_178 = arith.constant dense<0.000000e+00> : vector<8x512xf32>
    %440 = tpu.matmul %437, %439, %cst_178 {dimension_numbers = #tpu.dot_dimension_numbers<[1], [0], [0], [1], [0, 0, 1, 1], [], []>} : vector<8x128xf32>, vector<128x512xbf16>, vector<8x512xf32> -> vector<8x512xf32>
    %c5_179 = arith.constant 5 : index
    %c0_180 = arith.constant 0 : index
    %c0_181 = arith.constant 0 : index
    %441 = vector.load %arg7[%c5_179, %c0_180, %c0_181] : memref<6x1x512xf32, #tpu.memory_space<vmem>>, vector<1x1x512xf32>
    %442 = vector.shape_cast %441 : vector<1x1x512xf32> to vector<1x512xf32>
    %443 = vector.broadcast %442 : vector<1x512xf32> to vector<8x512xf32>
    %444 = arith.addf %440, %443 : vector<8x512xf32>
    %cst_182 = arith.constant 5.000000e-01 : f32
    %445 = vector.broadcast %cst_182 : f32 to vector<8x512xf32>
    %446 = arith.mulf %445, %444 : vector<8x512xf32>
    %cst_183 = arith.constant 0.707106769 : f32
    %447 = vector.broadcast %cst_183 : f32 to vector<8x512xf32>
    %448 = arith.mulf %444, %447 : vector<8x512xf32>
    %449 = math.erf %448 : vector<8x512xf32>
    %cst_184 = arith.constant 1.000000e+00 : f32
    %450 = vector.broadcast %cst_184 : f32 to vector<8x512xf32>
    %451 = arith.addf %450, %449 : vector<8x512xf32>
    %452 = arith.mulf %446, %451 : vector<8x512xf32>
    %c5_185 = arith.constant 5 : index
    %c0_186 = arith.constant 0 : index
    %c0_187 = arith.constant 0 : index
    %453 = vector.load %arg8[%c5_185, %c0_186, %c0_187] : memref<6x512x128xbf16, #tpu.memory_space<vmem>>, vector<1x512x128xbf16>
    %454 = vector.shape_cast %453 : vector<1x512x128xbf16> to vector<512x128xbf16>
    %cst_188 = arith.constant dense<0.000000e+00> : vector<8x128xf32>
    %455 = tpu.matmul %452, %454, %cst_188 {dimension_numbers = #tpu.dot_dimension_numbers<[1], [0], [0], [1], [0, 0, 1, 1], [], []>} : vector<8x512xf32>, vector<512x128xbf16>, vector<8x128xf32> -> vector<8x128xf32>
    %456 = vector.broadcast %407 : vector<1x128xf32> to vector<8x128xf32>
    %457 = arith.addf %455, %456 : vector<8x128xf32>
    %458 = arith.addf %437, %457 : vector<8x128xf32>
    %cst_189 = arith.constant dense<0.000000e+00> : vector<8xf32>
    %459 = vector.multi_reduction <add>, %458, %cst_189 [1] : vector<8x128xf32> to vector<8xf32>
    %460 = vector.shape_cast %459 : vector<8xf32> to vector<8x1xf32>
    %cst_190 = arith.constant 1.280000e+02 : f32
    %461 = vector.broadcast %cst_190 : f32 to vector<8x1xf32>
    %462 = arith.divf %460, %461 : vector<8x1xf32>
    %463 = vector.broadcast %462 : vector<8x1xf32> to vector<8x128xf32>
    %464 = arith.subf %458, %463 : vector<8x128xf32>
    %465 = arith.mulf %464, %464 : vector<8x128xf32>
    %cst_191 = arith.constant dense<0.000000e+00> : vector<8xf32>
    %466 = vector.multi_reduction <add>, %465, %cst_191 [1] : vector<8x128xf32> to vector<8xf32>
    %467 = vector.shape_cast %466 : vector<8xf32> to vector<8x1xf32>
    %cst_192 = arith.constant 1.280000e+02 : f32
    %468 = vector.broadcast %cst_192 : f32 to vector<8x1xf32>
    %469 = arith.divf %467, %468 : vector<8x1xf32>
    %cst_193 = arith.constant 9.99999974E-6 : f32
    %470 = vector.broadcast %cst_193 : f32 to vector<8x1xf32>
    %471 = arith.addf %469, %470 : vector<8x1xf32>
    %472 = math.rsqrt %471 : vector<8x1xf32>
    %473 = vector.broadcast %472 : vector<8x1xf32> to vector<8x128xf32>
    %474 = arith.mulf %464, %473 : vector<8x128xf32>
    %475 = vector.broadcast %410 : vector<1x128xf32> to vector<8x128xf32>
    %476 = arith.mulf %474, %475 : vector<8x128xf32>
    %477 = vector.broadcast %411 : vector<1x128xf32> to vector<8x128xf32>
    %478 = arith.addf %476, %477 : vector<8x128xf32>
    %c0_194 = arith.constant 0 : index
    %c0_195 = arith.constant 0 : index
    %479 = vector.load %arg10[%c0_194, %c0_195] : memref<128x16xbf16, #tpu.memory_space<vmem>>, vector<128x16xbf16>
    %cst_196 = arith.constant dense<0.000000e+00> : vector<8x16xf32>
    %480 = tpu.matmul %478, %479, %cst_196 {dimension_numbers = #tpu.dot_dimension_numbers<[1], [0], [0], [1], [0, 0, 1, 1], [], []>} : vector<8x128xf32>, vector<128x16xbf16>, vector<8x16xf32> -> vector<8x16xf32>
    %c0_197 = arith.constant 0 : index
    %c0_198 = arith.constant 0 : index
    %481 = vector.load %arg11[%c0_197, %c0_198] : memref<1x16xf32, #tpu.memory_space<vmem>>, vector<1x16xf32>
    %482 = vector.broadcast %481 : vector<1x16xf32> to vector<8x16xf32>
    %483 = arith.addf %480, %482 : vector<8x16xf32>
    %c0_199 = arith.constant 0 : index
    %c0_200 = arith.constant 0 : index
    %484 = vector.load %arg12[%c0_199, %c0_200] : memref<8x16xf32, #tpu.memory_space<vmem>>, vector<8x16xf32>
    tpu.vector_store %arg12[%c0_199, %c0_200], %483 {strides = array<i32>} : memref<8x16xf32, #tpu.memory_space<vmem>>, vector<8x16xf32>,
    return
  }
}

</mosaic_0001>

<llo_original>
// kernel: tpu_custom_call.1
$region0: #{tpu_custom_call.1}
  #allocation0 [shape = 'u32[]', space=smem, size = 0x4, offset = 0x4, fixed_abs, tag = 'smem constant byte address 0x4 - core index']
  #allocation1 [shape = 'u32[144,128]{1,0:T(1,128)}', space=vmem, size = 0x12000, scoped, tag = 'internal scratch']
  %s0 = inlined_call_operand.hbm [shape: f32[8,16], index: 0, kind: input, shape index: {}]
  %s1 = inlined_call_operand.vmem [shape: f32[8,1], index: 1, kind: input, shape index: {}]
  %s2 = inlined_call_operand.hbm [shape: f32[4,128], index: 2, kind: input, shape index: {}]
  %s3 = inlined_call_operand.hbm [shape: bf16[16,128], index: 3, kind: input, shape index: {}]
  %s4 = inlined_call_operand.vmem [shape: bf16[128,128], index: 4, kind: input, shape index: {}]
  %s5 = inlined_call_operand.hbm [shape: bf16[6,128,128], index: 5, kind: input, shape index: {}]
  %s6 = inlined_call_operand.hbm [shape: bf16[6,128,512], index: 6, kind: input, shape index: {}]
  %s7 = inlined_call_operand.hbm [shape: f32[6,1,512], index: 7, kind: input, shape index: {}]
  %s8 = inlined_call_operand.hbm [shape: bf16[6,512,128], index: 8, kind: input, shape index: {}]
  %s9 = inlined_call_operand.vmem [shape: f32[6,6,128], index: 9, kind: input, shape index: {}]
  %s10 = inlined_call_operand.vmem [shape: bf16[128,16], index: 10, kind: input, shape index: {}]
  %s11 = inlined_call_operand.vmem [shape: f32[1,16], index: 11, kind: input, shape index: {}]
  %s12 = inlined_call_operand.hbm [shape: f32[8,16], index: 12, kind: output, shape index: {}]
  %s13 = sld [smem:[#allocation0]]
  $region86: #{tpu_custom_call.1} parent=0
    _
  %s15 = ssub.s32 1, %s13
  %s16 = scalar_select 0, %s15, %s13
  $region1: #{tpu_custom_call.1} parent=0
    #allocation2 [shape = 'u8[4096]{0}', space=vmem, size = 0x1000, scoped, tag = 'input window, operand 0, single buffered']
    #allocation3 [shape = 's32[1]{0}', space=sflag, size = 0x4, scoped, tag = 'scoped memory for tpu_custom_call.1']
    #allocation4 [shape = 's32[1]{0}', space=sflag, size = 0x4, scoped, tag = 'scoped memory for tpu_custom_call.1']
    #allocation5 [shape = 'u8[2048]{0}', space=vmem, size = 0x800, scoped, tag = 'input window, operand 2, single buffered']
    #allocation6 [shape = 's32[1]{0}', space=sflag, size = 0x4, scoped, tag = 'scoped memory for tpu_custom_call.1']
    #allocation7 [shape = 'u8[4096]{0}', space=vmem, size = 0x1000, scoped, tag = 'input window, operand 3, single buffered']
    #allocation8 [shape = 'u8[196608]{0}', space=vmem, size = 0x30000, scoped, tag = 'input window, operand 5, single buffered']
    #allocation9 [shape = 's32[1]{0}', space=sflag, size = 0x4, scoped, tag = 'scoped memory for tpu_custom_call.1']
    #allocation10 [shape = 'u8[786432]{0}', space=vmem, size = 0xc0000, scoped, tag = 'input window, operand 6, single buffered']
    #allocation11 [shape = 'u8[12288]{0}', space=vmem, size = 0x3000, scoped, tag = 'input window, operand 7, single buffered']
    #allocation12 [shape = 's32[1]{0}', space=sflag, size = 0x4, scoped, tag = 'scoped memory for tpu_custom_call.1']
    #allocation13 [shape = 'u8[786432]{0}', space=vmem, size = 0xc0000, scoped, tag = 'input window, operand 8, single buffered']
    #allocation14 [shape = 'u8[4096]{0}', space=vmem, size = 0x1000, scoped, tag = 'output window, operand 0, single buffered']
    %17 = vsyncpa [#allocation3], 0
    %18 = vsyncpa [#allocation6], 0
    %19 = vsyncpa [#allocation9], 0
    %20 = vsyncpa [#allocation12], 0
    %21 = vsyncpa [#allocation4], 0
    // Predicated region
    $region2: #{tpu_custom_call.1} parent=1 // pred_check
      _
    $region3: #{tpu_custom_call.1} parent=1 // pred_check_branch
      %23 = sbr.rel (0) target = $region5
    $region4: #{tpu_custom_call.1} parent=1 // pred_region
      %s25 = ssub.s32 128, 128
      %26 = vsyncadd [#allocation3], %s25
      %s28 = sshll.u32 [#allocation2], 4
      %s29 = int_to_ptr.vmem [resolvable:$true] %s28
      %31 = dma.hbm_to_vmem [thread:$0]  %s0, 128, %s29, [#allocation3]
    $region5: #{tpu_custom_call.1} parent=1 // pred_fallthru
      _
    // Predicated region
    $region6: #{tpu_custom_call.1} parent=1 // pred_check
      _
    $region7: #{tpu_custom_call.1} parent=1 // pred_check_branch
      %33 = sbr.rel (0) target = $region9
    $region8: #{tpu_custom_call.1} parent=1 // pred_region
      _
    $region9: #{tpu_custom_call.1} parent=1 // pred_fallthru
      _
    // Predicated region
    $region10: #{tpu_custom_call.1} parent=1 // pred_check
      _
    $region11: #{tpu_custom_call.1} parent=1 // pred_check_branch
      %35 = sbr.rel (0) target = $region13
    $region12: #{tpu_custom_call.1} parent=1 // pred_region
      %s37 = ssub.s32 64, 64
      %38 = vsyncadd [#allocation6], %s37
      %s40 = sshll.u32 [#allocation5], 4
      %s41 = int_to_ptr.vmem [resolvable:$true] %s40
      %43 = dma.hbm_to_vmem [thread:$0]  %s2, 64, %s41, [#allocation6]
    $region13: #{tpu_custom_call.1} parent=1 // pred_fallthru
      _
    // Predicated region
    $region14: #{tpu_custom_call.1} parent=1 // pred_check
      _
    $region15: #{tpu_custom_call.1} parent=1 // pred_check_branch
      %45 = sbr.rel (0) target = $region17
    $region16: #{tpu_custom_call.1} parent=1 // pred_region
      %s47 = ssub.s32 128, 128
      %48 = vsyncadd [#allocation6], %s47
      %s49 = sshll.u32 [#allocation7], 4
      %s50 = int_to_ptr.vmem [resolvable:$true] %s49
      %55 = dma.hbm_to_vmem [thread:$0]  %s3, 128, %s50, [#allocation6], 64, 64, 4
    $region17: #{tpu_custom_call.1} parent=1 // pred_fallthru
      _
    // Predicated region
    $region18: #{tpu_custom_call.1} parent=1 // pred_check
      _
    $region19: #{tpu_custom_call.1} parent=1 // pred_check_branch
      %57 = sbr.rel (0) target = $region21
    $region20: #{tpu_custom_call.1} parent=1 // pred_region
      _
    $region21: #{tpu_custom_call.1} parent=1 // pred_fallthru
      _
    // Predicated region
    $region22: #{tpu_custom_call.1} parent=1 // pred_check
      _
    $region23: #{tpu_custom_call.1} parent=1 // pred_check_branch
      %59 = sbr.rel (0) target = $region25
    $region24: #{tpu_custom_call.1} parent=1 // pred_region
      %s61 = ssub.s32 6144, 6144
      %62 = vsyncadd [#allocation9], %s61
      %s63 = sshll.u32 [#allocation8], 4
      %s64 = int_to_ptr.vmem [resolvable:$true] %s63
      %69 = dma.hbm_to_vmem [thread:$0]  %s5, 6144, %s64, [#allocation9], 64, 64, 4
    $region25: #{tpu_custom_call.1} parent=1 // pred_fallthru
      _
    // Predicated region
    $region26: #{tpu_custom_call.1} parent=1 // pred_check
      _
    $region27: #{tpu_custom_call.1} parent=1 // pred_check_branch
      %71 = sbr.rel (0) target = $region29
    $region28: #{tpu_custom_call.1} parent=1 // pred_region
      %s73 = ssub.s32 24576, 24576
      %74 = vsyncadd [#allocation9], %s73
      %s75 = sshll.u32 [#allocation10], 4
      %s76 = int_to_ptr.vmem [resolvable:$true] %s75
      %81 = dma.hbm_to_vmem [thread:$0]  %s6, 24576, %s76, [#allocation9], 256, 256, 16
    $region29: #{tpu_custom_call.1} parent=1 // pred_fallthru
      _
    // Predicated region
    $region30: #{tpu_custom_call.1} parent=1 // pred_check
      _
    $region31: #{tpu_custom_call.1} parent=1 // pred_check_branch
      %83 = sbr.rel (0) target = $region33
    $region32: #{tpu_custom_call.1} parent=1 // pred_region
      %s85 = ssub.s32 384, 384
      %86 = vsyncadd [#allocation12], %s85
      %s87 = sshll.u32 [#allocation11], 4
      %s88 = int_to_ptr.vmem [resolvable:$true] %s87
      %93 = dma.hbm_to_vmem [thread:$0]  %s7, 384, %s88, [#allocation12], 64, 64, 4
    $region33: #{tpu_custom_call.1} parent=1 // pred_fallthru
      _
    // Predicated region
    $region34: #{tpu_custom_call.1} parent=1 // pred_check
      _
    $region35: #{tpu_custom_call.1} parent=1 // pred_check_branch
      %95 = sbr.rel (0) target = $region37
    $region36: #{tpu_custom_call.1} parent=1 // pred_region
      %s97 = ssub.s32 24576, 24576
      %98 = vsyncadd [#allocation12], %s97
      %s99 = sshll.u32 [#allocation13], 4
      %s100 = int_to_ptr.vmem [resolvable:$true] %s99
      %105 = dma.hbm_to_vmem [thread:$0]  %s8, 24576, %s100, [#allocation12], 64, 64, 4
    $region37: #{tpu_custom_call.1} parent=1 // pred_fallthru
      _
    // Predicated region
    $region38: #{tpu_custom_call.1} parent=1 // pred_check
      _
    $region39: #{tpu_custom_call.1} parent=1 // pred_check_branch
      %107 = sbr.rel (0) target = $region41
    $region40: #{tpu_custom_call.1} parent=1 // pred_region
      _
    $region41: #{tpu_custom_call.1} parent=1 // pred_fallthru
      _
    // Predicated region
    $region42: #{tpu_custom_call.1} parent=1 // pred_check
      _
    $region43: #{tpu_custom_call.1} parent=1 // pred_check_branch
      %109 = sbr.rel (0) target = $region45
    $region44: #{tpu_custom_call.1} parent=1 // pred_region
      _
    $region45: #{tpu_custom_call.1} parent=1 // pred_fallthru
      _
    // Predicated region
    $region46: #{tpu_custom_call.1} parent=1 // pred_check
      _
    $region47: #{tpu_custom_call.1} parent=1 // pred_check_branch
      %111 = sbr.rel (0) target = $region49
    $region48: #{tpu_custom_call.1} parent=1 // pred_region
      _
    $region49: #{tpu_custom_call.1} parent=1 // pred_fallthru
      _
    // Predicated region
    $region50: #{tpu_custom_call.1} parent=1 // pred_check
      _
    $region51: #{tpu_custom_call.1} parent=1 // pred_check_branch
      %113 = sbr.rel (0) target = $region53
    $region52: #{tpu_custom_call.1} parent=1 // pred_region
      %114 = dma.done [#allocation3], 128
    $region53: #{tpu_custom_call.1} parent=1 // pred_fallthru
      _
    // Predicated region
    $region54: #{tpu_custom_call.1} parent=1 // pred_check
      _
    $region55: #{tpu_custom_call.1} parent=1 // pred_check_branch
      %116 = sbr.rel (0) target = $region57
    $region56: #{tpu_custom_call.1} parent=1 // pred_region
      %117 = dma.done [#allocation6], 64
    $region57: #{tpu_custom_call.1} parent=1 // pred_fallthru
      _
    // Predicated region
    $region58: #{tpu_custom_call.1} parent=1 // pred_check
      _
    $region59: #{tpu_custom_call.1} parent=1 // pred_check_branch
      %119 = sbr.rel (0) target = $region61
    $region60: #{tpu_custom_call.1} parent=1 // pred_region
      %120 = dma.done [#allocation6], 128
    $region61: #{tpu_custom_call.1} parent=1 // pred_fallthru
      _
    // Predicated region
    $region62: #{tpu_custom_call.1} parent=1 // pred_check
      _
    $region63: #{tpu_custom_call.1} parent=1 // pred_check_branch
      %122 = sbr.rel (0) target = $region65
    $region64: #{tpu_custom_call.1} parent=1 // pred_region
      %123 = dma.done [#allocation9], 6144
    $region65: #{tpu_custom_call.1} parent=1 // pred_fallthru
      _
    // Predicated region
    $region66: #{tpu_custom_call.1} parent=1 // pred_check
      _
    $region67: #{tpu_custom_call.1} parent=1 // pred_check_branch
      %125 = sbr.rel (0) target = $region69
    $region68: #{tpu_custom_call.1} parent=1 // pred_region
      %126 = dma.done [#allocation9], 24576
    $region69: #{tpu_custom_call.1} parent=1 // pred_fallthru
      _
    // Predicated region
    $region70: #{tpu_custom_call.1} parent=1 // pred_check
      _
    $region71: #{tpu_custom_call.1} parent=1 // pred_check_branch
      %128 = sbr.rel (0) target = $region73
    $region72: #{tpu_custom_call.1} parent=1 // pred_region
      %129 = dma.done [#allocation12], 384
    $region73: #{tpu_custom_call.1} parent=1 // pred_fallthru
      _
    // Predicated region
    $region74: #{tpu_custom_call.1} parent=1 // pred_check
      _
    $region75: #{tpu_custom_call.1} parent=1 // pred_check_branch
      %131 = sbr.rel (0) target = $region77
    $region76: #{tpu_custom_call.1} parent=1 // pred_region
      %132 = dma.done [#allocation12], 24576
    $region77: #{tpu_custom_call.1} parent=1 // pred_fallthru
      _
    %v134 = vld [vmem:[#allocation5] sm:$0xf]
    %v135 = vld [vmem:[#allocation2] sm:$0xff]
    %v136 = vld [vmem:[#allocation7] sm:$0xf]
    %v137 = vld [vmem:[#allocation7 + $0x4] sm:$0xf]
    %v138 = vlaneseq
    %v139 = vshrl.u32 %v138, 7
    %v140 = vsub.s32 0, %v139
    %v141 = vrot.slane %v134, %v140
    %v144 = vunpack.c.l.b16 %v136
    %v145 = vunpack.c.l.b16 %v137
    %v146 = vpack.c.b16 %v145, %v144
    %vm148 = vcmask 130048
    %v150 = vsel %vm148, %v135, 0
    %152 = vmatprep.subr.bf16.mxu0 0
    %153 = vmatpush1.bf16.msra.mxu0 %v146
    %154 = vmatprep.subr.bf16.mxu0 0
    %155 = vmatpush1.bf16.msra.mxu0 0
    %156 = vmatprep.subr.bf16.mxu0 0
    %157 = vmatpush1.bf16.msra.mxu0 0
    %158 = vmatprep.subr.bf16.mxu0 0
    %159 = vmatpush1.bf16.msra.mxu0 0
    %160 = vmatprep.subr.bf16.mxu0 0
    %161 = vmatpush1.bf16.msra.mxu0 0
    %162 = vmatprep.subr.bf16.mxu0 0
    %163 = vmatpush1.bf16.msra.mxu0 0
    %164 = vmatprep.subr.bf16.mxu0 0
    %165 = vmatpush1.bf16.msra.mxu0 0
    %166 = vmatprep.subr.bf16.mxu0 0
    %167 = vmatpush1.bf16.msra.mxu0 0
    %168 = vmatprep.subr.bf16.mxu0 0
    %169 = vmatpush1.bf16.msra.mxu0 0
    %170 = vmatprep.subr.bf16.mxu0 0
    %171 = vmatpush1.bf16.msra.mxu0 0
    %172 = vmatprep.subr.bf16.mxu0 0
    %173 = vmatpush1.bf16.msra.mxu0 0
    %174 = vmatprep.subr.bf16.mxu0 0
    %175 = vmatpush1.bf16.msra.mxu0 0
    %176 = vmatprep.subr.bf16.mxu0 0
    %177 = vmatpush1.bf16.msra.mxu0 0
    %178 = vmatprep.subr.bf16.mxu0 0
    %179 = vmatpush1.bf16.msra.mxu0 0
    %180 = vmatprep.subr.bf16.mxu0 0
    %181 = vmatpush1.bf16.msra.mxu0 0
    %182 = vmatprep.subr.bf16.mxu0 0
    %183 = vmatpush1.bf16.msra.mxu0 0
    %184 = vmatprep.mubr.f32.mxu0 0.0
    %185 = vmatmul.mubr.f32.gmra.mrb[0].mxu0 %v150
    %v186 = vpop.f32.mrb[0].mxu0
    %v187 = vadd.f32 %v141, %v186
    %v188 = vpop.f32.mrb[0].mxu0
    %189 = vdwg.mxu0
    %v190 = vld [vmem:[%s1] sm:$0xff]
    %192 = vset.pattern.permute.xlu0 0
    %193 = vperm.xlu0 %192, %v190
    %v194 = vpop.permute.xlu0 %193
    %v196 = vlaneseq
    %v197 = vshrl.u32 %v196, 7
    %v198 = vsub.s32 1, %v197
    %v199 = vrot.slane %v134, %v198
    %v200 = vmul.f32 %v194, %v199
    %v201 = vlaneseq
    %v202 = vshrl.u32 %v201, 7
    %v203 = vsub.s32 2, %v202
    %v204 = vrot.slane %v134, %v203
    %v205 = vadd.f32 %v200, %v204
    %v206 = vmul.f32 %v205, 0.5
    %v207 = vmul.f32 %v205, 0.70710677
    %v208 = verf.f32.pop %v207
    %v209 = vadd.f32 %v208, 1.0
    %v210 = vmul.f32 %v206, %v209
    %v211 = vld [vmem:[%s4] sm:$0xf]
    %v212 = vld [vmem:[%s4 + $0x4] sm:$0xf]
    %v213 = vld [vmem:[%s4 + $0x8] sm:$0xf]
    %v214 = vld [vmem:[%s4 + $0xc] sm:$0xf]
    %v215 = vld [vmem:[%s4 + $0x10] sm:$0xf]
    %v216 = vld [vmem:[%s4 + $0x14] sm:$0xf]
    %v217 = vld [vmem:[%s4 + $0x18] sm:$0xf]
    %v218 = vld [vmem:[%s4 + $0x1c] sm:$0xf]
    %v219 = vld [vmem:[%s4 + $0x20] sm:$0xf]
    %v220 = vld [vmem:[%s4 + $0x24] sm:$0xf]
    %v221 = vld [vmem:[%s4 + $0x28] sm:$0xf]
    %v222 = vld [vmem:[%s4 + $0x2c] sm:$0xf]
    %v223 = vld [vmem:[%s4 + $0x30] sm:$0xf]
    %v224 = vld [vmem:[%s4 + $0x34] sm:$0xf]
    %v225 = vld [vmem:[%s4 + $0x38] sm:$0xf]
    %v226 = vld [vmem:[%s4 + $0x3c] sm:$0xf]
    %v227 = vlaneseq
    %v228 = vshrl.u32 %v227, 7
    %v229 = vsub.s32 3, %v228
    %v230 = vrot.slane %v134, %v229
    %v247 = vunpack.c.l.b16 %v211
    %v248 = vunpack.c.l.b16 %v212
    %v249 = vunpack.c.l.b16 %v213
    %v250 = vunpack.c.l.b16 %v214
    %v251 = vunpack.c.l.b16 %v215
    %v252 = vunpack.c.l.b16 %v216
    %v253 = vunpack.c.l.b16 %v217
    %v254 = vunpack.c.l.b16 %v218
    %v255 = vunpack.c.l.b16 %v219
    %v256 = vunpack.c.l.b16 %v220
    %v257 = vunpack.c.l.b16 %v221
    %v258 = vunpack.c.l.b16 %v222
    %v259 = vunpack.c.l.b16 %v223
    %v260 = vunpack.c.l.b16 %v224
    %v261 = vunpack.c.l.b16 %v225
    %v262 = vunpack.c.l.b16 %v226
    %v263 = vpack.c.b16 %v248, %v247
    %v264 = vpack.c.b16 %v250, %v249
    %v265 = vpack.c.b16 %v252, %v251
    %v266 = vpack.c.b16 %v254, %v253
    %v267 = vpack.c.b16 %v256, %v255
    %v268 = vpack.c.b16 %v258, %v257
    %v269 = vpack.c.b16 %v260, %v259
    %v270 = vpack.c.b16 %v262, %v261
    %279 = vmatprep.subr.bf16.mxu0 0
    %280 = vmatpush1.bf16.msra.mxu0 %v263
    %281 = vmatprep.subr.bf16.mxu0 0
    %282 = vmatpush1.bf16.msra.mxu0 %v264
    %283 = vmatprep.subr.bf16.mxu0 0
    %284 = vmatpush1.bf16.msra.mxu0 %v265
    %285 = vmatprep.subr.bf16.mxu0 0
    %286 = vmatpush1.bf16.msra.mxu0 %v266
    %287 = vmatprep.subr.bf16.mxu0 0
    %288 = vmatpush1.bf16.msra.mxu0 %v267
    %289 = vmatprep.subr.bf16.mxu0 0
    %290 = vmatpush1.bf16.msra.mxu0 %v268
    %291 = vmatprep.subr.bf16.mxu0 0
    %292 = vmatpush1.bf16.msra.mxu0 %v269
    %293 = vmatprep.subr.bf16.mxu0 0
    %294 = vmatpush1.bf16.msra.mxu0 %v270
    %295 = vmatprep.subr.bf16.mxu0 0
    %296 = vmatpush1.bf16.msra.mxu0 0
    %297 = vmatprep.subr.bf16.mxu0 0
    %298 = vmatpush1.bf16.msra.mxu0 0
    %299 = vmatprep.subr.bf16.mxu0 0
    %300 = vmatpush1.bf16.msra.mxu0 0
    %301 = vmatprep.subr.bf16.mxu0 0
    %302 = vmatpush1.bf16.msra.mxu0 0
    %303 = vmatprep.subr.bf16.mxu0 0
    %304 = vmatpush1.bf16.msra.mxu0 0
    %305 = vmatprep.subr.bf16.mxu0 0
    %306 = vmatpush1.bf16.msra.mxu0 0
    %307 = vmatprep.subr.bf16.mxu0 0
    %308 = vmatpush1.bf16.msra.mxu0 0
    %309 = vmatprep.subr.bf16.mxu0 0
    %310 = vmatpush1.bf16.msra.mxu0 0
    %311 = vmatprep.mubr.f32.mxu0 0.0
    %312 = vmatmul.mubr.f32.gmra.mrb[0].mxu0 %v210
    %v313 = vpop.f32.mrb[0].mxu0
    %v314 = vadd.f32 %v230, %v313
    %v315 = vpop.f32.mrb[0].mxu0
    %316 = vdwg.mxu0
    %v317 = vadd.f32 %v187, %v314
    %v318 = vld [vmem:[%s9] sm:$0x3f]
    %v319 = vld [vmem:[#allocation8] sm:$0xf]
    %v320 = vld [vmem:[#allocation8 + $0x4] sm:$0xf]
    %v321 = vld [vmem:[#allocation8 + $0x8] sm:$0xf]
    %v322 = vld [vmem:[#allocation8 + $0xc] sm:$0xf]
    %v323 = vld [vmem:[#allocation8 + $0x10] sm:$0xf]
    %v324 = vld [vmem:[#allocation8 + $0x14] sm:$0xf]
    %v325 = vld [vmem:[#allocation8 + $0x18] sm:$0xf]
    %v326 = vld [vmem:[#allocation8 + $0x1c] sm:$0xf]
    %v327 = vld [vmem:[#allocation8 + $0x20] sm:$0xf]
    %v328 = vld [vmem:[#allocation8 + $0x24] sm:$0xf]
    %v329 = vld [vmem:[#allocation8 + $0x28] sm:$0xf]
    %v330 = vld [vmem:[#allocation8 + $0x2c] sm:$0xf]
    %v331 = vld [vmem:[#allocation8 + $0x30] sm:$0xf]
    %v332 = vld [vmem:[#allocation8 + $0x34] sm:$0xf]
    %v333 = vld [vmem:[#allocation8 + $0x38] sm:$0xf]
    %v334 = vld [vmem:[#allocation8 + $0x3c] sm:$0xf]
    %v335 = vlaneseq
    %v336 = vshrl.u32 %v335, 7
    %v337 = vsub.s32 0, %v336
    %v338 = vrot.slane %v318, %v337
    %v355 = vunpack.c.l.b16 %v319
    %v356 = vunpack.c.l.b16 %v320
    %v357 = vunpack.c.l.b16 %v321
    %v358 = vunpack.c.l.b16 %v322
    %v359 = vunpack.c.l.b16 %v323
    %v360 = vunpack.c.l.b16 %v324
    %v361 = vunpack.c.l.b16 %v325
    %v362 = vunpack.c.l.b16 %v326
    %v363 = vunpack.c.l.b16 %v327
    %v364 = vunpack.c.l.b16 %v328
    %v365 = vunpack.c.l.b16 %v329
    %v366 = vunpack.c.l.b16 %v330
    %v367 = vunpack.c.l.b16 %v331
    %v368 = vunpack.c.l.b16 %v332
    %v369 = vunpack.c.l.b16 %v333
    %v370 = vunpack.c.l.b16 %v334
    %v371 = vpack.c.b16 %v356, %v355
    %v372 = vpack.c.b16 %v358, %v357
    %v373 = vpack.c.b16 %v360, %v359
    %v374 = vpack.c.b16 %v362, %v361
    %v375 = vpack.c.b16 %v364, %v363
    %v376 = vpack.c.b16 %v366, %v365
    %v377 = vpack.c.b16 %v368, %v367
    %v378 = vpack.c.b16 %v370, %v369
    %387 = vmatprep.subr.bf16.mxu0 0
    %388 = vmatpush1.bf16.msra.mxu0 %v371
    %389 = vmatprep.subr.bf16.mxu0 0
    %390 = vmatpush1.bf16.msra.mxu0 %v372
    %391 = vmatprep.subr.bf16.mxu0 0
    %392 = vmatpush1.bf16.msra.mxu0 %v373
    %393 = vmatprep.subr.bf16.mxu0 0
    %394 = vmatpush1.bf16.msra.mxu0 %v374
    %395 = vmatprep.subr.bf16.mxu0 0
    %396 = vmatpush1.bf16.msra.mxu0 %v375
    %397 = vmatprep.subr.bf16.mxu0 0
    %398 = vmatpush1.bf16.msra.mxu0 %v376
    %399 = vmatprep.subr.bf16.mxu0 0
    %400 = vmatpush1.bf16.msra.mxu0 %v377
    %401 = vmatprep.subr.bf16.mxu0 0
    %402 = vmatpush1.bf16.msra.mxu0 %v378
    %403 = vmatprep.subr.bf16.mxu0 0
    %404 = vmatpush1.bf16.msra.mxu0 0
    %405 = vmatprep.subr.bf16.mxu0 0
    %406 = vmatpush1.bf16.msra.mxu0 0
    %407 = vmatprep.subr.bf16.mxu0 0
    %408 = vmatpush1.bf16.msra.mxu0 0
    %409 = vmatprep.subr.bf16.mxu0 0
    %410 = vmatpush1.bf16.msra.mxu0 0
    %411 = vmatprep.subr.bf16.mxu0 0
    %412 = vmatpush1.bf16.msra.mxu0 0
    %413 = vmatprep.subr.bf16.mxu0 0
    %414 = vmatpush1.bf16.msra.mxu0 0
    %415 = vmatprep.subr.bf16.mxu0 0
    %416 = vmatpush1.bf16.msra.mxu0 0
    %417 = vmatprep.subr.bf16.mxu0 0
    %418 = vmatpush1.bf16.msra.mxu0 0
    %419 = vmatprep.mubr.f32.mxu0 0.0
    %420 = vmatmul.mubr.f32.gmra.mrb[0].mxu0 %v317
    %v421 = vpop.f32.mrb[0].mxu0
    %v422 = vadd.f32 %v338, %v421
    %v423 = vpop.f32.mrb[0].mxu0
    %424 = vdwg.mxu0
    %v425 = vadd.f32 %v317, %v422
    %426 = vadd.xlane.f32.xlu0 %v425
    %v427 = vpop.xlane.xlu0 %426
    %v428 = vrcp.pop 128.0
    %v429 = vmul.f32 %v427, %v428
    %v430 = vsub.f32 %v425, %v429
    %v431 = vmul.f32 %v430, %v430
    %432 = vadd.xlane.f32.xlu0 %v431
    %v433 = vpop.xlane.xlu0 %432
    %v434 = vmul.f32 %v433, %v428
    %v435 = vadd.f32 %v434, 1e-05
    %v436 = vrsqrt.pop %v435
    %v437 = vmul.f32 %v430, %v436
    %v438 = vlaneseq
    %v439 = vshrl.u32 %v438, 7
    %v440 = vsub.s32 2, %v439
    %v441 = vrot.slane %v318, %v440
    %v442 = vmul.f32 %v437, %v441
    %v443 = vlaneseq
    %v444 = vshrl.u32 %v443, 7
    %v445 = vsub.s32 3, %v444
    %v446 = vrot.slane %v318, %v445
    %v447 = vadd.f32 %v442, %v446
    %v448 = vld [vmem:[#allocation10] sm:$0xff]
    %v449 = vld [vmem:[#allocation10 + $0x8] sm:$0xff]
    %v450 = vld [vmem:[#allocation10 + $0x10] sm:$0xff]
    %v451 = vld [vmem:[#allocation10 + $0x18] sm:$0xff]
    %v452 = vld [vmem:[#allocation10 + $0x20] sm:$0xff]
    %v453 = vld [vmem:[#allocation10 + $0x28] sm:$0xff]
    %v454 = vld [vmem:[#allocation10 + $0x30] sm:$0xff]
    %v455 = vld [vmem:[#allocation10 + $0x38] sm:$0xff]
    %v456 = vld [vmem:[#allocation10 + $0x40] sm:$0xff]
    %v457 = vld [vmem:[#allocation10 + $0x48] sm:$0xff]
    %v458 = vld [vmem:[#allocation10 + $0x50] sm:$0xff]
    %v459 = vld [vmem:[#allocation10 + $0x58] sm:$0xff]
    %v460 = vld [vmem:[#allocation10 + $0x60] sm:$0xff]
    %v461 = vld [vmem:[#allocation10 + $0x68] sm:$0xff]
    %v462 = vld [vmem:[#allocation10 + $0x70] sm:$0xff]
    %v463 = vld [vmem:[#allocation10 + $0x78] sm:$0xff]
    %v464 = vld [vmem:[#allocation10 + $0x80] sm:$0xff]
    %v465 = vld [vmem:[#allocation10 + $0x88] sm:$0xff]
    %v466 = vld [vmem:[#allocation10 + $0x90] sm:$0xff]
    %v467 = vld [vmem:[#allocation10 + $0x98] sm:$0xff]
    %v468 = vld [vmem:[#allocation10 + $0xa0] sm:$0xff]
    %v469 = vld [vmem:[#allocation10 + $0xa8] sm:$0xff]
    %v470 = vld [vmem:[#allocation10 + $0xb0] sm:$0xff]
    %v471 = vld [vmem:[#allocation10 + $0xb8] sm:$0xff]
    %v472 = vld [vmem:[#allocation10 + $0xc0] sm:$0xff]
    %v473 = vld [vmem:[#allocation10 + $0xc8] sm:$0xff]
    %v474 = vld [vmem:[#allocation10 + $0xd0] sm:$0xff]
    %v475 = vld [vmem:[#allocation10 + $0xd8] sm:$0xff]
    %v476 = vld [vmem:[#allocation10 + $0xe0] sm:$0xff]
    %v477 = vld [vmem:[#allocation10 + $0xe8] sm:$0xff]
    %v478 = vld [vmem:[#allocation10 + $0xf0] sm:$0xff]
    %v479 = vld [vmem:[#allocation10 + $0xf8] sm:$0xff]
    %v480 = vld [vmem:[#allocation11] sm:$0xf]
    %v482 = vlaneseq
    %v483 = vshrl.u32 %v482, 7
    %v484 = vsub.s32 0, %v483
    %v485 = vrot.slane %v480, %v484
    %v486 = vlaneseq
    %v487 = vshrl.u32 %v486, 7
    %v488 = vsub.s32 1, %v487
    %v489 = vrot.slane %v480, %v488
    %v490 = vlaneseq
    %v491 = vshrl.u32 %v490, 7
    %v492 = vsub.s32 2, %v491
    %v493 = vrot.slane %v480, %v492
    %v494 = vlaneseq
    %v495 = vshrl.u32 %v494, 7
    %v496 = vsub.s32 3, %v495
    %v497 = vrot.slane %v480, %v496
    %v534 = vunpack.c.l.b16 %v448
    %v535 = vunpack.c.h.b16 %v448
    %v536 = vunpack.c.l.b16 %v449
    %v537 = vunpack.c.h.b16 %v449
    %v538 = vunpack.c.l.b16 %v450
    %v539 = vunpack.c.h.b16 %v450
    %v540 = vunpack.c.l.b16 %v451
    %v541 = vunpack.c.h.b16 %v451
    %v542 = vunpack.c.l.b16 %v452
    %v543 = vunpack.c.h.b16 %v452
    %v544 = vunpack.c.l.b16 %v453
    %v545 = vunpack.c.h.b16 %v453
    %v546 = vunpack.c.l.b16 %v454
    %v547 = vunpack.c.h.b16 %v454
    %v548 = vunpack.c.l.b16 %v455
    %v549 = vunpack.c.h.b16 %v455
    %v550 = vunpack.c.l.b16 %v456
    %v551 = vunpack.c.h.b16 %v456
    %v552 = vunpack.c.l.b16 %v457
    %v553 = vunpack.c.h.b16 %v457
    %v554 = vunpack.c.l.b16 %v458
    %v555 = vunpack.c.h.b16 %v458
    %v556 = vunpack.c.l.b16 %v459
    %v557 = vunpack.c.h.b16 %v459
    %v558 = vunpack.c.l.b16 %v460
    %v559 = vunpack.c.h.b16 %v460
    %v560 = vunpack.c.l.b16 %v461
    %v561 = vunpack.c.h.b16 %v461
    %v562 = vunpack.c.l.b16 %v462
    %v563 = vunpack.c.h.b16 %v462
    %v564 = vunpack.c.l.b16 %v463
    %v565 = vunpack.c.h.b16 %v463
    %v566 = vunpack.c.l.b16 %v464
    %v567 = vunpack.c.h.b16 %v464
    %v568 = vunpack.c.l.b16 %v465
    %v569 = vunpack.c.h.b16 %v465
    %v570 = vunpack.c.l.b16 %v466
    %v571 = vunpack.c.h.b16 %v466
    %v572 = vunpack.c.l.b16 %v467
    %v573 = vunpack.c.h.b16 %v467
    %v574 = vunpack.c.l.b16 %v468
    %v575 = vunpack.c.h.b16 %v468
    %v576 = vunpack.c.l.b16 %v469
    %v577 = vunpack.c.h.b16 %v469
    %v578 = vunpack.c.l.b16 %v470
    %v579 = vunpack.c.h.b16 %v470
    %v580 = vunpack.c.l.b16 %v471
    %v581 = vunpack.c.h.b16 %v471
    %v582 = vunpack.c.l.b16 %v472
    %v583 = vunpack.c.h.b16 %v472
    %v584 = vunpack.c.l.b16 %v473
    %v585 = vunpack.c.h.b16 %v473
    %v586 = vunpack.c.l.b16 %v474
    %v587 = vunpack.c.h.b16 %v474
    %v588 = vunpack.c.l.b16 %v475
    %v589 = vunpack.c.h.b16 %v475
    %v590 = vunpack.c.l.b16 %v476
    %v591 = vunpack.c.h.b16 %v476
    %v592 = vunpack.c.l.b16 %v477
    %v593 = vunpack.c.h.b16 %v477
    %v594 = vunpack.c.l.b16 %v478
    %v595 = vunpack.c.h.b16 %v478
    %v596 = vunpack.c.l.b16 %v479
    %v597 = vunpack.c.h.b16 %v479
    %v598 = vpack.c.b16 %v538, %v534
    %v599 = vpack.c.b16 %v539, %v535
    %v600 = vpack.c.b16 %v540, %v536
    %v601 = vpack.c.b16 %v541, %v537
    %v602 = vpack.c.b16 %v546, %v542
    %v603 = vpack.c.b16 %v547, %v543
    %v604 = vpack.c.b16 %v548, %v544
    %v605 = vpack.c.b16 %v549, %v545
    %v606 = vpack.c.b16 %v554, %v550
    %v607 = vpack.c.b16 %v555, %v551
    %v608 = vpack.c.b16 %v556, %v552
    %v609 = vpack.c.b16 %v557, %v553
    %v610 = vpack.c.b16 %v562, %v558
    %v611 = vpack.c.b16 %v563, %v559
    %v612 = vpack.c.b16 %v564, %v560
    %v613 = vpack.c.b16 %v565, %v561
    %v614 = vpack.c.b16 %v570, %v566
    %v615 = vpack.c.b16 %v571, %v567
    %v616 = vpack.c.b16 %v572, %v568
    %v617 = vpack.c.b16 %v573, %v569
    %v618 = vpack.c.b16 %v578, %v574
    %v619 = vpack.c.b16 %v579, %v575
    %v620 = vpack.c.b16 %v580, %v576
    %v621 = vpack.c.b16 %v581, %v577
    %v622 = vpack.c.b16 %v586, %v582
    %v623 = vpack.c.b16 %v587, %v583
    %v624 = vpack.c.b16 %v588, %v584
    %v625 = vpack.c.b16 %v589, %v585
    %v626 = vpack.c.b16 %v594, %v590
    %v627 = vpack.c.b16 %v595, %v591
    %v628 = vpack.c.b16 %v596, %v592
    %v629 = vpack.c.b16 %v597, %v593
    %662 = vmatprep.subr.bf16.mxu0 %v599
    %663 = vmatpush1.bf16.msra.mxu0 %v598
    %664 = vmatprep.subr.bf16.mxu0 %v603
    %665 = vmatpush1.bf16.msra.mxu0 %v602
    %666 = vmatprep.subr.bf16.mxu0 %v607
    %667 = vmatpush1.bf16.msra.mxu0 %v606
    %668 = vmatprep.subr.bf16.mxu0 %v611
    %669 = vmatpush1.bf16.msra.mxu0 %v610
    %670 = vmatprep.subr.bf16.mxu0 %v615
    %671 = vmatpush1.bf16.msra.mxu0 %v614
    %672 = vmatprep.subr.bf16.mxu0 %v619
    %673 = vmatpush1.bf16.msra.mxu0 %v618
    %674 = vmatprep.subr.bf16.mxu0 %v623
    %675 = vmatpush1.bf16.msra.mxu0 %v622
    %676 = vmatprep.subr.bf16.mxu0 %v627
    %677 = vmatpush1.bf16.msra.mxu0 %v626
    %678 = vmatprep.subr.bf16.mxu0 0
    %679 = vmatpush1.bf16.msra.mxu0 0
    %680 = vmatprep.subr.bf16.mxu0 0
    %681 = vmatpush1.bf16.msra.mxu0 0
    %682 = vmatprep.subr.bf16.mxu0 0
    %683 = vmatpush1.bf16.msra.mxu0 0
    %684 = vmatprep.subr.bf16.mxu0 0
    %685 = vmatpush1.bf16.msra.mxu0 0
    %686 = vmatprep.subr.bf16.mxu0 0
    %687 = vmatpush1.bf16.msra.mxu0 0
    %688 = vmatprep.subr.bf16.mxu0 0
    %689 = vmatpush1.bf16.msra.mxu0 0
    %690 = vmatprep.subr.bf16.mxu0 0
    %691 = vmatpush1.bf16.msra.mxu0 0
    %692 = vmatprep.subr.bf16.mxu0 0
    %693 = vmatpush1.bf16.msra.mxu0 0
    %694 = vmatprep.mubr.f32.mxu0 0.0
    %695 = vmatmul.mubr.f32.gmra.mrb[0].mxu0 %v447
    %v696 = vpop.f32.mrb[0].mxu0
    %v697 = vadd.f32 %v485, %v696
    %v698 = vpop.f32.mrb[0].mxu0
    %v699 = vadd.f32 %v489, %v698
    %700 = vdwg.mxu0
    %701 = vmatprep.subr.bf16.mxu0 %v601
    %702 = vmatpush1.bf16.msra.mxu0 %v600
    %703 = vmatprep.subr.bf16.mxu0 %v605
    %704 = vmatpush1.bf16.msra.mxu0 %v604
    %705 = vmatprep.subr.bf16.mxu0 %v609
    %706 = vmatpush1.bf16.msra.mxu0 %v608
    %707 = vmatprep.subr.bf16.mxu0 %v613
    %708 = vmatpush1.bf16.msra.mxu0 %v612
    %709 = vmatprep.subr.bf16.mxu0 %v617
    %710 = vmatpush1.bf16.msra.mxu0 %v616
    %711 = vmatprep.subr.bf16.mxu0 %v621
    %712 = vmatpush1.bf16.msra.mxu0 %v620
    %713 = vmatprep.subr.bf16.mxu0 %v625
    %714 = vmatpush1.bf16.msra.mxu0 %v624
    %715 = vmatprep.subr.bf16.mxu0 %v629
    %716 = vmatpush1.bf16.msra.mxu0 %v628
    %717 = vmatprep.subr.bf16.mxu0 0
    %718 = vmatpush1.bf16.msra.mxu0 0
    %719 = vmatprep.subr.bf16.mxu0 0
    %720 = vmatpush1.bf16.msra.mxu0 0
    %721 = vmatprep.subr.bf16.mxu0 0
    %722 = vmatpush1.bf16.msra.mxu0 0
    %723 = vmatprep.subr.bf16.mxu0 0
    %724 = vmatpush1.bf16.msra.mxu0 0
    %725 = vmatprep.subr.bf16.mxu0 0
    %726 = vmatpush1.bf16.msra.mxu0 0
    %727 = vmatprep.subr.bf16.mxu0 0
    %728 = vmatpush1.bf16.msra.mxu0 0
    %729 = vmatprep.subr.bf16.mxu0 0
    %730 = vmatpush1.bf16.msra.mxu0 0
    %731 = vmatprep.subr.bf16.mxu0 0
    %732 = vmatpush1.bf16.msra.mxu0 0
    %733 = vmatprep.mubr.f32.mxu0 0.0
    %734 = vmatmul.mubr.f32.gmra.mrb[0].mxu0 %v447
    %v735 = vpop.f32.mrb[0].mxu0
    %v736 = vadd.f32 %v493, %v735
    %v737 = vpop.f32.mrb[0].mxu0
    %v738 = vadd.f32 %v497, %v737
    %739 = vdwg.mxu0
    %v740 = vmul.f32 %v697, 0.5
    %v741 = vmul.f32 %v699, 0.5
    %v742 = vmul.f32 %v736, 0.5
    %v743 = vmul.f32 %v738, 0.5
    %v744 = vmul.f32 %v697, 0.70710677
    %v745 = vmul.f32 %v699, 0.70710677
    %v746 = vmul.f32 %v736, 0.70710677
    %v747 = vmul.f32 %v738, 0.70710677
    %v748 = verf.f32.pop %v744
    %v749 = verf.f32.pop %v745
    %v750 = verf.f32.pop %v746
    %v751 = verf.f32.pop %v747
    %v752 = vadd.f32 %v748, 1.0
    %v753 = vadd.f32 %v749, 1.0
    %v754 = vadd.f32 %v750, 1.0
    %v755 = vadd.f32 %v751, 1.0
    %v756 = vmul.f32 %v740, %v752
    %v757 = vmul.f32 %v741, %v753
    %v758 = vmul.f32 %v742, %v754
    %v759 = vmul.f32 %v743, %v755
    %v760 = vld [vmem:[#allocation13] sm:$0xf]
    %v761 = vld [vmem:[#allocation13 + $0x4] sm:$0xf]
    %v762 = vld [vmem:[#allocation13 + $0x8] sm:$0xf]
    %v763 = vld [vmem:[#allocation13 + $0xc] sm:$0xf]
    %v764 = vld [vmem:[#allocation13 + $0x10] sm:$0xf]
    %v765 = vld [vmem:[#allocation13 + $0x14] sm:$0xf]
    %v766 = vld [vmem:[#allocation13 + $0x18] sm:$0xf]
    %v767 = vld [vmem:[#allocation13 + $0x1c] sm:$0xf]
    %v768 = vld [vmem:[#allocation13 + $0x20] sm:$0xf]
    %v769 = vld [vmem:[#allocation13 + $0x24] sm:$0xf]
    %v770 = vld [vmem:[#allocation13 + $0x28] sm:$0xf]
    %v771 = vld [vmem:[#allocation13 + $0x2c] sm:$0xf]
    %v772 = vld [vmem:[#allocation13 + $0x30] sm:$0xf]
    %v773 = vld [vmem:[#allocation13 + $0x34] sm:$0xf]
    %v774 = vld [vmem:[#allocation13 + $0x38] sm:$0xf]
    %v775 = vld [vmem:[#allocation13 + $0x3c] sm:$0xf]
    %v776 = vld [vmem:[#allocation13 + $0x40] sm:$0xf]
    %v777 = vld [vmem:[#allocation13 + $0x44] sm:$0xf]
    %v778 = vld [vmem:[#allocation13 + $0x48] sm:$0xf]
    %v779 = vld [vmem:[#allocation13 + $0x4c] sm:$0xf]
    %v780 = vld [vmem:[#allocation13 + $0x50] sm:$0xf]
    %v781 = vld [vmem:[#allocation13 + $0x54] sm:$0xf]
    %v782 = vld [vmem:[#allocation13 + $0x58] sm:$0xf]
    %v783 = vld [vmem:[#allocation13 + $0x5c] sm:$0xf]
    %v784 = vld [vmem:[#allocation13 + $0x60] sm:$0xf]
    %v785 = vld [vmem:[#allocation13 + $0x64] sm:$0xf]
    %v786 = vld [vmem:[#allocation13 + $0x68] sm:$0xf]
    %v787 = vld [vmem:[#allocation13 + $0x6c] sm:$0xf]
    %v788 = vld [vmem:[#allocation13 + $0x70] sm:$0xf]
    %v789 = vld [vmem:[#allocation13 + $0x74] sm:$0xf]
    %v790 = vld [vmem:[#allocation13 + $0x78] sm:$0xf]
    %v791 = vld [vmem:[#allocation13 + $0x7c] sm:$0xf]
    %v792 = vld [vmem:[#allocation13 + $0x80] sm:$0xf]
    %v793 = vld [vmem:[#allocation13 + $0x84] sm:$0xf]
    %v794 = vld [vmem:[#allocation13 + $0x88] sm:$0xf]
    %v795 = vld [vmem:[#allocation13 + $0x8c] sm:$0xf]
    %v796 = vld [vmem:[#allocation13 + $0x90] sm:$0xf]
    %v797 = vld [vmem:[#allocation13 + $0x94] sm:$0xf]
    %v798 = vld [vmem:[#allocation13 + $0x98] sm:$0xf]
    %v799 = vld [vmem:[#allocation13 + $0x9c] sm:$0xf]
    %v800 = vld [vmem:[#allocation13 + $0xa0] sm:$0xf]
    %v801 = vld [vmem:[#allocation13 + $0xa4] sm:$0xf]
    %v802 = vld [vmem:[#allocation13 + $0xa8] sm:$0xf]
    %v803 = vld [vmem:[#allocation13 + $0xac] sm:$0xf]
    %v804 = vld [vmem:[#allocation13 + $0xb0] sm:$0xf]
    %v805 = vld [vmem:[#allocation13 + $0xb4] sm:$0xf]
    %v806 = vld [vmem:[#allocation13 + $0xb8] sm:$0xf]
    %v807 = vld [vmem:[#allocation13 + $0xbc] sm:$0xf]
    %v808 = vld [vmem:[#allocation13 + $0xc0] sm:$0xf]
    %v809 = vld [vmem:[#allocation13 + $0xc4] sm:$0xf]
    %v810 = vld [vmem:[#allocation13 + $0xc8] sm:$0xf]
    %v811 = vld [vmem:[#allocation13 + $0xcc] sm:$0xf]
    %v812 = vld [vmem:[#allocation13 + $0xd0] sm:$0xf]
    %v813 = vld [vmem:[#allocation13 + $0xd4] sm:$0xf]
    %v814 = vld [vmem:[#allocation13 + $0xd8] sm:$0xf]
    %v815 = vld [vmem:[#allocation13 + $0xdc] sm:$0xf]
    %v816 = vld [vmem:[#allocation13 + $0xe0] sm:$0xf]
    %v817 = vld [vmem:[#allocation13 + $0xe4] sm:$0xf]
    %v818 = vld [vmem:[#allocation13 + $0xe8] sm:$0xf]
    %v819 = vld [vmem:[#allocation13 + $0xec] sm:$0xf]
    %v820 = vld [vmem:[#allocation13 + $0xf0] sm:$0xf]
    %v821 = vld [vmem:[#allocation13 + $0xf4] sm:$0xf]
    %v822 = vld [vmem:[#allocation13 + $0xf8] sm:$0xf]
    %v823 = vld [vmem:[#allocation13 + $0xfc] sm:$0xf]
    %v824 = vlaneseq
    %v825 = vshrl.u32 %v824, 7
    %v826 = vsub.s32 1, %v825
    %v827 = vrot.slane %v318, %v826
    %v892 = vunpack.c.l.b16 %v760
    %v893 = vunpack.c.l.b16 %v761
    %v894 = vunpack.c.l.b16 %v762
    %v895 = vunpack.c.l.b16 %v763
    %v896 = vunpack.c.l.b16 %v764
    %v897 = vunpack.c.l.b16 %v765
    %v898 = vunpack.c.l.b16 %v766
    %v899 = vunpack.c.l.b16 %v767
    %v900 = vunpack.c.l.b16 %v768
    %v901 = vunpack.c.l.b16 %v769
    %v902 = vunpack.c.l.b16 %v770
    %v903 = vunpack.c.l.b16 %v771
    %v904 = vunpack.c.l.b16 %v772
    %v905 = vunpack.c.l.b16 %v773
    %v906 = vunpack.c.l.b16 %v774
    %v907 = vunpack.c.l.b16 %v775
    %v908 = vunpack.c.l.b16 %v776
    %v909 = vunpack.c.l.b16 %v777
    %v910 = vunpack.c.l.b16 %v778
    %v911 = vunpack.c.l.b16 %v779
    %v912 = vunpack.c.l.b16 %v780
    %v913 = vunpack.c.l.b16 %v781
    %v914 = vunpack.c.l.b16 %v782
    %v915 = vunpack.c.l.b16 %v783
    %v916 = vunpack.c.l.b16 %v784
    %v917 = vunpack.c.l.b16 %v785
    %v918 = vunpack.c.l.b16 %v786
    %v919 = vunpack.c.l.b16 %v787
    %v920 = vunpack.c.l.b16 %v788
    %v921 = vunpack.c.l.b16 %v789
    %v922 = vunpack.c.l.b16 %v790
    %v923 = vunpack.c.l.b16 %v791
    %v924 = vunpack.c.l.b16 %v792
    %v925 = vunpack.c.l.b16 %v793
    %v926 = vunpack.c.l.b16 %v794
    %v927 = vunpack.c.l.b16 %v795
    %v928 = vunpack.c.l.b16 %v796
    %v929 = vunpack.c.l.b16 %v797
    %v930 = vunpack.c.l.b16 %v798
    %v931 = vunpack.c.l.b16 %v799
    %v932 = vunpack.c.l.b16 %v800
    %v933 = vunpack.c.l.b16 %v801
    %v934 = vunpack.c.l.b16 %v802
    %v935 = vunpack.c.l.b16 %v803
    %v936 = vunpack.c.l.b16 %v804
    %v937 = vunpack.c.l.b16 %v805
    %v938 = vunpack.c.l.b16 %v806
    %v939 = vunpack.c.l.b16 %v807
    %v940 = vunpack.c.l.b16 %v808
    %v941 = vunpack.c.l.b16 %v809
    %v942 = vunpack.c.l.b16 %v810
    %v943 = vunpack.c.l.b16 %v811
    %v944 = vunpack.c.l.b16 %v812
    %v945 = vunpack.c.l.b16 %v813
    %v946 = vunpack.c.l.b16 %v814
    %v947 = vunpack.c.l.b16 %v815
    %v948 = vunpack.c.l.b16 %v816
    %v949 = vunpack.c.l.b16 %v817
    %v950 = vunpack.c.l.b16 %v818
    %v951 = vunpack.c.l.b16 %v819
    %v952 = vunpack.c.l.b16 %v820
    %v953 = vunpack.c.l.b16 %v821
    %v954 = vunpack.c.l.b16 %v822
    %v955 = vunpack.c.l.b16 %v823
    %v956 = vpack.c.b16 %v893, %v892
    %v957 = vpack.c.b16 %v895, %v894
    %v958 = vpack.c.b16 %v897, %v896
    %v959 = vpack.c.b16 %v899, %v898
    %v960 = vpack.c.b16 %v901, %v900
    %v961 = vpack.c.b16 %v903, %v902
    %v962 = vpack.c.b16 %v905, %v904
    %v963 = vpack.c.b16 %v907, %v906
    %v964 = vpack.c.b16 %v909, %v908
    %v965 = vpack.c.b16 %v911, %v910
    %v966 = vpack.c.b16 %v913, %v912
    %v967 = vpack.c.b16 %v915, %v914
    %v968 = vpack.c.b16 %v917, %v916
    %v969 = vpack.c.b16 %v919, %v918
    %v970 = vpack.c.b16 %v921, %v920
    %v971 = vpack.c.b16 %v923, %v922
    %v972 = vpack.c.b16 %v925, %v924
    %v973 = vpack.c.b16 %v927, %v926
    %v974 = vpack.c.b16 %v929, %v928
    %v975 = vpack.c.b16 %v931, %v930
    %v976 = vpack.c.b16 %v933, %v932
    %v977 = vpack.c.b16 %v935, %v934
    %v978 = vpack.c.b16 %v937, %v936
    %v979 = vpack.c.b16 %v939, %v938
    %v980 = vpack.c.b16 %v941, %v940
    %v981 = vpack.c.b16 %v943, %v942
    %v982 = vpack.c.b16 %v945, %v944
    %v983 = vpack.c.b16 %v947, %v946
    %v984 = vpack.c.b16 %v949, %v948
    %v985 = vpack.c.b16 %v951, %v950
    %v986 = vpack.c.b16 %v953, %v952
    %v987 = vpack.c.b16 %v955, %v954
    %1020 = vmatprep.subr.bf16.mxu0 0
    %1021 = vmatpush1.bf16.msra.mxu0 %v956
    %1022 = vmatprep.subr.bf16.mxu0 0
    %1023 = vmatpush1.bf16.msra.mxu0 %v957
    %1024 = vmatprep.subr.bf16.mxu0 0
    %1025 = vmatpush1.bf16.msra.mxu0 %v958
    %1026 = vmatprep.subr.bf16.mxu0 0
    %1027 = vmatpush1.bf16.msra.mxu0 %v959
    %1028 = vmatprep.subr.bf16.mxu0 0
    %1029 = vmatpush1.bf16.msra.mxu0 %v960
    %1030 = vmatprep.subr.bf16.mxu0 0
    %1031 = vmatpush1.bf16.msra.mxu0 %v961
    %1032 = vmatprep.subr.bf16.mxu0 0
    %1033 = vmatpush1.bf16.msra.mxu0 %v962
    %1034 = vmatprep.subr.bf16.mxu0 0
    %1035 = vmatpush1.bf16.msra.mxu0 %v963
    %1036 = vmatprep.subr.bf16.mxu0 0
    %1037 = vmatpush1.bf16.msra.mxu0 %v964
    %1038 = vmatprep.subr.bf16.mxu0 0
    %1039 = vmatpush1.bf16.msra.mxu0 %v965
    %1040 = vmatprep.subr.bf16.mxu0 0
    %1041 = vmatpush1.bf16.msra.mxu0 %v966
    %1042 = vmatprep.subr.bf16.mxu0 0
    %1043 = vmatpush1.bf16.msra.mxu0 %v967
    %1044 = vmatprep.subr.bf16.mxu0 0
    %1045 = vmatpush1.bf16.msra.mxu0 %v968
    %1046 = vmatprep.subr.bf16.mxu0 0
    %1047 = vmatpush1.bf16.msra.mxu0 %v969
    %1048 = vmatprep.subr.bf16.mxu0 0
    %1049 = vmatpush1.bf16.msra.mxu0 %v970
    %1050 = vmatprep.subr.bf16.mxu0 0
    %1051 = vmatpush1.bf16.msra.mxu0 %v971
    %1052 = vmatprep.mubr.f32.mxu0 %v757
    %1053 = vmatmul.mubr.f32.gmra.mrb[0].mxu0 %v756
    %v1054 = vpop.f32.mrb[0].mxu0
    %v1055 = vadd.f32 %v827, %v1054
    %v1056 = vpop.f32.mrb[0].mxu0
    %1057 = vdwg.mxu0
    %1058 = vmatprep.subr.bf16.mxu0 0
    %1059 = vmatpush1.bf16.msra.mxu0 %v972
    %1060 = vmatprep.subr.bf16.mxu0 0
    %1061 = vmatpush1.bf16.msra.mxu0 %v973
    %1062 = vmatprep.subr.bf16.mxu0 0
    %1063 = vmatpush1.bf16.msra.mxu0 %v974
    %1064 = vmatprep.subr.bf16.mxu0 0
    %1065 = vmatpush1.bf16.msra.mxu0 %v975
    %1066 = vmatprep.subr.bf16.mxu0 0
    %1067 = vmatpush1.bf16.msra.mxu0 %v976
    %1068 = vmatprep.subr.bf16.mxu0 0
    %1069 = vmatpush1.bf16.msra.mxu0 %v977
    %1070 = vmatprep.subr.bf16.mxu0 0
    %1071 = vmatpush1.bf16.msra.mxu0 %v978
    %1072 = vmatprep.subr.bf16.mxu0 0
    %1073 = vmatpush1.bf16.msra.mxu0 %v979
    %1074 = vmatprep.subr.bf16.mxu0 0
    %1075 = vmatpush1.bf16.msra.mxu0 %v980
    %1076 = vmatprep.subr.bf16.mxu0 0
    %1077 = vmatpush1.bf16.msra.mxu0 %v981
    %1078 = vmatprep.subr.bf16.mxu0 0
    %1079 = vmatpush1.bf16.msra.mxu0 %v982
    %1080 = vmatprep.subr.bf16.mxu0 0
    %1081 = vmatpush1.bf16.msra.mxu0 %v983
    %1082 = vmatprep.subr.bf16.mxu0 0
    %1083 = vmatpush1.bf16.msra.mxu0 %v984
    %1084 = vmatprep.subr.bf16.mxu0 0
    %1085 = vmatpush1.bf16.msra.mxu0 %v985
    %1086 = vmatprep.subr.bf16.mxu0 0
    %1087 = vmatpush1.bf16.msra.mxu0 %v986
    %1088 = vmatprep.subr.bf16.mxu0 0
    %1089 = vmatpush1.bf16.msra.mxu0 %v987
    %1090 = vmatprep.mubr.f32.mxu0 %v759
    %1091 = vmatmul.mubr.f32.gmra.mrb[0].mxu0 %v758
    %v1092 = vpop.f32.mrb[0].mxu0
    %v1093 = vadd.f32 %v1055, %v1092
    %v1094 = vpop.f32.mrb[0].mxu0
    %1095 = vdwg.mxu0
    %v1096 = vadd.f32 %v447, %v1093
    %1097 = vadd.xlane.f32.xlu0 %v1096
    %v1098 = vpop.xlane.xlu0 %1097
    %v1099 = vmul.f32 %v1098, %v428
    %v1100 = vsub.f32 %v1096, %v1099
    %v1101 = vmul.f32 %v1100, %v1100
    %1102 = vadd.xlane.f32.xlu0 %v1101
    %v1103 = vpop.xlane.xlu0 %1102
    %v1104 = vmul.f32 %v1103, %v428
    %v1105 = vadd.f32 %v1104, 1e-05
    %v1106 = vrsqrt.pop %v1105
    %v1107 = vmul.f32 %v1100, %v1106
    %v1108 = vlaneseq
    %v1109 = vshrl.u32 %v1108, 7
    %v1110 = vsub.s32 4, %v1109
    %v1111 = vrot.slane %v318, %v1110
    %v1112 = vmul.f32 %v1107, %v1111
    %v1113 = vlaneseq
    %v1114 = vshrl.u32 %v1113, 7
    %v1115 = vsub.s32 5, %v1114
    %v1116 = vrot.slane %v318, %v1115
    %v1117 = vadd.f32 %v1112, %v1116
    %s1118 = scalar_lea.vmem %s9, 8
    %v1119 = vld [vmem:[%s1118] sm:$0x3f]
    %s1120 = scalar_lea.vmem [#allocation8], 64
    %v1121 = vld [vmem:[%s1120] sm:$0xf]
    %v1122 = vld [vmem:[%s1120 + $0x4] sm:$0xf]
    %v1123 = vld [vmem:[%s1120 + $0x8] sm:$0xf]
    %v1124 = vld [vmem:[%s1120 + $0xc] sm:$0xf]
    %v1125 = vld [vmem:[%s1120 + $0x10] sm:$0xf]
    %v1126 = vld [vmem:[%s1120 + $0x14] sm:$0xf]
    %v1127 = vld [vmem:[%s1120 + $0x18] sm:$0xf]
    %v1128 = vld [vmem:[%s1120 + $0x1c] sm:$0xf]
    %v1129 = vld [vmem:[%s1120 + $0x20] sm:$0xf]
    %v1130 = vld [vmem:[%s1120 + $0x24] sm:$0xf]
    %v1131 = vld [vmem:[%s1120 + $0x28] sm:$0xf]
    %v1132 = vld [vmem:[%s1120 + $0x2c] sm:$0xf]
    %v1133 = vld [vmem:[%s1120 + $0x30] sm:$0xf]
    %v1134 = vld [vmem:[%s1120 + $0x34] sm:$0xf]
    %v1135 = vld [vmem:[%s1120 + $0x38] sm:$0xf]
    %v1136 = vld [vmem:[%s1120 + $0x3c] sm:$0xf]
    %v1137 = vlaneseq
    %v1138 = vshrl.u32 %v1137, 7
    %v1139 = vsub.s32 0, %v1138
    %v1140 = vrot.slane %v1119, %v1139
    %v1157 = vunpack.c.l.b16 %v1121
    %v1158 = vunpack.c.l.b16 %v1122
    %v1159 = vunpack.c.l.b16 %v1123
    %v1160 = vunpack.c.l.b16 %v1124
    %v1161 = vunpack.c.l.b16 %v1125
    %v1162 = vunpack.c.l.b16 %v1126
    %v1163 = vunpack.c.l.b16 %v1127
    %v1164 = vunpack.c.l.b16 %v1128
    %v1165 = vunpack.c.l.b16 %v1129
    %v1166 = vunpack.c.l.b16 %v1130
    %v1167 = vunpack.c.l.b16 %v1131
    %v1168 = vunpack.c.l.b16 %v1132
    %v1169 = vunpack.c.l.b16 %v1133
    %v1170 = vunpack.c.l.b16 %v1134
    %v1171 = vunpack.c.l.b16 %v1135
    %v1172 = vunpack.c.l.b16 %v1136
    %v1173 = vpack.c.b16 %v1158, %v1157
    %v1174 = vpack.c.b16 %v1160, %v1159
    %v1175 = vpack.c.b16 %v1162, %v1161
    %v1176 = vpack.c.b16 %v1164, %v1163
    %v1177 = vpack.c.b16 %v1166, %v1165
    %v1178 = vpack.c.b16 %v1168, %v1167
    %v1179 = vpack.c.b16 %v1170, %v1169
    %v1180 = vpack.c.b16 %v1172, %v1171
    %1189 = vmatprep.subr.bf16.mxu0 0
    %1190 = vmatpush1.bf16.msra.mxu0 %v1173
    %1191 = vmatprep.subr.bf16.mxu0 0
    %1192 = vmatpush1.bf16.msra.mxu0 %v1174
    %1193 = vmatprep.subr.bf16.mxu0 0
    %1194 = vmatpush1.bf16.msra.mxu0 %v1175
    %1195 = vmatprep.subr.bf16.mxu0 0
    %1196 = vmatpush1.bf16.msra.mxu0 %v1176
    %1197 = vmatprep.subr.bf16.mxu0 0
    %1198 = vmatpush1.bf16.msra.mxu0 %v1177
    %1199 = vmatprep.subr.bf16.mxu0 0
    %1200 = vmatpush1.bf16.msra.mxu0 %v1178
    %1201 = vmatprep.subr.bf16.mxu0 0
    %1202 = vmatpush1.bf16.msra.mxu0 %v1179
    %1203 = vmatprep.subr.bf16.mxu0 0
    %1204 = vmatpush1.bf16.msra.mxu0 %v1180
    %1205 = vmatprep.subr.bf16.mxu0 0
    %1206 = vmatpush1.bf16.msra.mxu0 0
    %1207 = vmatprep.subr.bf16.mxu0 0
    %1208 = vmatpush1.bf16.msra.mxu0 0
    %1209 = vmatprep.subr.bf16.mxu0 0
    %1210 = vmatpush1.bf16.msra.mxu0 0
    %1211 = vmatprep.subr.bf16.mxu0 0
    %1212 = vmatpush1.bf16.msra.mxu0 0
    %1213 = vmatprep.subr.bf16.mxu0 0
    %1214 = vmatpush1.bf16.msra.mxu0 0
    %1215 = vmatprep.subr.bf16.mxu0 0
    %1216 = vmatpush1.bf16.msra.mxu0 0
    %1217 = vmatprep.subr.bf16.mxu0 0
    %1218 = vmatpush1.bf16.msra.mxu0 0
    %1219 = vmatprep.subr.bf16.mxu0 0
    %1220 = vmatpush1.bf16.msra.mxu0 0
    %1221 = vmatprep.mubr.f32.mxu0 0.0
    %1222 = vmatmul.mubr.f32.gmra.mrb[0].mxu0 %v1117
    %v1223 = vpop.f32.mrb[0].mxu0
    %v1224 = vadd.f32 %v1140, %v1223
    %v1225 = vpop.f32.mrb[0].mxu0
    %1226 = vdwg.mxu0
    %v1227 = vadd.f32 %v1117, %v1224
    %1228 = vadd.xlane.f32.xlu0 %v1227
    %v1229 = vpop.xlane.xlu0 %1228
    %v1230 = vmul.f32 %v1229, %v428
    %v1231 = vsub.f32 %v1227, %v1230
    %v1232 = vmul.f32 %v1231, %v1231
    %1233 = vadd.xlane.f32.xlu0 %v1232
    %v1234 = vpop.xlane.xlu0 %1233
    %v1235 = vmul.f32 %v1234, %v428
    %v1236 = vadd.f32 %v1235, 1e-05
    %v1237 = vrsqrt.pop %v1236
    %v1238 = vmul.f32 %v1231, %v1237
    %v1239 = vlaneseq
    %v1240 = vshrl.u32 %v1239, 7
    %v1241 = vsub.s32 2, %v1240
    %v1242 = vrot.slane %v1119, %v1241
    %v1243 = vmul.f32 %v1238, %v1242
    %v1244 = vlaneseq
    %v1245 = vshrl.u32 %v1244, 7
    %v1246 = vsub.s32 3, %v1245
    %v1247 = vrot.slane %v1119, %v1246
    %v1248 = vadd.f32 %v1243, %v1247
    %s1249 = scalar_lea.vmem [#allocation10], 256
    %v1250 = vld [vmem:[%s1249] sm:$0xff]
    %v1251 = vld [vmem:[%s1249 + $0x8] sm:$0xff]
    %v1252 = vld [vmem:[%s1249 + $0x10] sm:$0xff]
    %v1253 = vld [vmem:[%s1249 + $0x18] sm:$0xff]
    %v1254 = vld [vmem:[%s1249 + $0x20] sm:$0xff]
    %v1255 = vld [vmem:[%s1249 + $0x28] sm:$0xff]
    %v1256 = vld [vmem:[%s1249 + $0x30] sm:$0xff]
    %v1257 = vld [vmem:[%s1249 + $0x38] sm:$0xff]
    %v1258 = vld [vmem:[%s1249 + $0x40] sm:$0xff]
    %v1259 = vld [vmem:[%s1249 + $0x48] sm:$0xff]
    %v1260 = vld [vmem:[%s1249 + $0x50] sm:$0xff]
    %v1261 = vld [vmem:[%s1249 + $0x58] sm:$0xff]
    %v1262 = vld [vmem:[%s1249 + $0x60] sm:$0xff]
    %v1263 = vld [vmem:[%s1249 + $0x68] sm:$0xff]
    %v1264 = vld [vmem:[%s1249 + $0x70] sm:$0xff]
    %v1265 = vld [vmem:[%s1249 + $0x78] sm:$0xff]
    %v1266 = vld [vmem:[%s1249 + $0x80] sm:$0xff]
    %v1267 = vld [vmem:[%s1249 + $0x88] sm:$0xff]
    %v1268 = vld [vmem:[%s1249 + $0x90] sm:$0xff]
    %v1269 = vld [vmem:[%s1249 + $0x98] sm:$0xff]
    %v1270 = vld [vmem:[%s1249 + $0xa0] sm:$0xff]
    %v1271 = vld [vmem:[%s1249 + $0xa8] sm:$0xff]
    %v1272 = vld [vmem:[%s1249 + $0xb0] sm:$0xff]
    %v1273 = vld [vmem:[%s1249 + $0xb8] sm:$0xff]
    %v1274 = vld [vmem:[%s1249 + $0xc0] sm:$0xff]
    %v1275 = vld [vmem:[%s1249 + $0xc8] sm:$0xff]
    %v1276 = vld [vmem:[%s1249 + $0xd0] sm:$0xff]
    %v1277 = vld [vmem:[%s1249 + $0xd8] sm:$0xff]
    %v1278 = vld [vmem:[%s1249 + $0xe0] sm:$0xff]
    %v1279 = vld [vmem:[%s1249 + $0xe8] sm:$0xff]
    %v1280 = vld [vmem:[%s1249 + $0xf0] sm:$0xff]
    %v1281 = vld [vmem:[%s1249 + $0xf8] sm:$0xff]
    %s1282 = scalar_lea.vmem [#allocation11], 4
    %v1283 = vld [vmem:[%s1282] sm:$0xf]
    %v1285 = vlaneseq
    %v1286 = vshrl.u32 %v1285, 7
    %v1287 = vsub.s32 0, %v1286
    %v1288 = vrot.slane %v1283, %v1287
    %v1289 = vlaneseq
    %v1290 = vshrl.u32 %v1289, 7
    %v1291 = vsub.s32 1, %v1290
    %v1292 = vrot.slane %v1283, %v1291
    %v1293 = vlaneseq
    %v1294 = vshrl.u32 %v1293, 7
    %v1295 = vsub.s32 2, %v1294
    %v1296 = vrot.slane %v1283, %v1295
    %v1297 = vlaneseq
    %v1298 = vshrl.u32 %v1297, 7
    %v1299 = vsub.s32 3, %v1298
    %v1300 = vrot.slane %v1283, %v1299
    %v1337 = vunpack.c.l.b16 %v1250
    %v1338 = vunpack.c.h.b16 %v1250
    %v1339 = vunpack.c.l.b16 %v1251
    %v1340 = vunpack.c.h.b16 %v1251
    %v1341 = vunpack.c.l.b16 %v1252
    %v1342 = vunpack.c.h.b16 %v1252
    %v1343 = vunpack.c.l.b16 %v1253
    %v1344 = vunpack.c.h.b16 %v1253
    %v1345 = vunpack.c.l.b16 %v1254
    %v1346 = vunpack.c.h.b16 %v1254
    %v1347 = vunpack.c.l.b16 %v1255
    %v1348 = vunpack.c.h.b16 %v1255
    %v1349 = vunpack.c.l.b16 %v1256
    %v1350 = vunpack.c.h.b16 %v1256
    %v1351 = vunpack.c.l.b16 %v1257
    %v1352 = vunpack.c.h.b16 %v1257
    %v1353 = vunpack.c.l.b16 %v1258
    %v1354 = vunpack.c.h.b16 %v1258
    %v1355 = vunpack.c.l.b16 %v1259
    %v1356 = vunpack.c.h.b16 %v1259
    %v1357 = vunpack.c.l.b16 %v1260
    %v1358 = vunpack.c.h.b16 %v1260
    %v1359 = vunpack.c.l.b16 %v1261
    %v1360 = vunpack.c.h.b16 %v1261
    %v1361 = vunpack.c.l.b16 %v1262
    %v1362 = vunpack.c.h.b16 %v1262
    %v1363 = vunpack.c.l.b16 %v1263
    %v1364 = vunpack.c.h.b16 %v1263
    %v1365 = vunpack.c.l.b16 %v1264
    %v1366 = vunpack.c.h.b16 %v1264
    %v1367 = vunpack.c.l.b16 %v1265
    %v1368 = vunpack.c.h.b16 %v1265
    %v1369 = vunpack.c.l.b16 %v1266
    %v1370 = vunpack.c.h.b16 %v1266
    %v1371 = vunpack.c.l.b16 %v1267
    %v1372 = vunpack.c.h.b16 %v1267
    %v1373 = vunpack.c.l.b16 %v1268
    %v1374 = vunpack.c.h.b16 %v1268
    %v1375 = vunpack.c.l.b16 %v1269
    %v1376 = vunpack.c.h.b16 %v1269
    %v1377 = vunpack.c.l.b16 %v1270
    %v1378 = vunpack.c.h.b16 %v1270
    %v1379 = vunpack.c.l.b16 %v1271
    %v1380 = vunpack.c.h.b16 %v1271
    %v1381 = vunpack.c.l.b16 %v1272
    %v1382 = vunpack.c.h.b16 %v1272
    %v1383 = vunpack.c.l.b16 %v1273
    %v1384 = vunpack.c.h.b16 %v1273
    %v1385 = vunpack.c.l.b16 %v1274
    %v1386 = vunpack.c.h.b16 %v1274
    %v1387 = vunpack.c.l.b16 %v1275
    %v1388 = vunpack.c.h.b16 %v1275
    %v1389 = vunpack.c.l.b16 %v1276
    %v1390 = vunpack.c.h.b16 %v1276
    %v1391 = vunpack.c.l.b16 %v1277
    %v1392 = vunpack.c.h.b16 %v1277
    %v1393 = vunpack.c.l.b16 %v1278
    %v1394 = vunpack.c.h.b16 %v1278
    %v1395 = vunpack.c.l.b16 %v1279
    %v1396 = vunpack.c.h.b16 %v1279
    %v1397 = vunpack.c.l.b16 %v1280
    %v1398 = vunpack.c.h.b16 %v1280
    %v1399 = vunpack.c.l.b16 %v1281
    %v1400 = vunpack.c.h.b16 %v1281
    %v1401 = vpack.c.b16 %v1341, %v1337
    %v1402 = vpack.c.b16 %v1342, %v1338
    %v1403 = vpack.c.b16 %v1343, %v1339
    %v1404 = vpack.c.b16 %v1344, %v1340
    %v1405 = vpack.c.b16 %v1349, %v1345
    %v1406 = vpack.c.b16 %v1350, %v1346
    %v1407 = vpack.c.b16 %v1351, %v1347
    %v1408 = vpack.c.b16 %v1352, %v1348
    %v1409 = vpack.c.b16 %v1357, %v1353
    %v1410 = vpack.c.b16 %v1358, %v1354
    %v1411 = vpack.c.b16 %v1359, %v1355
    %v1412 = vpack.c.b16 %v1360, %v1356
    %v1413 = vpack.c.b16 %v1365, %v1361
    %v1414 = vpack.c.b16 %v1366, %v1362
    %v1415 = vpack.c.b16 %v1367, %v1363
    %v1416 = vpack.c.b16 %v1368, %v1364
    %v1417 = vpack.c.b16 %v1373, %v1369
    %v1418 = vpack.c.b16 %v1374, %v1370
    %v1419 = vpack.c.b16 %v1375, %v1371
    %v1420 = vpack.c.b16 %v1376, %v1372
    %v1421 = vpack.c.b16 %v1381, %v1377
    %v1422 = vpack.c.b16 %v1382, %v1378
    %v1423 = vpack.c.b16 %v1383, %v1379
    %v1424 = vpack.c.b16 %v1384, %v1380
    %v1425 = vpack.c.b16 %v1389, %v1385
    %v1426 = vpack.c.b16 %v1390, %v1386
    %v1427 = vpack.c.b16 %v1391, %v1387
    %v1428 = vpack.c.b16 %v1392, %v1388
    %v1429 = vpack.c.b16 %v1397, %v1393
    %v1430 = vpack.c.b16 %v1398, %v1394
    %v1431 = vpack.c.b16 %v1399, %v1395
    %v1432 = vpack.c.b16 %v1400, %v1396
    %1465 = vmatprep.subr.bf16.mxu0 %v1402
    %1466 = vmatpush1.bf16.msra.mxu0 %v1401
    %1467 = vmatprep.subr.bf16.mxu0 %v1406
    %1468 = vmatpush1.bf16.msra.mxu0 %v1405
    %1469 = vmatprep.subr.bf16.mxu0 %v1410
    %1470 = vmatpush1.bf16.msra.mxu0 %v1409
    %1471 = vmatprep.subr.bf16.mxu0 %v1414
    %1472 = vmatpush1.bf16.msra.mxu0 %v1413
    %1473 = vmatprep.subr.bf16.mxu0 %v1418
    %1474 = vmatpush1.bf16.msra.mxu0 %v1417
    %1475 = vmatprep.subr.bf16.mxu0 %v1422
    %1476 = vmatpush1.bf16.msra.mxu0 %v1421
    %1477 = vmatprep.subr.bf16.mxu0 %v1426
    %1478 = vmatpush1.bf16.msra.mxu0 %v1425
    %1479 = vmatprep.subr.bf16.mxu0 %v1430
    %1480 = vmatpush1.bf16.msra.mxu0 %v1429
    %1481 = vmatprep.subr.bf16.mxu0 0
    %1482 = vmatpush1.bf16.msra.mxu0 0
    %1483 = vmatprep.subr.bf16.mxu0 0
    %1484 = vmatpush1.bf16.msra.mxu0 0
    %1485 = vmatprep.subr.bf16.mxu0 0
    %1486 = vmatpush1.bf16.msra.mxu0 0
    %1487 = vmatprep.subr.bf16.mxu0 0
    %1488 = vmatpush1.bf16.msra.mxu0 0
    %1489 = vmatprep.subr.bf16.mxu0 0
    %1490 = vmatpush1.bf16.msra.mxu0 0
    %1491 = vmatprep.subr.bf16.mxu0 0
    %1492 = vmatpush1.bf16.msra.mxu0 0
    %1493 = vmatprep.subr.bf16.mxu0 0
    %1494 = vmatpush1.bf16.msra.mxu0 0
    %1495 = vmatprep.subr.bf16.mxu0 0
    %1496 = vmatpush1.bf16.msra.mxu0 0
    %1497 = vmatprep.mubr.f32.mxu0 0.0
    %1498 = vmatmul.mubr.f32.gmra.mrb[0].mxu0 %v1248
    %v1499 = vpop.f32.mrb[0].mxu0
    %v1500 = vadd.f32 %v1288, %v1499
    %v1501 = vpop.f32.mrb[0].mxu0
    %v1502 = vadd.f32 %v1292, %v1501
    %1503 = vdwg.mxu0
    %1504 = vmatprep.subr.bf16.mxu0 %v1404
    %1505 = vmatpush1.bf16.msra.mxu0 %v1403
    %1506 = vmatprep.subr.bf16.mxu0 %v1408
    %1507 = vmatpush1.bf16.msra.mxu0 %v1407
    %1508 = vmatprep.subr.bf16.mxu0 %v1412
    %1509 = vmatpush1.bf16.msra.mxu0 %v1411
    %1510 = vmatprep.subr.bf16.mxu0 %v1416
    %1511 = vmatpush1.bf16.msra.mxu0 %v1415
    %1512 = vmatprep.subr.bf16.mxu0 %v1420
    %1513 = vmatpush1.bf16.msra.mxu0 %v1419
    %1514 = vmatprep.subr.bf16.mxu0 %v1424
    %1515 = vmatpush1.bf16.msra.mxu0 %v1423
    %1516 = vmatprep.subr.bf16.mxu0 %v1428
    %1517 = vmatpush1.bf16.msra.mxu0 %v1427
    %1518 = vmatprep.subr.bf16.mxu0 %v1432
    %1519 = vmatpush1.bf16.msra.mxu0 %v1431
    %1520 = vmatprep.subr.bf16.mxu0 0
    %1521 = vmatpush1.bf16.msra.mxu0 0
    %1522 = vmatprep.subr.bf16.mxu0 0
    %1523 = vmatpush1.bf16.msra.mxu0 0
    %1524 = vmatprep.subr.bf16.mxu0 0
    %1525 = vmatpush1.bf16.msra.mxu0 0
    %1526 = vmatprep.subr.bf16.mxu0 0
    %1527 = vmatpush1.bf16.msra.mxu0 0
    %1528 = vmatprep.subr.bf16.mxu0 0
    %1529 = vmatpush1.bf16.msra.mxu0 0
    %1530 = vmatprep.subr.bf16.mxu0 0
    %1531 = vmatpush1.bf16.msra.mxu0 0
    %1532 = vmatprep.subr.bf16.mxu0 0
    %1533 = vmatpush1.bf16.msra.mxu0 0
    %1534 = vmatprep.subr.bf16.mxu0 0
    %1535 = vmatpush1.bf16.msra.mxu0 0
    %1536 = vmatprep.mubr.f32.mxu0 0.0
    %1537 = vmatmul.mubr.f32.gmra.mrb[0].mxu0 %v1248
    %v1538 = vpop.f32.mrb[0].mxu0
    %v1539 = vadd.f32 %v1296, %v1538
    %v1540 = vpop.f32.mrb[0].mxu0
    %v1541 = vadd.f32 %v1300, %v1540
    %1542 = vdwg.mxu0
    %v1543 = vmul.f32 %v1500, 0.5
    %v1544 = vmul.f32 %v1502, 0.5
    %v1545 = vmul.f32 %v1539, 0.5
    %v1546 = vmul.f32 %v1541, 0.5
    %v1547 = vmul.f32 %v1500, 0.70710677
    %v1548 = vmul.f32 %v1502, 0.70710677
    %v1549 = vmul.f32 %v1539, 0.70710677
    %v1550 = vmul.f32 %v1541, 0.70710677
    %v1551 = verf.f32.pop %v1547
    %v1552 = verf.f32.pop %v1548
    %v1553 = verf.f32.pop %v1549
    %v1554 = verf.f32.pop %v1550
    %v1555 = vadd.f32 %v1551, 1.0
    %v1556 = vadd.f32 %v1552, 1.0
    %v1557 = vadd.f32 %v1553, 1.0
    %v1558 = vadd.f32 %v1554, 1.0
    %v1559 = vmul.f32 %v1543, %v1555
    %v1560 = vmul.f32 %v1544, %v1556
    %v1561 = vmul.f32 %v1545, %v1557
    %v1562 = vmul.f32 %v1546, %v1558
    %s1563 = scalar_lea.vmem [#allocation13], 256
    %v1564 = vld [vmem:[%s1563] sm:$0xf]
    %v1565 = vld [vmem:[%s1563 + $0x4] sm:$0xf]
    %v1566 = vld [vmem:[%s1563 + $0x8] sm:$0xf]
    %v1567 = vld [vmem:[%s1563 + $0xc] sm:$0xf]
    %v1568 = vld [vmem:[%s1563 + $0x10] sm:$0xf]
    %v1569 = vld [vmem:[%s1563 + $0x14] sm:$0xf]
    %v1570 = vld [vmem:[%s1563 + $0x18] sm:$0xf]
    %v1571 = vld [vmem:[%s1563 + $0x1c] sm:$0xf]
    %v1572 = vld [vmem:[%s1563 + $0x20] sm:$0xf]
    %v1573 = vld [vmem:[%s1563 + $0x24] sm:$0xf]
    %v1574 = vld [vmem:[%s1563 + $0x28] sm:$0xf]
    %v1575 = vld [vmem:[%s1563 + $0x2c] sm:$0xf]
    %v1576 = vld [vmem:[%s1563 + $0x30] sm:$0xf]
    %v1577 = vld [vmem:[%s1563 + $0x34] sm:$0xf]
    %v1578 = vld [vmem:[%s1563 + $0x38] sm:$0xf]
    %v1579 = vld [vmem:[%s1563 + $0x3c] sm:$0xf]
    %v1580 = vld [vmem:[%s1563 + $0x40] sm:$0xf]
    %v1581 = vld [vmem:[%s1563 + $0x44] sm:$0xf]
    %v1582 = vld [vmem:[%s1563 + $0x48] sm:$0xf]
    %v1583 = vld [vmem:[%s1563 + $0x4c] sm:$0xf]
    %v1584 = vld [vmem:[%s1563 + $0x50] sm:$0xf]
    %v1585 = vld [vmem:[%s1563 + $0x54] sm:$0xf]
    %v1586 = vld [vmem:[%s1563 + $0x58] sm:$0xf]
    %v1587 = vld [vmem:[%s1563 + $0x5c] sm:$0xf]
    %v1588 = vld [vmem:[%s1563 + $0x60] sm:$0xf]
    %v1589 = vld [vmem:[%s1563 + $0x64] sm:$0xf]
    %v1590 = vld [vmem:[%s1563 + $0x68] sm:$0xf]
    %v1591 = vld [vmem:[%s1563 + $0x6c] sm:$0xf]
    %v1592 = vld [vmem:[%s1563 + $0x70] sm:$0xf]
    %v1593 = vld [vmem:[%s1563 + $0x74] sm:$0xf]
    %v1594 = vld [vmem:[%s1563 + $0x78] sm:$0xf]
    %v1595 = vld [vmem:[%s1563 + $0x7c] sm:$0xf]
    %v1596 = vld [vmem:[%s1563 + $0x80] sm:$0xf]
    %v1597 = vld [vmem:[%s1563 + $0x84] sm:$0xf]
    %v1598 = vld [vmem:[%s1563 + $0x88] sm:$0xf]
    %v1599 = vld [vmem:[%s1563 + $0x8c] sm:$0xf]
    %v1600 = vld [vmem:[%s1563 + $0x90] sm:$0xf]
    %v1601 = vld [vmem:[%s1563 + $0x94] sm:$0xf]
    %v1602 = vld [vmem:[%s1563 + $0x98] sm:$0xf]
    %v1603 = vld [vmem:[%s1563 + $0x9c] sm:$0xf]
    %v1604 = vld [vmem:[%s1563 + $0xa0] sm:$0xf]
    %v1605 = vld [vmem:[%s1563 + $0xa4] sm:$0xf]
    %v1606 = vld [vmem:[%s1563 + $0xa8] sm:$0xf]
    %v1607 = vld [vmem:[%s1563 + $0xac] sm:$0xf]
    %v1608 = vld [vmem:[%s1563 + $0xb0] sm:$0xf]
    %v1609 = vld [vmem:[%s1563 + $0xb4] sm:$0xf]
    %v1610 = vld [vmem:[%s1563 + $0xb8] sm:$0xf]
    %v1611 = vld [vmem:[%s1563 + $0xbc] sm:$0xf]
    %v1612 = vld [vmem:[%s1563 + $0xc0] sm:$0xf]
    %v1613 = vld [vmem:[%s1563 + $0xc4] sm:$0xf]
    %v1614 = vld [vmem:[%s1563 + $0xc8] sm:$0xf]
    %v1615 = vld [vmem:[%s1563 + $0xcc] sm:$0xf]
    %v1616 = vld [vmem:[%s1563 + $0xd0] sm:$0xf]
    %v1617 = vld [vmem:[%s1563 + $0xd4] sm:$0xf]
    %v1618 = vld [vmem:[%s1563 + $0xd8] sm:$0xf]
    %v1619 = vld [vmem:[%s1563 + $0xdc] sm:$0xf]
    %v1620 = vld [vmem:[%s1563 + $0xe0] sm:$0xf]
    %v1621 = vld [vmem:[%s1563 + $0xe4] sm:$0xf]
    %v1622 = vld [vmem:[%s1563 + $0xe8] sm:$0xf]
    %v1623 = vld [vmem:[%s1563 + $0xec] sm:$0xf]
    %v1624 = vld [vmem:[%s1563 + $0xf0] sm:$0xf]
    %v1625 = vld [vmem:[%s1563 + $0xf4] sm:$0xf]
    %v1626 = vld [vmem:[%s1563 + $0xf8] sm:$0xf]
    %v1627 = vld [vmem:[%s1563 + $0xfc] sm:$0xf]
    %v1628 = vlaneseq
    %v1629 = vshrl.u32 %v1628, 7
    %v1630 = vsub.s32 1, %v1629
    %v1631 = vrot.slane %v1119, %v1630
    %v1696 = vunpack.c.l.b16 %v1564
    %v1697 = vunpack.c.l.b16 %v1565
    %v1698 = vunpack.c.l.b16 %v1566
    %v1699 = vunpack.c.l.b16 %v1567
    %v1700 = vunpack.c.l.b16 %v1568
    %v1701 = vunpack.c.l.b16 %v1569
    %v1702 = vunpack.c.l.b16 %v1570
    %v1703 = vunpack.c.l.b16 %v1571
    %v1704 = vunpack.c.l.b16 %v1572
    %v1705 = vunpack.c.l.b16 %v1573
    %v1706 = vunpack.c.l.b16 %v1574
    %v1707 = vunpack.c.l.b16 %v1575
    %v1708 = vunpack.c.l.b16 %v1576
    %v1709 = vunpack.c.l.b16 %v1577
    %v1710 = vunpack.c.l.b16 %v1578
    %v1711 = vunpack.c.l.b16 %v1579
    %v1712 = vunpack.c.l.b16 %v1580
    %v1713 = vunpack.c.l.b16 %v1581
    %v1714 = vunpack.c.l.b16 %v1582
    %v1715 = vunpack.c.l.b16 %v1583
    %v1716 = vunpack.c.l.b16 %v1584
    %v1717 = vunpack.c.l.b16 %v1585
    %v1718 = vunpack.c.l.b16 %v1586
    %v1719 = vunpack.c.l.b16 %v1587
    %v1720 = vunpack.c.l.b16 %v1588
    %v1721 = vunpack.c.l.b16 %v1589
    %v1722 = vunpack.c.l.b16 %v1590
    %v1723 = vunpack.c.l.b16 %v1591
    %v1724 = vunpack.c.l.b16 %v1592
    %v1725 = vunpack.c.l.b16 %v1593
    %v1726 = vunpack.c.l.b16 %v1594
    %v1727 = vunpack.c.l.b16 %v1595
    %v1728 = vunpack.c.l.b16 %v1596
    %v1729 = vunpack.c.l.b16 %v1597
    %v1730 = vunpack.c.l.b16 %v1598
    %v1731 = vunpack.c.l.b16 %v1599
    %v1732 = vunpack.c.l.b16 %v1600
    %v1733 = vunpack.c.l.b16 %v1601
    %v1734 = vunpack.c.l.b16 %v1602
    %v1735 = vunpack.c.l.b16 %v1603
    %v1736 = vunpack.c.l.b16 %v1604
    %v1737 = vunpack.c.l.b16 %v1605
    %v1738 = vunpack.c.l.b16 %v1606
    %v1739 = vunpack.c.l.b16 %v1607
    %v1740 = vunpack.c.l.b16 %v1608
    %v1741 = vunpack.c.l.b16 %v1609
    %v1742 = vunpack.c.l.b16 %v1610
    %v1743 = vunpack.c.l.b16 %v1611
    %v1744 = vunpack.c.l.b16 %v1612
    %v1745 = vunpack.c.l.b16 %v1613
    %v1746 = vunpack.c.l.b16 %v1614
    %v1747 = vunpack.c.l.b16 %v1615
    %v1748 = vunpack.c.l.b16 %v1616
    %v1749 = vunpack.c.l.b16 %v1617
    %v1750 = vunpack.c.l.b16 %v1618
    %v1751 = vunpack.c.l.b16 %v1619
    %v1752 = vunpack.c.l.b16 %v1620
    %v1753 = vunpack.c.l.b16 %v1621
    %v1754 = vunpack.c.l.b16 %v1622
    %v1755 = vunpack.c.l.b16 %v1623
    %v1756 = vunpack.c.l.b16 %v1624
    %v1757 = vunpack.c.l.b16 %v1625
    %v1758 = vunpack.c.l.b16 %v1626
    %v1759 = vunpack.c.l.b16 %v1627
    %v1760 = vpack.c.b16 %v1697, %v1696
    %v1761 = vpack.c.b16 %v1699, %v1698
    %v1762 = vpack.c.b16 %v1701, %v1700
    %v1763 = vpack.c.b16 %v1703, %v1702
    %v1764 = vpack.c.b16 %v1705, %v1704
    %v1765 = vpack.c.b16 %v1707, %v1706
    %v1766 = vpack.c.b16 %v1709, %v1708
    %v1767 = vpack.c.b16 %v1711, %v1710
    %v1768 = vpack.c.b16 %v1713, %v1712
    %v1769 = vpack.c.b16 %v1715, %v1714
    %v1770 = vpack.c.b16 %v1717, %v1716
    %v1771 = vpack.c.b16 %v1719, %v1718
    %v1772 = vpack.c.b16 %v1721, %v1720
    %v1773 = vpack.c.b16 %v1723, %v1722
    %v1774 = vpack.c.b16 %v1725, %v1724
    %v1775 = vpack.c.b16 %v1727, %v1726
    %v1776 = vpack.c.b16 %v1729, %v1728
    %v1777 = vpack.c.b16 %v1731, %v1730
    %v1778 = vpack.c.b16 %v1733, %v1732
    %v1779 = vpack.c.b16 %v1735, %v1734
    %v1780 = vpack.c.b16 %v1737, %v1736
    %v1781 = vpack.c.b16 %v1739, %v1738
    %v1782 = vpack.c.b16 %v1741, %v1740
    %v1783 = vpack.c.b16 %v1743, %v1742
    %v1784 = vpack.c.b16 %v1745, %v1744
    %v1785 = vpack.c.b16 %v1747, %v1746
    %v1786 = vpack.c.b16 %v1749, %v1748
    %v1787 = vpack.c.b16 %v1751, %v1750
    %v1788 = vpack.c.b16 %v1753, %v1752
    %v1789 = vpack.c.b16 %v1755, %v1754
    %v1790 = vpack.c.b16 %v1757, %v1756
    %v1791 = vpack.c.b16 %v1759, %v1758
    %1824 = vmatprep.subr.bf16.mxu0 0
    %1825 = vmatpush1.bf16.msra.mxu0 %v1760
    %1826 = vmatprep.subr.bf16.mxu0 0
    %1827 = vmatpush1.bf16.msra.mxu0 %v1761
    %1828 = vmatprep.subr.bf16.mxu0 0
    %1829 = vmatpush1.bf16.msra.mxu0 %v1762
    %1830 = vmatprep.subr.bf16.mxu0 0
    %1831 = vmatpush1.bf16.msra.mxu0 %v1763
    %1832 = vmatprep.subr.bf16.mxu0 0
    %1833 = vmatpush1.bf16.msra.mxu0 %v1764
    %1834 = vmatprep.subr.bf16.mxu0 0
    %1835 = vmatpush1.bf16.msra.mxu0 %v1765
    %1836 = vmatprep.subr.bf16.mxu0 0
    %1837 = vmatpush1.bf16.msra.mxu0 %v1766
    %1838 = vmatprep.subr.bf16.mxu0 0
    %1839 = vmatpush1.bf16.msra.mxu0 %v1767
    %1840 = vmatprep.subr.bf16.mxu0 0
    %1841 = vmatpush1.bf16.msra.mxu0 %v1768
    %1842 = vmatprep.subr.bf16.mxu0 0
    %1843 = vmatpush1.bf16.msra.mxu0 %v1769
    %1844 = vmatprep.subr.bf16.mxu0 0
    %1845 = vmatpush1.bf16.msra.mxu0 %v1770
    %1846 = vmatprep.subr.bf16.mxu0 0
    %1847 = vmatpush1.bf16.msra.mxu0 %v1771
    %1848 = vmatprep.subr.bf16.mxu0 0
    %1849 = vmatpush1.bf16.msra.mxu0 %v1772
    %1850 = vmatprep.subr.bf16.mxu0 0
    %1851 = vmatpush1.bf16.msra.mxu0 %v1773
    %1852 = vmatprep.subr.bf16.mxu0 0
    %1853 = vmatpush1.bf16.msra.mxu0 %v1774
    %1854 = vmatprep.subr.bf16.mxu0 0
    %1855 = vmatpush1.bf16.msra.mxu0 %v1775
    %1856 = vmatprep.mubr.f32.mxu0 %v1560
    %1857 = vmatmul.mubr.f32.gmra.mrb[0].mxu0 %v1559
    %v1858 = vpop.f32.mrb[0].mxu0
    %v1859 = vadd.f32 %v1631, %v1858
    %v1860 = vpop.f32.mrb[0].mxu0
    %1861 = vdwg.mxu0
    %1862 = vmatprep.subr.bf16.mxu0 0
    %1863 = vmatpush1.bf16.msra.mxu0 %v1776
    %1864 = vmatprep.subr.bf16.mxu0 0
    %1865 = vmatpush1.bf16.msra.mxu0 %v1777
    %1866 = vmatprep.subr.bf16.mxu0 0
    %1867 = vmatpush1.bf16.msra.mxu0 %v1778
    %1868 = vmatprep.subr.bf16.mxu0 0
    %1869 = vmatpush1.bf16.msra.mxu0 %v1779
    %1870 = vmatprep.subr.bf16.mxu0 0
    %1871 = vmatpush1.bf16.msra.mxu0 %v1780
    %1872 = vmatprep.subr.bf16.mxu0 0
    %1873 = vmatpush1.bf16.msra.mxu0 %v1781
    %1874 = vmatprep.subr.bf16.mxu0 0
    %1875 = vmatpush1.bf16.msra.mxu0 %v1782
    %1876 = vmatprep.subr.bf16.mxu0 0
    %1877 = vmatpush1.bf16.msra.mxu0 %v1783
    %1878 = vmatprep.subr.bf16.mxu0 0
    %1879 = vmatpush1.bf16.msra.mxu0 %v1784
    %1880 = vmatprep.subr.bf16.mxu0 0
    %1881 = vmatpush1.bf16.msra.mxu0 %v1785
    %1882 = vmatprep.subr.bf16.mxu0 0
    %1883 = vmatpush1.bf16.msra.mxu0 %v1786
    %1884 = vmatprep.subr.bf16.mxu0 0
    %1885 = vmatpush1.bf16.msra.mxu0 %v1787
    %1886 = vmatprep.subr.bf16.mxu0 0
    %1887 = vmatpush1.bf16.msra.mxu0 %v1788
    %1888 = vmatprep.subr.bf16.mxu0 0
    %1889 = vmatpush1.bf16.msra.mxu0 %v1789
    %1890 = vmatprep.subr.bf16.mxu0 0
    %1891 = vmatpush1.bf16.msra.mxu0 %v1790
    %1892 = vmatprep.subr.bf16.mxu0 0
    %1893 = vmatpush1.bf16.msra.mxu0 %v1791
    %1894 = vmatprep.mubr.f32.mxu0 %v1562
    %1895 = vmatmul.mubr.f32.gmra.mrb[0].mxu0 %v1561
    %v1896 = vpop.f32.mrb[0].mxu0
    %v1897 = vadd.f32 %v1859, %v1896
    %v1898 = vpop.f32.mrb[0].mxu0
    %1899 = vdwg.mxu0
    %v1900 = vadd.f32 %v1248, %v1897
    %1901 = vadd.xlane.f32.xlu0 %v1900
    %v1902 = vpop.xlane.xlu0 %1901
    %v1903 = vmul.f32 %v1902, %v428
    %v1904 = vsub.f32 %v1900, %v1903
    %v1905 = vmul.f32 %v1904, %v1904
    %1906 = vadd.xlane.f32.xlu0 %v1905
    %v1907 = vpop.xlane.xlu0 %1906
    %v1908 = vmul.f32 %v1907, %v428
    %v1909 = vadd.f32 %v1908, 1e-05
    %v1910 = vrsqrt.pop %v1909
    %v1911 = vmul.f32 %v1904, %v1910
    %v1912 = vlaneseq
    %v1913 = vshrl.u32 %v1912, 7
    %v1914 = vsub.s32 4, %v1913
    %v1915 = vrot.slane %v1119, %v1914
    %v1916 = vmul.f32 %v1911, %v1915
    %v1917 = vlaneseq
    %v1918 = vshrl.u32 %v1917, 7
    %v1919 = vsub.s32 5, %v1918
    %v1920 = vrot.slane %v1119, %v1919
    %v1921 = vadd.f32 %v1916, %v1920
    %s1922 = scalar_lea.vmem %s9, 16
    %v1923 = vld [vmem:[%s1922] sm:$0x3f]
    %s1924 = scalar_lea.vmem [#allocation8], 128
    %v1925 = vld [vmem:[%s1924] sm:$0xf]
    %v1926 = vld [vmem:[%s1924 + $0x4] sm:$0xf]
    %v1927 = vld [vmem:[%s1924 + $0x8] sm:$0xf]
    %v1928 = vld [vmem:[%s1924 + $0xc] sm:$0xf]
    %v1929 = vld [vmem:[%s1924 + $0x10] sm:$0xf]
    %v1930 = vld [vmem:[%s1924 + $0x14] sm:$0xf]
    %v1931 = vld [vmem:[%s1924 + $0x18] sm:$0xf]
    %v1932 = vld [vmem:[%s1924 + $0x1c] sm:$0xf]
    %v1933 = vld [vmem:[%s1924 + $0x20] sm:$0xf]
    %v1934 = vld [vmem:[%s1924 + $0x24] sm:$0xf]
    %v1935 = vld [vmem:[%s1924 + $0x28] sm:$0xf]
    %v1936 = vld [vmem:[%s1924 + $0x2c] sm:$0xf]
    %v1937 = vld [vmem:[%s1924 + $0x30] sm:$0xf]
    %v1938 = vld [vmem:[%s1924 + $0x34] sm:$0xf]
    %v1939 = vld [vmem:[%s1924 + $0x38] sm:$0xf]
    %v1940 = vld [vmem:[%s1924 + $0x3c] sm:$0xf]
    %v1941 = vlaneseq
    %v1942 = vshrl.u32 %v1941, 7
    %v1943 = vsub.s32 0, %v1942
    %v1944 = vrot.slane %v1923, %v1943
    %v1961 = vunpack.c.l.b16 %v1925
    %v1962 = vunpack.c.l.b16 %v1926
    %v1963 = vunpack.c.l.b16 %v1927
    %v1964 = vunpack.c.l.b16 %v1928
    %v1965 = vunpack.c.l.b16 %v1929
    %v1966 = vunpack.c.l.b16 %v1930
    %v1967 = vunpack.c.l.b16 %v1931
    %v1968 = vunpack.c.l.b16 %v1932
    %v1969 = vunpack.c.l.b16 %v1933
    %v1970 = vunpack.c.l.b16 %v1934
    %v1971 = vunpack.c.l.b16 %v1935
    %v1972 = vunpack.c.l.b16 %v1936
    %v1973 = vunpack.c.l.b16 %v1937
    %v1974 = vunpack.c.l.b16 %v1938
    %v1975 = vunpack.c.l.b16 %v1939
    %v1976 = vunpack.c.l.b16 %v1940
    %v1977 = vpack.c.b16 %v1962, %v1961
    %v1978 = vpack.c.b16 %v1964, %v1963
    %v1979 = vpack.c.b16 %v1966, %v1965
    %v1980 = vpack.c.b16 %v1968, %v1967
    %v1981 = vpack.c.b16 %v1970, %v1969
    %v1982 = vpack.c.b16 %v1972, %v1971
    %v1983 = vpack.c.b16 %v1974, %v1973
    %v1984 = vpack.c.b16 %v1976, %v1975
    %1993 = vmatprep.subr.bf16.mxu0 0
    %1994 = vmatpush1.bf16.msra.mxu0 %v1977
    %1995 = vmatprep.subr.bf16.mxu0 0
    %1996 = vmatpush1.bf16.msra.mxu0 %v1978
    %1997 = vmatprep.subr.bf16.mxu0 0
    %1998 = vmatpush1.bf16.msra.mxu0 %v1979
    %1999 = vmatprep.subr.bf16.mxu0 0
    %2000 = vmatpush1.bf16.msra.mxu0 %v1980
    %2001 = vmatprep.subr.bf16.mxu0 0
    %2002 = vmatpush1.bf16.msra.mxu0 %v1981
    %2003 = vmatprep.subr.bf16.mxu0 0
    %2004 = vmatpush1.bf16.msra.mxu0 %v1982
    %2005 = vmatprep.subr.bf16.mxu0 0
    %2006 = vmatpush1.bf16.msra.mxu0 %v1983
    %2007 = vmatprep.subr.bf16.mxu0 0
    %2008 = vmatpush1.bf16.msra.mxu0 %v1984
    %2009 = vmatprep.subr.bf16.mxu0 0
    %2010 = vmatpush1.bf16.msra.mxu0 0
    %2011 = vmatprep.subr.bf16.mxu0 0
    %2012 = vmatpush1.bf16.msra.mxu0 0
    %2013 = vmatprep.subr.bf16.mxu0 0
    %2014 = vmatpush1.bf16.msra.mxu0 0
    %2015 = vmatprep.subr.bf16.mxu0 0
    %2016 = vmatpush1.bf16.msra.mxu0 0
    %2017 = vmatprep.subr.bf16.mxu0 0
    %2018 = vmatpush1.bf16.msra.mxu0 0
    %2019 = vmatprep.subr.bf16.mxu0 0
    %2020 = vmatpush1.bf16.msra.mxu0 0
    %2021 = vmatprep.subr.bf16.mxu0 0
    %2022 = vmatpush1.bf16.msra.mxu0 0
    %2023 = vmatprep.subr.bf16.mxu0 0
    %2024 = vmatpush1.bf16.msra.mxu0 0
    %2025 = vmatprep.mubr.f32.mxu0 0.0
    %2026 = vmatmul.mubr.f32.gmra.mrb[0].mxu0 %v1921
    %v2027 = vpop.f32.mrb[0].mxu0
    %v2028 = vadd.f32 %v1944, %v2027
    %v2029 = vpop.f32.mrb[0].mxu0
    %2030 = vdwg.mxu0
    %v2031 = vadd.f32 %v1921, %v2028
    %2032 = vadd.xlane.f32.xlu0 %v2031
    %v2033 = vpop.xlane.xlu0 %2032
    %v2034 = vmul.f32 %v2033, %v428
    %v2035 = vsub.f32 %v2031, %v2034
    %v2036 = vmul.f32 %v2035, %v2035
    %2037 = vadd.xlane.f32.xlu0 %v2036
    %v2038 = vpop.xlane.xlu0 %2037
    %v2039 = vmul.f32 %v2038, %v428
    %v2040 = vadd.f32 %v2039, 1e-05
    %v2041 = vrsqrt.pop %v2040
    %v2042 = vmul.f32 %v2035, %v2041
    %v2043 = vlaneseq
    %v2044 = vshrl.u32 %v2043, 7
    %v2045 = vsub.s32 2, %v2044
    %v2046 = vrot.slane %v1923, %v2045
    %v2047 = vmul.f32 %v2042, %v2046
    %v2048 = vlaneseq
    %v2049 = vshrl.u32 %v2048, 7
    %v2050 = vsub.s32 3, %v2049
    %v2051 = vrot.slane %v1923, %v2050
    %v2052 = vadd.f32 %v2047, %v2051
    %s2053 = scalar_lea.vmem [#allocation10], 512
    %v2054 = vld [vmem:[%s2053] sm:$0xff]
    %v2055 = vld [vmem:[%s2053 + $0x8] sm:$0xff]
    %v2056 = vld [vmem:[%s2053 + $0x10] sm:$0xff]
    %v2057 = vld [vmem:[%s2053 + $0x18] sm:$0xff]
    %v2058 = vld [vmem:[%s2053 + $0x20] sm:$0xff]
    %v2059 = vld [vmem:[%s2053 + $0x28] sm:$0xff]
    %v2060 = vld [vmem:[%s2053 + $0x30] sm:$0xff]
    %v2061 = vld [vmem:[%s2053 + $0x38] sm:$0xff]
    %v2062 = vld [vmem:[%s2053 + $0x40] sm:$0xff]
    %v2063 = vld [vmem:[%s2053 + $0x48] sm:$0xff]
    %v2064 = vld [vmem:[%s2053 + $0x50] sm:$0xff]
    %v2065 = vld [vmem:[%s2053 + $0x58] sm:$0xff]
    %v2066 = vld [vmem:[%s2053 + $0x60] sm:$0xff]
    %v2067 = vld [vmem:[%s2053 + $0x68] sm:$0xff]
    %v2068 = vld [vmem:[%s2053 + $0x70] sm:$0xff]
    %v2069 = vld [vmem:[%s2053 + $0x78] sm:$0xff]
    %v2070 = vld [vmem:[%s2053 + $0x80] sm:$0xff]
    %v2071 = vld [vmem:[%s2053 + $0x88] sm:$0xff]
    %v2072 = vld [vmem:[%s2053 + $0x90] sm:$0xff]
    %v2073 = vld [vmem:[%s2053 + $0x98] sm:$0xff]
    %v2074 = vld [vmem:[%s2053 + $0xa0] sm:$0xff]
    %v2075 = vld [vmem:[%s2053 + $0xa8] sm:$0xff]
    %v2076 = vld [vmem:[%s2053 + $0xb0] sm:$0xff]
    %v2077 = vld [vmem:[%s2053 + $0xb8] sm:$0xff]
    %v2078 = vld [vmem:[%s2053 + $0xc0] sm:$0xff]
    %v2079 = vld [vmem:[%s2053 + $0xc8] sm:$0xff]
    %v2080 = vld [vmem:[%s2053 + $0xd0] sm:$0xff]
    %v2081 = vld [vmem:[%s2053 + $0xd8] sm:$0xff]
    %v2082 = vld [vmem:[%s2053 + $0xe0] sm:$0xff]
    %v2083 = vld [vmem:[%s2053 + $0xe8] sm:$0xff]
    %v2084 = vld [vmem:[%s2053 + $0xf0] sm:$0xff]
    %v2085 = vld [vmem:[%s2053 + $0xf8] sm:$0xff]
    %s2086 = scalar_lea.vmem [#allocation11], 8
    %v2087 = vld [vmem:[%s2086] sm:$0xf]
    %v2089 = vlaneseq
    %v2090 = vshrl.u32 %v2089, 7
    %v2091 = vsub.s32 0, %v2090
    %v2092 = vrot.slane %v2087, %v2091
    %v2093 = vlaneseq
    %v2094 = vshrl.u32 %v2093, 7
    %v2095 = vsub.s32 1, %v2094
    %v2096 = vrot.slane %v2087, %v2095
    %v2097 = vlaneseq
    %v2098 = vshrl.u32 %v2097, 7
    %v2099 = vsub.s32 2, %v2098
    %v2100 = vrot.slane %v2087, %v2099
    %v2101 = vlaneseq
    %v2102 = vshrl.u32 %v2101, 7
    %v2103 = vsub.s32 3, %v2102
    %v2104 = vrot.slane %v2087, %v2103
    %v2141 = vunpack.c.l.b16 %v2054
    %v2142 = vunpack.c.h.b16 %v2054
    %v2143 = vunpack.c.l.b16 %v2055
    %v2144 = vunpack.c.h.b16 %v2055
    %v2145 = vunpack.c.l.b16 %v2056
    %v2146 = vunpack.c.h.b16 %v2056
    %v2147 = vunpack.c.l.b16 %v2057
    %v2148 = vunpack.c.h.b16 %v2057
    %v2149 = vunpack.c.l.b16 %v2058
    %v2150 = vunpack.c.h.b16 %v2058
    %v2151 = vunpack.c.l.b16 %v2059
    %v2152 = vunpack.c.h.b16 %v2059
    %v2153 = vunpack.c.l.b16 %v2060
    %v2154 = vunpack.c.h.b16 %v2060
    %v2155 = vunpack.c.l.b16 %v2061
    %v2156 = vunpack.c.h.b16 %v2061
    %v2157 = vunpack.c.l.b16 %v2062
    %v2158 = vunpack.c.h.b16 %v2062
    %v2159 = vunpack.c.l.b16 %v2063
    %v2160 = vunpack.c.h.b16 %v2063
    %v2161 = vunpack.c.l.b16 %v2064
    %v2162 = vunpack.c.h.b16 %v2064
    %v2163 = vunpack.c.l.b16 %v2065
    %v2164 = vunpack.c.h.b16 %v2065
    %v2165 = vunpack.c.l.b16 %v2066
    %v2166 = vunpack.c.h.b16 %v2066
    %v2167 = vunpack.c.l.b16 %v2067
    %v2168 = vunpack.c.h.b16 %v2067
    %v2169 = vunpack.c.l.b16 %v2068
    %v2170 = vunpack.c.h.b16 %v2068
    %v2171 = vunpack.c.l.b16 %v2069
    %v2172 = vunpack.c.h.b16 %v2069
    %v2173 = vunpack.c.l.b16 %v2070
    %v2174 = vunpack.c.h.b16 %v2070
    %v2175 = vunpack.c.l.b16 %v2071
    %v2176 = vunpack.c.h.b16 %v2071
    %v2177 = vunpack.c.l.b16 %v2072
    %v2178 = vunpack.c.h.b16 %v2072
    %v2179 = vunpack.c.l.b16 %v2073
    %v2180 = vunpack.c.h.b16 %v2073
    %v2181 = vunpack.c.l.b16 %v2074
    %v2182 = vunpack.c.h.b16 %v2074
    %v2183 = vunpack.c.l.b16 %v2075
    %v2184 = vunpack.c.h.b16 %v2075
    %v2185 = vunpack.c.l.b16 %v2076
    %v2186 = vunpack.c.h.b16 %v2076
    %v2187 = vunpack.c.l.b16 %v2077
    %v2188 = vunpack.c.h.b16 %v2077
    %v2189 = vunpack.c.l.b16 %v2078
    %v2190 = vunpack.c.h.b16 %v2078
    %v2191 = vunpack.c.l.b16 %v2079
    %v2192 = vunpack.c.h.b16 %v2079
    %v2193 = vunpack.c.l.b16 %v2080
    %v2194 = vunpack.c.h.b16 %v2080
    %v2195 = vunpack.c.l.b16 %v2081
    %v2196 = vunpack.c.h.b16 %v2081
    %v2197 = vunpack.c.l.b16 %v2082
    %v2198 = vunpack.c.h.b16 %v2082
    %v2199 = vunpack.c.l.b16 %v2083
    %v2200 = vunpack.c.h.b16 %v2083
    %v2201 = vunpack.c.l.b16 %v2084
    %v2202 = vunpack.c.h.b16 %v2084
    %v2203 = vunpack.c.l.b16 %v2085
    %v2204 = vunpack.c.h.b16 %v2085
    %v2205 = vpack.c.b16 %v2145, %v2141
    %v2206 = vpack.c.b16 %v2146, %v2142
    %v2207 = vpack.c.b16 %v2147, %v2143
    %v2208 = vpack.c.b16 %v2148, %v2144
    %v2209 = vpack.c.b16 %v2153, %v2149
    %v2210 = vpack.c.b16 %v2154, %v2150
    %v2211 = vpack.c.b16 %v2155, %v2151
    %v2212 = vpack.c.b16 %v2156, %v2152
    %v2213 = vpack.c.b16 %v2161, %v2157
    %v2214 = vpack.c.b16 %v2162, %v2158
    %v2215 = vpack.c.b16 %v2163, %v2159
    %v2216 = vpack.c.b16 %v2164, %v2160
    %v2217 = vpack.c.b16 %v2169, %v2165
    %v2218 = vpack.c.b16 %v2170, %v2166
    %v2219 = vpack.c.b16 %v2171, %v2167
    %v2220 = vpack.c.b16 %v2172, %v2168
    %v2221 = vpack.c.b16 %v2177, %v2173
    %v2222 = vpack.c.b16 %v2178, %v2174
    %v2223 = vpack.c.b16 %v2179, %v2175
    %v2224 = vpack.c.b16 %v2180, %v2176
    %v2225 = vpack.c.b16 %v2185, %v2181
    %v2226 = vpack.c.b16 %v2186, %v2182
    %v2227 = vpack.c.b16 %v2187, %v2183
    %v2228 = vpack.c.b16 %v2188, %v2184
    %v2229 = vpack.c.b16 %v2193, %v2189
    %v2230 = vpack.c.b16 %v2194, %v2190
    %v2231 = vpack.c.b16 %v2195, %v2191
    %v2232 = vpack.c.b16 %v2196, %v2192
    %v2233 = vpack.c.b16 %v2201, %v2197
    %v2234 = vpack.c.b16 %v2202, %v2198
    %v2235 = vpack.c.b16 %v2203, %v2199
    %v2236 = vpack.c.b16 %v2204, %v2200
    %2269 = vmatprep.subr.bf16.mxu0 %v2206
    %2270 = vmatpush1.bf16.msra.mxu0 %v2205
    %2271 = vmatprep.subr.bf16.mxu0 %v2210
    %2272 = vmatpush1.bf16.msra.mxu0 %v2209
    %2273 = vmatprep.subr.bf16.mxu0 %v2214
    %2274 = vmatpush1.bf16.msra.mxu0 %v2213
    %2275 = vmatprep.subr.bf16.mxu0 %v2218
    %2276 = vmatpush1.bf16.msra.mxu0 %v2217
    %2277 = vmatprep.subr.bf16.mxu0 %v2222
    %2278 = vmatpush1.bf16.msra.mxu0 %v2221
    %2279 = vmatprep.subr.bf16.mxu0 %v2226
    %2280 = vmatpush1.bf16.msra.mxu0 %v2225
    %2281 = vmatprep.subr.bf16.mxu0 %v2230
    %2282 = vmatpush1.bf16.msra.mxu0 %v2229
    %2283 = vmatprep.subr.bf16.mxu0 %v2234
    %2284 = vmatpush1.bf16.msra.mxu0 %v2233
    %2285 = vmatprep.subr.bf16.mxu0 0
    %2286 = vmatpush1.bf16.msra.mxu0 0
    %2287 = vmatprep.subr.bf16.mxu0 0
    %2288 = vmatpush1.bf16.msra.mxu0 0
    %2289 = vmatprep.subr.bf16.mxu0 0
    %2290 = vmatpush1.bf16.msra.mxu0 0
    %2291 = vmatprep.subr.bf16.mxu0 0
    %2292 = vmatpush1.bf16.msra.mxu0 0
    %2293 = vmatprep.subr.bf16.mxu0 0
    %2294 = vmatpush1.bf16.msra.mxu0 0
    %2295 = vmatprep.subr.bf16.mxu0 0
    %2296 = vmatpush1.bf16.msra.mxu0 0
    %2297 = vmatprep.subr.bf16.mxu0 0
    %2298 = vmatpush1.bf16.msra.mxu0 0
    %2299 = vmatprep.subr.bf16.mxu0 0
    %2300 = vmatpush1.bf16.msra.mxu0 0
    %2301 = vmatprep.mubr.f32.mxu0 0.0
    %2302 = vmatmul.mubr.f32.gmra.mrb[0].mxu0 %v2052
    %v2303 = vpop.f32.mrb[0].mxu0
    %v2304 = vadd.f32 %v2092, %v2303
    %v2305 = vpop.f32.mrb[0].mxu0
    %v2306 = vadd.f32 %v2096, %v2305
    %2307 = vdwg.mxu0
    %2308 = vmatprep.subr.bf16.mxu0 %v2208
    %2309 = vmatpush1.bf16.msra.mxu0 %v2207
    %2310 = vmatprep.subr.bf16.mxu0 %v2212
    %2311 = vmatpush1.bf16.msra.mxu0 %v2211
    %2312 = vmatprep.subr.bf16.mxu0 %v2216
    %2313 = vmatpush1.bf16.msra.mxu0 %v2215
    %2314 = vmatprep.subr.bf16.mxu0 %v2220
    %2315 = vmatpush1.bf16.msra.mxu0 %v2219
    %2316 = vmatprep.subr.bf16.mxu0 %v2224
    %2317 = vmatpush1.bf16.msra.mxu0 %v2223
    %2318 = vmatprep.subr.bf16.mxu0 %v2228
    %2319 = vmatpush1.bf16.msra.mxu0 %v2227
    %2320 = vmatprep.subr.bf16.mxu0 %v2232
    %2321 = vmatpush1.bf16.msra.mxu0 %v2231
    %2322 = vmatprep.subr.bf16.mxu0 %v2236
    %2323 = vmatpush1.bf16.msra.mxu0 %v2235
    %2324 = vmatprep.subr.bf16.mxu0 0
    %2325 = vmatpush1.bf16.msra.mxu0 0
    %2326 = vmatprep.subr.bf16.mxu0 0
    %2327 = vmatpush1.bf16.msra.mxu0 0
    %2328 = vmatprep.subr.bf16.mxu0 0
    %2329 = vmatpush1.bf16.msra.mxu0 0
    %2330 = vmatprep.subr.bf16.mxu0 0
    %2331 = vmatpush1.bf16.msra.mxu0 0
    %2332 = vmatprep.subr.bf16.mxu0 0
    %2333 = vmatpush1.bf16.msra.mxu0 0
    %2334 = vmatprep.subr.bf16.mxu0 0
    %2335 = vmatpush1.bf16.msra.mxu0 0
    %2336 = vmatprep.subr.bf16.mxu0 0
    %2337 = vmatpush1.bf16.msra.mxu0 0
    %2338 = vmatprep.subr.bf16.mxu0 0
    %2339 = vmatpush1.bf16.msra.mxu0 0
    %2340 = vmatprep.mubr.f32.mxu0 0.0
    %2341 = vmatmul.mubr.f32.gmra.mrb[0].mxu0 %v2052
    %v2342 = vpop.f32.mrb[0].mxu0
    %v2343 = vadd.f32 %v2100, %v2342
    %v2344 = vpop.f32.mrb[0].mxu0
    %v2345 = vadd.f32 %v2104, %v2344
    %2346 = vdwg.mxu0
    %v2347 = vmul.f32 %v2304, 0.5
    %v2348 = vmul.f32 %v2306, 0.5
    %v2349 = vmul.f32 %v2343, 0.5
    %v2350 = vmul.f32 %v2345, 0.5
    %v2351 = vmul.f32 %v2304, 0.70710677
    %v2352 = vmul.f32 %v2306, 0.70710677
    %v2353 = vmul.f32 %v2343, 0.70710677
    %v2354 = vmul.f32 %v2345, 0.70710677
    %v2355 = verf.f32.pop %v2351
    %v2356 = verf.f32.pop %v2352
    %v2357 = verf.f32.pop %v2353
    %v2358 = verf.f32.pop %v2354
    %v2359 = vadd.f32 %v2355, 1.0
    %v2360 = vadd.f32 %v2356, 1.0
    %v2361 = vadd.f32 %v2357, 1.0
    %v2362 = vadd.f32 %v2358, 1.0
    %v2363 = vmul.f32 %v2347, %v2359
    %v2364 = vmul.f32 %v2348, %v2360
    %v2365 = vmul.f32 %v2349, %v2361
    %v2366 = vmul.f32 %v2350, %v2362
    %s2367 = scalar_lea.vmem [#allocation13], 512
    %v2368 = vld [vmem:[%s2367] sm:$0xf]
    %v2369 = vld [vmem:[%s2367 + $0x4] sm:$0xf]
    %v2370 = vld [vmem:[%s2367 + $0x8] sm:$0xf]
    %v2371 = vld [vmem:[%s2367 + $0xc] sm:$0xf]
    %v2372 = vld [vmem:[%s2367 + $0x10] sm:$0xf]
    %v2373 = vld [vmem:[%s2367 + $0x14] sm:$0xf]
    %v2374 = vld [vmem:[%s2367 + $0x18] sm:$0xf]
    %v2375 = vld [vmem:[%s2367 + $0x1c] sm:$0xf]
    %v2376 = vld [vmem:[%s2367 + $0x20] sm:$0xf]
    %v2377 = vld [vmem:[%s2367 + $0x24] sm:$0xf]
    %v2378 = vld [vmem:[%s2367 + $0x28] sm:$0xf]
    %v2379 = vld [vmem:[%s2367 + $0x2c] sm:$0xf]
    %v2380 = vld [vmem:[%s2367 + $0x30] sm:$0xf]
    %v2381 = vld [vmem:[%s2367 + $0x34] sm:$0xf]
    %v2382 = vld [vmem:[%s2367 + $0x38] sm:$0xf]
    %v2383 = vld [vmem:[%s2367 + $0x3c] sm:$0xf]
    %v2384 = vld [vmem:[%s2367 + $0x40] sm:$0xf]
    %v2385 = vld [vmem:[%s2367 + $0x44] sm:$0xf]
    %v2386 = vld [vmem:[%s2367 + $0x48] sm:$0xf]
    %v2387 = vld [vmem:[%s2367 + $0x4c] sm:$0xf]
    %v2388 = vld [vmem:[%s2367 + $0x50] sm:$0xf]
    %v2389 = vld [vmem:[%s2367 + $0x54] sm:$0xf]
    %v2390 = vld [vmem:[%s2367 + $0x58] sm:$0xf]
    %v2391 = vld [vmem:[%s2367 + $0x5c] sm:$0xf]
    %v2392 = vld [vmem:[%s2367 + $0x60] sm:$0xf]
    %v2393 = vld [vmem:[%s2367 + $0x64] sm:$0xf]
    %v2394 = vld [vmem:[%s2367 + $0x68] sm:$0xf]
    %v2395 = vld [vmem:[%s2367 + $0x6c] sm:$0xf]
    %v2396 = vld [vmem:[%s2367 + $0x70] sm:$0xf]
    %v2397 = vld [vmem:[%s2367 + $0x74] sm:$0xf]
    %v2398 = vld [vmem:[%s2367 + $0x78] sm:$0xf]
    %v2399 = vld [vmem:[%s2367 + $0x7c] sm:$0xf]
    %v2400 = vld [vmem:[%s2367 + $0x80] sm:$0xf]
    %v2401 = vld [vmem:[%s2367 + $0x84] sm:$0xf]
    %v2402 = vld [vmem:[%s2367 + $0x88] sm:$0xf]
    %v2403 = vld [vmem:[%s2367 + $0x8c] sm:$0xf]
    %v2404 = vld [vmem:[%s2367 + $0x90] sm:$0xf]
    %v2405 = vld [vmem:[%s2367 + $0x94] sm:$0xf]
    %v2406 = vld [vmem:[%s2367 + $0x98] sm:$0xf]
    %v2407 = vld [vmem:[%s2367 + $0x9c] sm:$0xf]
    %v2408 = vld [vmem:[%s2367 + $0xa0] sm:$0xf]
    %v2409 = vld [vmem:[%s2367 + $0xa4] sm:$0xf]
    %v2410 = vld [vmem:[%s2367 + $0xa8] sm:$0xf]
    %v2411 = vld [vmem:[%s2367 + $0xac] sm:$0xf]
    %v2412 = vld [vmem:[%s2367 + $0xb0] sm:$0xf]
    %v2413 = vld [vmem:[%s2367 + $0xb4] sm:$0xf]
    %v2414 = vld [vmem:[%s2367 + $0xb8] sm:$0xf]
    %v2415 = vld [vmem:[%s2367 + $0xbc] sm:$0xf]
    %v2416 = vld [vmem:[%s2367 + $0xc0] sm:$0xf]
    %v2417 = vld [vmem:[%s2367 + $0xc4] sm:$0xf]
    %v2418 = vld [vmem:[%s2367 + $0xc8] sm:$0xf]
    %v2419 = vld [vmem:[%s2367 + $0xcc] sm:$0xf]
    %v2420 = vld [vmem:[%s2367 + $0xd0] sm:$0xf]
    %v2421 = vld [vmem:[%s2367 + $0xd4] sm:$0xf]
    %v2422 = vld [vmem:[%s2367 + $0xd8] sm:$0xf]
    %v2423 = vld [vmem:[%s2367 + $0xdc] sm:$0xf]
    %v2424 = vld [vmem:[%s2367 + $0xe0] sm:$0xf]
    %v2425 = vld [vmem:[%s2367 + $0xe4] sm:$0xf]
    %v2426 = vld [vmem:[%s2367 + $0xe8] sm:$0xf]
    %v2427 = vld [vmem:[%s2367 + $0xec] sm:$0xf]
    %v2428 = vld [vmem:[%s2367 + $0xf0] sm:$0xf]
    %v2429 = vld [vmem:[%s2367 + $0xf4] sm:$0xf]
    %v2430 = vld [vmem:[%s2367 + $0xf8] sm:$0xf]
    %v2431 = vld [vmem:[%s2367 + $0xfc] sm:$0xf]
    %v2432 = vlaneseq
    %v2433 = vshrl.u32 %v2432, 7
    %v2434 = vsub.s32 1, %v2433
    %v2435 = vrot.slane %v1923, %v2434
    %v2500 = vunpack.c.l.b16 %v2368
    %v2501 = vunpack.c.l.b16 %v2369
    %v2502 = vunpack.c.l.b16 %v2370
    %v2503 = vunpack.c.l.b16 %v2371
    %v2504 = vunpack.c.l.b16 %v2372
    %v2505 = vunpack.c.l.b16 %v2373
    %v2506 = vunpack.c.l.b16 %v2374
    %v2507 = vunpack.c.l.b16 %v2375
    %v2508 = vunpack.c.l.b16 %v2376
    %v2509 = vunpack.c.l.b16 %v2377
    %v2510 = vunpack.c.l.b16 %v2378
    %v2511 = vunpack.c.l.b16 %v2379
    %v2512 = vunpack.c.l.b16 %v2380
    %v2513 = vunpack.c.l.b16 %v2381
    %v2514 = vunpack.c.l.b16 %v2382
    %v2515 = vunpack.c.l.b16 %v2383
    %v2516 = vunpack.c.l.b16 %v2384
    %v2517 = vunpack.c.l.b16 %v2385
    %v2518 = vunpack.c.l.b16 %v2386
    %v2519 = vunpack.c.l.b16 %v2387
    %v2520 = vunpack.c.l.b16 %v2388
    %v2521 = vunpack.c.l.b16 %v2389
    %v2522 = vunpack.c.l.b16 %v2390
    %v2523 = vunpack.c.l.b16 %v2391
    %v2524 = vunpack.c.l.b16 %v2392
    %v2525 = vunpack.c.l.b16 %v2393
    %v2526 = vunpack.c.l.b16 %v2394
    %v2527 = vunpack.c.l.b16 %v2395
    %v2528 = vunpack.c.l.b16 %v2396
    %v2529 = vunpack.c.l.b16 %v2397
    %v2530 = vunpack.c.l.b16 %v2398
    %v2531 = vunpack.c.l.b16 %v2399
    %v2532 = vunpack.c.l.b16 %v2400
    %v2533 = vunpack.c.l.b16 %v2401
    %v2534 = vunpack.c.l.b16 %v2402
    %v2535 = vunpack.c.l.b16 %v2403
    %v2536 = vunpack.c.l.b16 %v2404
    %v2537 = vunpack.c.l.b16 %v2405
    %v2538 = vunpack.c.l.b16 %v2406
    %v2539 = vunpack.c.l.b16 %v2407
    %v2540 = vunpack.c.l.b16 %v2408
    %v2541 = vunpack.c.l.b16 %v2409
    %v2542 = vunpack.c.l.b16 %v2410
    %v2543 = vunpack.c.l.b16 %v2411
    %v2544 = vunpack.c.l.b16 %v2412
    %v2545 = vunpack.c.l.b16 %v2413
    %v2546 = vunpack.c.l.b16 %v2414
    %v2547 = vunpack.c.l.b16 %v2415
    %v2548 = vunpack.c.l.b16 %v2416
    %v2549 = vunpack.c.l.b16 %v2417
    %v2550 = vunpack.c.l.b16 %v2418
    %v2551 = vunpack.c.l.b16 %v2419
    %v2552 = vunpack.c.l.b16 %v2420
    %v2553 = vunpack.c.l.b16 %v2421
    %v2554 = vunpack.c.l.b16 %v2422
    %v2555 = vunpack.c.l.b16 %v2423
    %v2556 = vunpack.c.l.b16 %v2424
    %v2557 = vunpack.c.l.b16 %v2425
    %v2558 = vunpack.c.l.b16 %v2426
    %v2559 = vunpack.c.l.b16 %v2427
    %v2560 = vunpack.c.l.b16 %v2428
    %v2561 = vunpack.c.l.b16 %v2429
    %v2562 = vunpack.c.l.b16 %v2430
    %v2563 = vunpack.c.l.b16 %v2431
    %v2564 = vpack.c.b16 %v2501, %v2500
    %v2565 = vpack.c.b16 %v2503, %v2502
    %v2566 = vpack.c.b16 %v2505, %v2504
    %v2567 = vpack.c.b16 %v2507, %v2506
    %v2568 = vpack.c.b16 %v2509, %v2508
    %v2569 = vpack.c.b16 %v2511, %v2510
    %v2570 = vpack.c.b16 %v2513, %v2512
    %v2571 = vpack.c.b16 %v2515, %v2514
    %v2572 = vpack.c.b16 %v2517, %v2516
    %v2573 = vpack.c.b16 %v2519, %v2518
    %v2574 = vpack.c.b16 %v2521, %v2520
    %v2575 = vpack.c.b16 %v2523, %v2522
    %v2576 = vpack.c.b16 %v2525, %v2524
    %v2577 = vpack.c.b16 %v2527, %v2526
    %v2578 = vpack.c.b16 %v2529, %v2528
    %v2579 = vpack.c.b16 %v2531, %v2530
    %v2580 = vpack.c.b16 %v2533, %v2532
    %v2581 = vpack.c.b16 %v2535, %v2534
    %v2582 = vpack.c.b16 %v2537, %v2536
    %v2583 = vpack.c.b16 %v2539, %v2538
    %v2584 = vpack.c.b16 %v2541, %v2540
    %v2585 = vpack.c.b16 %v2543, %v2542
    %v2586 = vpack.c.b16 %v2545, %v2544
    %v2587 = vpack.c.b16 %v2547, %v2546
    %v2588 = vpack.c.b16 %v2549, %v2548
    %v2589 = vpack.c.b16 %v2551, %v2550
    %v2590 = vpack.c.b16 %v2553, %v2552
    %v2591 = vpack.c.b16 %v2555, %v2554
    %v2592 = vpack.c.b16 %v2557, %v2556
    %v2593 = vpack.c.b16 %v2559, %v2558
    %v2594 = vpack.c.b16 %v2561, %v2560
    %v2595 = vpack.c.b16 %v2563, %v2562
    %2628 = vmatprep.subr.bf16.mxu0 0
    %2629 = vmatpush1.bf16.msra.mxu0 %v2564
    %2630 = vmatprep.subr.bf16.mxu0 0
    %2631 = vmatpush1.bf16.msra.mxu0 %v2565
    %2632 = vmatprep.subr.bf16.mxu0 0
    %2633 = vmatpush1.bf16.msra.mxu0 %v2566
    %2634 = vmatprep.subr.bf16.mxu0 0
    %2635 = vmatpush1.bf16.msra.mxu0 %v2567
    %2636 = vmatprep.subr.bf16.mxu0 0
    %2637 = vmatpush1.bf16.msra.mxu0 %v2568
    %2638 = vmatprep.subr.bf16.mxu0 0
    %2639 = vmatpush1.bf16.msra.mxu0 %v2569
    %2640 = vmatprep.subr.bf16.mxu0 0
    %2641 = vmatpush1.bf16.msra.mxu0 %v2570
    %2642 = vmatprep.subr.bf16.mxu0 0
    %2643 = vmatpush1.bf16.msra.mxu0 %v2571
    %2644 = vmatprep.subr.bf16.mxu0 0
    %2645 = vmatpush1.bf16.msra.mxu0 %v2572
    %2646 = vmatprep.subr.bf16.mxu0 0
    %2647 = vmatpush1.bf16.msra.mxu0 %v2573
    %2648 = vmatprep.subr.bf16.mxu0 0
    %2649 = vmatpush1.bf16.msra.mxu0 %v2574
    %2650 = vmatprep.subr.bf16.mxu0 0
    %2651 = vmatpush1.bf16.msra.mxu0 %v2575
    %2652 = vmatprep.subr.bf16.mxu0 0
    %2653 = vmatpush1.bf16.msra.mxu0 %v2576
    %2654 = vmatprep.subr.bf16.mxu0 0
    %2655 = vmatpush1.bf16.msra.mxu0 %v2577
    %2656 = vmatprep.subr.bf16.mxu0 0
    %2657 = vmatpush1.bf16.msra.mxu0 %v2578
    %2658 = vmatprep.subr.bf16.mxu0 0
    %2659 = vmatpush1.bf16.msra.mxu0 %v2579
    %2660 = vmatprep.mubr.f32.mxu0 %v2364
    %2661 = vmatmul.mubr.f32.gmra.mrb[0].mxu0 %v2363
    %v2662 = vpop.f32.mrb[0].mxu0
    %v2663 = vadd.f32 %v2435, %v2662
    %v2664 = vpop.f32.mrb[0].mxu0
    %2665 = vdwg.mxu0
    %2666 = vmatprep.subr.bf16.mxu0 0
    %2667 = vmatpush1.bf16.msra.mxu0 %v2580
    %2668 = vmatprep.subr.bf16.mxu0 0
    %2669 = vmatpush1.bf16.msra.mxu0 %v2581
    %2670 = vmatprep.subr.bf16.mxu0 0
    %2671 = vmatpush1.bf16.msra.mxu0 %v2582
    %2672 = vmatprep.subr.bf16.mxu0 0
    %2673 = vmatpush1.bf16.msra.mxu0 %v2583
    %2674 = vmatprep.subr.bf16.mxu0 0
    %2675 = vmatpush1.bf16.msra.mxu0 %v2584
    %2676 = vmatprep.subr.bf16.mxu0 0
    %2677 = vmatpush1.bf16.msra.mxu0 %v2585
    %2678 = vmatprep.subr.bf16.mxu0 0
    %2679 = vmatpush1.bf16.msra.mxu0 %v2586
    %2680 = vmatprep.subr.bf16.mxu0 0
    %2681 = vmatpush1.bf16.msra.mxu0 %v2587
    %2682 = vmatprep.subr.bf16.mxu0 0
    %2683 = vmatpush1.bf16.msra.mxu0 %v2588
    %2684 = vmatprep.subr.bf16.mxu0 0
    %2685 = vmatpush1.bf16.msra.mxu0 %v2589
    %2686 = vmatprep.subr.bf16.mxu0 0
    %2687 = vmatpush1.bf16.msra.mxu0 %v2590
    %2688 = vmatprep.subr.bf16.mxu0 0
    %2689 = vmatpush1.bf16.msra.mxu0 %v2591
    %2690 = vmatprep.subr.bf16.mxu0 0
    %2691 = vmatpush1.bf16.msra.mxu0 %v2592
    %2692 = vmatprep.subr.bf16.mxu0 0
    %2693 = vmatpush1.bf16.msra.mxu0 %v2593
    %2694 = vmatprep.subr.bf16.mxu0 0
    %2695 = vmatpush1.bf16.msra.mxu0 %v2594
    %2696 = vmatprep.subr.bf16.mxu0 0
    %2697 = vmatpush1.bf16.msra.mxu0 %v2595
    %2698 = vmatprep.mubr.f32.mxu0 %v2366
    %2699 = vmatmul.mubr.f32.gmra.mrb[0].mxu0 %v2365
    %v2700 = vpop.f32.mrb[0].mxu0
    %v2701 = vadd.f32 %v2663, %v2700
    %v2702 = vpop.f32.mrb[0].mxu0
    %2703 = vdwg.mxu0
    %v2704 = vadd.f32 %v2052, %v2701
    %2705 = vadd.xlane.f32.xlu0 %v2704
    %v2706 = vpop.xlane.xlu0 %2705
    %v2707 = vmul.f32 %v2706, %v428
    %v2708 = vsub.f32 %v2704, %v2707
    %v2709 = vmul.f32 %v2708, %v2708
    %2710 = vadd.xlane.f32.xlu0 %v2709
    %v2711 = vpop.xlane.xlu0 %2710
    %v2712 = vmul.f32 %v2711, %v428
    %v2713 = vadd.f32 %v2712, 1e-05
    %v2714 = vrsqrt.pop %v2713
    %v2715 = vmul.f32 %v2708, %v2714
    %v2716 = vlaneseq
    %v2717 = vshrl.u32 %v2716, 7
    %v2718 = vsub.s32 4, %v2717
    %v2719 = vrot.slane %v1923, %v2718
    %v2720 = vmul.f32 %v2715, %v2719
    %v2721 = vlaneseq
    %v2722 = vshrl.u32 %v2721, 7
    %v2723 = vsub.s32 5, %v2722
    %v2724 = vrot.slane %v1923, %v2723
    %v2725 = vadd.f32 %v2720, %v2724
    %s2726 = scalar_lea.vmem %s9, 24
    %v2727 = vld [vmem:[%s2726] sm:$0x3f]
    %s2728 = scalar_lea.vmem [#allocation8], 192
    %v2729 = vld [vmem:[%s2728] sm:$0xf]
    %v2730 = vld [vmem:[%s2728 + $0x4] sm:$0xf]
    %v2731 = vld [vmem:[%s2728 + $0x8] sm:$0xf]
    %v2732 = vld [vmem:[%s2728 + $0xc] sm:$0xf]
    %v2733 = vld [vmem:[%s2728 + $0x10] sm:$0xf]
    %v2734 = vld [vmem:[%s2728 + $0x14] sm:$0xf]
    %v2735 = vld [vmem:[%s2728 + $0x18] sm:$0xf]
    %v2736 = vld [vmem:[%s2728 + $0x1c] sm:$0xf]
    %v2737 = vld [vmem:[%s2728 + $0x20] sm:$0xf]
    %v2738 = vld [vmem:[%s2728 + $0x24] sm:$0xf]
    %v2739 = vld [vmem:[%s2728 + $0x28] sm:$0xf]
    %v2740 = vld [vmem:[%s2728 + $0x2c] sm:$0xf]
    %v2741 = vld [vmem:[%s2728 + $0x30] sm:$0xf]
    %v2742 = vld [vmem:[%s2728 + $0x34] sm:$0xf]
    %v2743 = vld [vmem:[%s2728 + $0x38] sm:$0xf]
    %v2744 = vld [vmem:[%s2728 + $0x3c] sm:$0xf]
    %v2745 = vlaneseq
    %v2746 = vshrl.u32 %v2745, 7
    %v2747 = vsub.s32 0, %v2746
    %v2748 = vrot.slane %v2727, %v2747
    %v2765 = vunpack.c.l.b16 %v2729
    %v2766 = vunpack.c.l.b16 %v2730
    %v2767 = vunpack.c.l.b16 %v2731
    %v2768 = vunpack.c.l.b16 %v2732
    %v2769 = vunpack.c.l.b16 %v2733
    %v2770 = vunpack.c.l.b16 %v2734
    %v2771 = vunpack.c.l.b16 %v2735
    %v2772 = vunpack.c.l.b16 %v2736
    %v2773 = vunpack.c.l.b16 %v2737
    %v2774 = vunpack.c.l.b16 %v2738
    %v2775 = vunpack.c.l.b16 %v2739
    %v2776 = vunpack.c.l.b16 %v2740
    %v2777 = vunpack.c.l.b16 %v2741
    %v2778 = vunpack.c.l.b16 %v2742
    %v2779 = vunpack.c.l.b16 %v2743
    %v2780 = vunpack.c.l.b16 %v2744
    %v2781 = vpack.c.b16 %v2766, %v2765
    %v2782 = vpack.c.b16 %v2768, %v2767
    %v2783 = vpack.c.b16 %v2770, %v2769
    %v2784 = vpack.c.b16 %v2772, %v2771
    %v2785 = vpack.c.b16 %v2774, %v2773
    %v2786 = vpack.c.b16 %v2776, %v2775
    %v2787 = vpack.c.b16 %v2778, %v2777
    %v2788 = vpack.c.b16 %v2780, %v2779
    %2797 = vmatprep.subr.bf16.mxu0 0
    %2798 = vmatpush1.bf16.msra.mxu0 %v2781
    %2799 = vmatprep.subr.bf16.mxu0 0
    %2800 = vmatpush1.bf16.msra.mxu0 %v2782
    %2801 = vmatprep.subr.bf16.mxu0 0
    %2802 = vmatpush1.bf16.msra.mxu0 %v2783
    %2803 = vmatprep.subr.bf16.mxu0 0
    %2804 = vmatpush1.bf16.msra.mxu0 %v2784
    %2805 = vmatprep.subr.bf16.mxu0 0
    %2806 = vmatpush1.bf16.msra.mxu0 %v2785
    %2807 = vmatprep.subr.bf16.mxu0 0
    %2808 = vmatpush1.bf16.msra.mxu0 %v2786
    %2809 = vmatprep.subr.bf16.mxu0 0
    %2810 = vmatpush1.bf16.msra.mxu0 %v2787
    %2811 = vmatprep.subr.bf16.mxu0 0
    %2812 = vmatpush1.bf16.msra.mxu0 %v2788
    %2813 = vmatprep.subr.bf16.mxu0 0
    %2814 = vmatpush1.bf16.msra.mxu0 0
    %2815 = vmatprep.subr.bf16.mxu0 0
    %2816 = vmatpush1.bf16.msra.mxu0 0
    %2817 = vmatprep.subr.bf16.mxu0 0
    %2818 = vmatpush1.bf16.msra.mxu0 0
    %2819 = vmatprep.subr.bf16.mxu0 0
    %2820 = vmatpush1.bf16.msra.mxu0 0
    %2821 = vmatprep.subr.bf16.mxu0 0
    %2822 = vmatpush1.bf16.msra.mxu0 0
    %2823 = vmatprep.subr.bf16.mxu0 0
    %2824 = vmatpush1.bf16.msra.mxu0 0
    %2825 = vmatprep.subr.bf16.mxu0 0
    %2826 = vmatpush1.bf16.msra.mxu0 0
    %2827 = vmatprep.subr.bf16.mxu0 0
    %2828 = vmatpush1.bf16.msra.mxu0 0
    %2829 = vmatprep.mubr.f32.mxu0 0.0
    %2830 = vmatmul.mubr.f32.gmra.mrb[0].mxu0 %v2725
    %v2831 = vpop.f32.mrb[0].mxu0
    %v2832 = vadd.f32 %v2748, %v2831
    %v2833 = vpop.f32.mrb[0].mxu0
    %2834 = vdwg.mxu0
    %v2835 = vadd.f32 %v2725, %v2832
    %2836 = vadd.xlane.f32.xlu0 %v2835
    %v2837 = vpop.xlane.xlu0 %2836
    %v2838 = vmul.f32 %v2837, %v428
    %v2839 = vsub.f32 %v2835, %v2838
    %v2840 = vmul.f32 %v2839, %v2839
    %2841 = vadd.xlane.f32.xlu0 %v2840
    %v2842 = vpop.xlane.xlu0 %2841
    %v2843 = vmul.f32 %v2842, %v428
    %v2844 = vadd.f32 %v2843, 1e-05
    %v2845 = vrsqrt.pop %v2844
    %v2846 = vmul.f32 %v2839, %v2845
    %v2847 = vlaneseq
    %v2848 = vshrl.u32 %v2847, 7
    %v2849 = vsub.s32 2, %v2848
    %v2850 = vrot.slane %v2727, %v2849
    %v2851 = vmul.f32 %v2846, %v2850
    %v2852 = vlaneseq
    %v2853 = vshrl.u32 %v2852, 7
    %v2854 = vsub.s32 3, %v2853
    %v2855 = vrot.slane %v2727, %v2854
    %v2856 = vadd.f32 %v2851, %v2855
    %s2857 = scalar_lea.vmem [#allocation10], 768
    %v2858 = vld [vmem:[%s2857] sm:$0xff]
    %v2859 = vld [vmem:[%s2857 + $0x8] sm:$0xff]
    %v2860 = vld [vmem:[%s2857 + $0x10] sm:$0xff]
    %v2861 = vld [vmem:[%s2857 + $0x18] sm:$0xff]
    %v2862 = vld [vmem:[%s2857 + $0x20] sm:$0xff]
    %v2863 = vld [vmem:[%s2857 + $0x28] sm:$0xff]
    %v2864 = vld [vmem:[%s2857 + $0x30] sm:$0xff]
    %v2865 = vld [vmem:[%s2857 + $0x38] sm:$0xff]
    %v2866 = vld [vmem:[%s2857 + $0x40] sm:$0xff]
    %v2867 = vld [vmem:[%s2857 + $0x48] sm:$0xff]
    %v2868 = vld [vmem:[%s2857 + $0x50] sm:$0xff]
    %v2869 = vld [vmem:[%s2857 + $0x58] sm:$0xff]
    %v2870 = vld [vmem:[%s2857 + $0x60] sm:$0xff]
    %v2871 = vld [vmem:[%s2857 + $0x68] sm:$0xff]
    %v2872 = vld [vmem:[%s2857 + $0x70] sm:$0xff]
    %v2873 = vld [vmem:[%s2857 + $0x78] sm:$0xff]
    %v2874 = vld [vmem:[%s2857 + $0x80] sm:$0xff]
    %v2875 = vld [vmem:[%s2857 + $0x88] sm:$0xff]
    %v2876 = vld [vmem:[%s2857 + $0x90] sm:$0xff]
    %v2877 = vld [vmem:[%s2857 + $0x98] sm:$0xff]
    %v2878 = vld [vmem:[%s2857 + $0xa0] sm:$0xff]
    %v2879 = vld [vmem:[%s2857 + $0xa8] sm:$0xff]
    %v2880 = vld [vmem:[%s2857 + $0xb0] sm:$0xff]
    %v2881 = vld [vmem:[%s2857 + $0xb8] sm:$0xff]
    %v2882 = vld [vmem:[%s2857 + $0xc0] sm:$0xff]
    %v2883 = vld [vmem:[%s2857 + $0xc8] sm:$0xff]
    %v2884 = vld [vmem:[%s2857 + $0xd0] sm:$0xff]
    %v2885 = vld [vmem:[%s2857 + $0xd8] sm:$0xff]
    %v2886 = vld [vmem:[%s2857 + $0xe0] sm:$0xff]
    %v2887 = vld [vmem:[%s2857 + $0xe8] sm:$0xff]
    %v2888 = vld [vmem:[%s2857 + $0xf0] sm:$0xff]
    %v2889 = vld [vmem:[%s2857 + $0xf8] sm:$0xff]
    %s2890 = scalar_lea.vmem [#allocation11], 12
    %v2891 = vld [vmem:[%s2890] sm:$0xf]
    %v2893 = vlaneseq
    %v2894 = vshrl.u32 %v2893, 7
    %v2895 = vsub.s32 0, %v2894
    %v2896 = vrot.slane %v2891, %v2895
    %v2897 = vlaneseq
    %v2898 = vshrl.u32 %v2897, 7
    %v2899 = vsub.s32 1, %v2898
    %v2900 = vrot.slane %v2891, %v2899
    %v2901 = vlaneseq
    %v2902 = vshrl.u32 %v2901, 7
    %v2903 = vsub.s32 2, %v2902
    %v2904 = vrot.slane %v2891, %v2903
    %v2905 = vlaneseq
    %v2906 = vshrl.u32 %v2905, 7
    %v2907 = vsub.s32 3, %v2906
    %v2908 = vrot.slane %v2891, %v2907
    %v2945 = vunpack.c.l.b16 %v2858
    %v2946 = vunpack.c.h.b16 %v2858
    %v2947 = vunpack.c.l.b16 %v2859
    %v2948 = vunpack.c.h.b16 %v2859
    %v2949 = vunpack.c.l.b16 %v2860
    %v2950 = vunpack.c.h.b16 %v2860
    %v2951 = vunpack.c.l.b16 %v2861
    %v2952 = vunpack.c.h.b16 %v2861
    %v2953 = vunpack.c.l.b16 %v2862
    %v2954 = vunpack.c.h.b16 %v2862
    %v2955 = vunpack.c.l.b16 %v2863
    %v2956 = vunpack.c.h.b16 %v2863
    %v2957 = vunpack.c.l.b16 %v2864
    %v2958 = vunpack.c.h.b16 %v2864
    %v2959 = vunpack.c.l.b16 %v2865
    %v2960 = vunpack.c.h.b16 %v2865
    %v2961 = vunpack.c.l.b16 %v2866
    %v2962 = vunpack.c.h.b16 %v2866
    %v2963 = vunpack.c.l.b16 %v2867
    %v2964 = vunpack.c.h.b16 %v2867
    %v2965 = vunpack.c.l.b16 %v2868
    %v2966 = vunpack.c.h.b16 %v2868
    %v2967 = vunpack.c.l.b16 %v2869
    %v2968 = vunpack.c.h.b16 %v2869
    %v2969 = vunpack.c.l.b16 %v2870
    %v2970 = vunpack.c.h.b16 %v2870
    %v2971 = vunpack.c.l.b16 %v2871
    %v2972 = vunpack.c.h.b16 %v2871
    %v2973 = vunpack.c.l.b16 %v2872
    %v2974 = vunpack.c.h.b16 %v2872
    %v2975 = vunpack.c.l.b16 %v2873
    %v2976 = vunpack.c.h.b16 %v2873
    %v2977 = vunpack.c.l.b16 %v2874
    %v2978 = vunpack.c.h.b16 %v2874
    %v2979 = vunpack.c.l.b16 %v2875
    %v2980 = vunpack.c.h.b16 %v2875
    %v2981 = vunpack.c.l.b16 %v2876
    %v2982 = vunpack.c.h.b16 %v2876
    %v2983 = vunpack.c.l.b16 %v2877
    %v2984 = vunpack.c.h.b16 %v2877
    %v2985 = vunpack.c.l.b16 %v2878
    %v2986 = vunpack.c.h.b16 %v2878
    %v2987 = vunpack.c.l.b16 %v2879
    %v2988 = vunpack.c.h.b16 %v2879
    %v2989 = vunpack.c.l.b16 %v2880
    %v2990 = vunpack.c.h.b16 %v2880
    %v2991 = vunpack.c.l.b16 %v2881
    %v2992 = vunpack.c.h.b16 %v2881
    %v2993 = vunpack.c.l.b16 %v2882
    %v2994 = vunpack.c.h.b16 %v2882
    %v2995 = vunpack.c.l.b16 %v2883
    %v2996 = vunpack.c.h.b16 %v2883
    %v2997 = vunpack.c.l.b16 %v2884
    %v2998 = vunpack.c.h.b16 %v2884
    %v2999 = vunpack.c.l.b16 %v2885
    %v3000 = vunpack.c.h.b16 %v2885
    %v3001 = vunpack.c.l.b16 %v2886
    %v3002 = vunpack.c.h.b16 %v2886
    %v3003 = vunpack.c.l.b16 %v2887
    %v3004 = vunpack.c.h.b16 %v2887
    %v3005 = vunpack.c.l.b16 %v2888
    %v3006 = vunpack.c.h.b16 %v2888
    %v3007 = vunpack.c.l.b16 %v2889
    %v3008 = vunpack.c.h.b16 %v2889
    %v3009 = vpack.c.b16 %v2949, %v2945
    %v3010 = vpack.c.b16 %v2950, %v2946
    %v3011 = vpack.c.b16 %v2951, %v2947
    %v3012 = vpack.c.b16 %v2952, %v2948
    %v3013 = vpack.c.b16 %v2957, %v2953
    %v3014 = vpack.c.b16 %v2958, %v2954
    %v3015 = vpack.c.b16 %v2959, %v2955
    %v3016 = vpack.c.b16 %v2960, %v2956
    %v3017 = vpack.c.b16 %v2965, %v2961
    %v3018 = vpack.c.b16 %v2966, %v2962
    %v3019 = vpack.c.b16 %v2967, %v2963
    %v3020 = vpack.c.b16 %v2968, %v2964
    %v3021 = vpack.c.b16 %v2973, %v2969
    %v3022 = vpack.c.b16 %v2974, %v2970
    %v3023 = vpack.c.b16 %v2975, %v2971
    %v3024 = vpack.c.b16 %v2976, %v2972
    %v3025 = vpack.c.b16 %v2981, %v2977
    %v3026 = vpack.c.b16 %v2982, %v2978
    %v3027 = vpack.c.b16 %v2983, %v2979
    %v3028 = vpack.c.b16 %v2984, %v2980
    %v3029 = vpack.c.b16 %v2989, %v2985
    %v3030 = vpack.c.b16 %v2990, %v2986
    %v3031 = vpack.c.b16 %v2991, %v2987
    %v3032 = vpack.c.b16 %v2992, %v2988
    %v3033 = vpack.c.b16 %v2997, %v2993
    %v3034 = vpack.c.b16 %v2998, %v2994
    %v3035 = vpack.c.b16 %v2999, %v2995
    %v3036 = vpack.c.b16 %v3000, %v2996
    %v3037 = vpack.c.b16 %v3005, %v3001
    %v3038 = vpack.c.b16 %v3006, %v3002
    %v3039 = vpack.c.b16 %v3007, %v3003
    %v3040 = vpack.c.b16 %v3008, %v3004
    %3073 = vmatprep.subr.bf16.mxu0 %v3010
    %3074 = vmatpush1.bf16.msra.mxu0 %v3009
    %3075 = vmatprep.subr.bf16.mxu0 %v3014
    %3076 = vmatpush1.bf16.msra.mxu0 %v3013
    %3077 = vmatprep.subr.bf16.mxu0 %v3018
    %3078 = vmatpush1.bf16.msra.mxu0 %v3017
    %3079 = vmatprep.subr.bf16.mxu0 %v3022
    %3080 = vmatpush1.bf16.msra.mxu0 %v3021
    %3081 = vmatprep.subr.bf16.mxu0 %v3026
    %3082 = vmatpush1.bf16.msra.mxu0 %v3025
    %3083 = vmatprep.subr.bf16.mxu0 %v3030
    %3084 = vmatpush1.bf16.msra.mxu0 %v3029
    %3085 = vmatprep.subr.bf16.mxu0 %v3034
    %3086 = vmatpush1.bf16.msra.mxu0 %v3033
    %3087 = vmatprep.subr.bf16.mxu0 %v3038
    %3088 = vmatpush1.bf16.msra.mxu0 %v3037
    %3089 = vmatprep.subr.bf16.mxu0 0
    %3090 = vmatpush1.bf16.msra.mxu0 0
    %3091 = vmatprep.subr.bf16.mxu0 0
    %3092 = vmatpush1.bf16.msra.mxu0 0
    %3093 = vmatprep.subr.bf16.mxu0 0
    %3094 = vmatpush1.bf16.msra.mxu0 0
    %3095 = vmatprep.subr.bf16.mxu0 0
    %3096 = vmatpush1.bf16.msra.mxu0 0
    %3097 = vmatprep.subr.bf16.mxu0 0
    %3098 = vmatpush1.bf16.msra.mxu0 0
    %3099 = vmatprep.subr.bf16.mxu0 0
    %3100 = vmatpush1.bf16.msra.mxu0 0
    %3101 = vmatprep.subr.bf16.mxu0 0
    %3102 = vmatpush1.bf16.msra.mxu0 0
    %3103 = vmatprep.subr.bf16.mxu0 0
    %3104 = vmatpush1.bf16.msra.mxu0 0
    %3105 = vmatprep.mubr.f32.mxu0 0.0
    %3106 = vmatmul.mubr.f32.gmra.mrb[0].mxu0 %v2856
    %v3107 = vpop.f32.mrb[0].mxu0
    %v3108 = vadd.f32 %v2896, %v3107
    %v3109 = vpop.f32.mrb[0].mxu0
    %v3110 = vadd.f32 %v2900, %v3109
    %3111 = vdwg.mxu0
    %3112 = vmatprep.subr.bf16.mxu0 %v3012
    %3113 = vmatpush1.bf16.msra.mxu0 %v3011
    %3114 = vmatprep.subr.bf16.mxu0 %v3016
    %3115 = vmatpush1.bf16.msra.mxu0 %v3015
    %3116 = vmatprep.subr.bf16.mxu0 %v3020
    %3117 = vmatpush1.bf16.msra.mxu0 %v3019
    %3118 = vmatprep.subr.bf16.mxu0 %v3024
    %3119 = vmatpush1.bf16.msra.mxu0 %v3023
    %3120 = vmatprep.subr.bf16.mxu0 %v3028
    %3121 = vmatpush1.bf16.msra.mxu0 %v3027
    %3122 = vmatprep.subr.bf16.mxu0 %v3032
    %3123 = vmatpush1.bf16.msra.mxu0 %v3031
    %3124 = vmatprep.subr.bf16.mxu0 %v3036
    %3125 = vmatpush1.bf16.msra.mxu0 %v3035
    %3126 = vmatprep.subr.bf16.mxu0 %v3040
    %3127 = vmatpush1.bf16.msra.mxu0 %v3039
    %3128 = vmatprep.subr.bf16.mxu0 0
    %3129 = vmatpush1.bf16.msra.mxu0 0
    %3130 = vmatprep.subr.bf16.mxu0 0
    %3131 = vmatpush1.bf16.msra.mxu0 0
    %3132 = vmatprep.subr.bf16.mxu0 0
    %3133 = vmatpush1.bf16.msra.mxu0 0
    %3134 = vmatprep.subr.bf16.mxu0 0
    %3135 = vmatpush1.bf16.msra.mxu0 0
    %3136 = vmatprep.subr.bf16.mxu0 0
    %3137 = vmatpush1.bf16.msra.mxu0 0
    %3138 = vmatprep.subr.bf16.mxu0 0
    %3139 = vmatpush1.bf16.msra.mxu0 0
    %3140 = vmatprep.subr.bf16.mxu0 0
    %3141 = vmatpush1.bf16.msra.mxu0 0
    %3142 = vmatprep.subr.bf16.mxu0 0
    %3143 = vmatpush1.bf16.msra.mxu0 0
    %3144 = vmatprep.mubr.f32.mxu0 0.0
    %3145 = vmatmul.mubr.f32.gmra.mrb[0].mxu0 %v2856
    %v3146 = vpop.f32.mrb[0].mxu0
    %v3147 = vadd.f32 %v2904, %v3146
    %v3148 = vpop.f32.mrb[0].mxu0
    %v3149 = vadd.f32 %v2908, %v3148
    %3150 = vdwg.mxu0
    %v3151 = vmul.f32 %v3108, 0.5
    %v3152 = vmul.f32 %v3110, 0.5
    %v3153 = vmul.f32 %v3147, 0.5
    %v3154 = vmul.f32 %v3149, 0.5
    %v3155 = vmul.f32 %v3108, 0.70710677
    %v3156 = vmul.f32 %v3110, 0.70710677
    %v3157 = vmul.f32 %v3147, 0.70710677
    %v3158 = vmul.f32 %v3149, 0.70710677
    %v3159 = verf.f32.pop %v3155
    %v3160 = verf.f32.pop %v3156
    %v3161 = verf.f32.pop %v3157
    %v3162 = verf.f32.pop %v3158
    %v3163 = vadd.f32 %v3159, 1.0
    %v3164 = vadd.f32 %v3160, 1.0
    %v3165 = vadd.f32 %v3161, 1.0
    %v3166 = vadd.f32 %v3162, 1.0
    %v3167 = vmul.f32 %v3151, %v3163
    %v3168 = vmul.f32 %v3152, %v3164
    %v3169 = vmul.f32 %v3153, %v3165
    %v3170 = vmul.f32 %v3154, %v3166
    %s3171 = scalar_lea.vmem [#allocation13], 768
    %v3172 = vld [vmem:[%s3171] sm:$0xf]
    %v3173 = vld [vmem:[%s3171 + $0x4] sm:$0xf]
    %v3174 = vld [vmem:[%s3171 + $0x8] sm:$0xf]
    %v3175 = vld [vmem:[%s3171 + $0xc] sm:$0xf]
    %v3176 = vld [vmem:[%s3171 + $0x10] sm:$0xf]
    %v3177 = vld [vmem:[%s3171 + $0x14] sm:$0xf]
    %v3178 = vld [vmem:[%s3171 + $0x18] sm:$0xf]
    %v3179 = vld [vmem:[%s3171 + $0x1c] sm:$0xf]
    %v3180 = vld [vmem:[%s3171 + $0x20] sm:$0xf]
    %v3181 = vld [vmem:[%s3171 + $0x24] sm:$0xf]
    %v3182 = vld [vmem:[%s3171 + $0x28] sm:$0xf]
    %v3183 = vld [vmem:[%s3171 + $0x2c] sm:$0xf]
    %v3184 = vld [vmem:[%s3171 + $0x30] sm:$0xf]
    %v3185 = vld [vmem:[%s3171 + $0x34] sm:$0xf]
    %v3186 = vld [vmem:[%s3171 + $0x38] sm:$0xf]
    %v3187 = vld [vmem:[%s3171 + $0x3c] sm:$0xf]
    %v3188 = vld [vmem:[%s3171 + $0x40] sm:$0xf]
    %v3189 = vld [vmem:[%s3171 + $0x44] sm:$0xf]
    %v3190 = vld [vmem:[%s3171 + $0x48] sm:$0xf]
    %v3191 = vld [vmem:[%s3171 + $0x4c] sm:$0xf]
    %v3192 = vld [vmem:[%s3171 + $0x50] sm:$0xf]
    %v3193 = vld [vmem:[%s3171 + $0x54] sm:$0xf]
    %v3194 = vld [vmem:[%s3171 + $0x58] sm:$0xf]
    %v3195 = vld [vmem:[%s3171 + $0x5c] sm:$0xf]
    %v3196 = vld [vmem:[%s3171 + $0x60] sm:$0xf]
    %v3197 = vld [vmem:[%s3171 + $0x64] sm:$0xf]
    %v3198 = vld [vmem:[%s3171 + $0x68] sm:$0xf]
    %v3199 = vld [vmem:[%s3171 + $0x6c] sm:$0xf]
    %v3200 = vld [vmem:[%s3171 + $0x70] sm:$0xf]
    %v3201 = vld [vmem:[%s3171 + $0x74] sm:$0xf]
    %v3202 = vld [vmem:[%s3171 + $0x78] sm:$0xf]
    %v3203 = vld [vmem:[%s3171 + $0x7c] sm:$0xf]
    %v3204 = vld [vmem:[%s3171 + $0x80] sm:$0xf]
    %v3205 = vld [vmem:[%s3171 + $0x84] sm:$0xf]
    %v3206 = vld [vmem:[%s3171 + $0x88] sm:$0xf]
    %v3207 = vld [vmem:[%s3171 + $0x8c] sm:$0xf]
    %v3208 = vld [vmem:[%s3171 + $0x90] sm:$0xf]
    %v3209 = vld [vmem:[%s3171 + $0x94] sm:$0xf]
    %v3210 = vld [vmem:[%s3171 + $0x98] sm:$0xf]
    %v3211 = vld [vmem:[%s3171 + $0x9c] sm:$0xf]
    %v3212 = vld [vmem:[%s3171 + $0xa0] sm:$0xf]
    %v3213 = vld [vmem:[%s3171 + $0xa4] sm:$0xf]
    %v3214 = vld [vmem:[%s3171 + $0xa8] sm:$0xf]
    %v3215 = vld [vmem:[%s3171 + $0xac] sm:$0xf]
    %v3216 = vld [vmem:[%s3171 + $0xb0] sm:$0xf]
    %v3217 = vld [vmem:[%s3171 + $0xb4] sm:$0xf]
    %v3218 = vld [vmem:[%s3171 + $0xb8] sm:$0xf]
    %v3219 = vld [vmem:[%s3171 + $0xbc] sm:$0xf]
    %v3220 = vld [vmem:[%s3171 + $0xc0] sm:$0xf]
    %v3221 = vld [vmem:[%s3171 + $0xc4] sm:$0xf]
    %v3222 = vld [vmem:[%s3171 + $0xc8] sm:$0xf]
    %v3223 = vld [vmem:[%s3171 + $0xcc] sm:$0xf]
    %v3224 = vld [vmem:[%s3171 + $0xd0] sm:$0xf]
    %v3225 = vld [vmem:[%s3171 + $0xd4] sm:$0xf]
    %v3226 = vld [vmem:[%s3171 + $0xd8] sm:$0xf]
    %v3227 = vld [vmem:[%s3171 + $0xdc] sm:$0xf]
    %v3228 = vld [vmem:[%s3171 + $0xe0] sm:$0xf]
    %v3229 = vld [vmem:[%s3171 + $0xe4] sm:$0xf]
    %v3230 = vld [vmem:[%s3171 + $0xe8] sm:$0xf]
    %v3231 = vld [vmem:[%s3171 + $0xec] sm:$0xf]
    %v3232 = vld [vmem:[%s3171 + $0xf0] sm:$0xf]
    %v3233 = vld [vmem:[%s3171 + $0xf4] sm:$0xf]
    %v3234 = vld [vmem:[%s3171 + $0xf8] sm:$0xf]
    %v3235 = vld [vmem:[%s3171 + $0xfc] sm:$0xf]
    %v3236 = vlaneseq
    %v3237 = vshrl.u32 %v3236, 7
    %v3238 = vsub.s32 1, %v3237
    %v3239 = vrot.slane %v2727, %v3238
    %v3304 = vunpack.c.l.b16 %v3172
    %v3305 = vunpack.c.l.b16 %v3173
    %v3306 = vunpack.c.l.b16 %v3174
    %v3307 = vunpack.c.l.b16 %v3175
    %v3308 = vunpack.c.l.b16 %v3176
    %v3309 = vunpack.c.l.b16 %v3177
    %v3310 = vunpack.c.l.b16 %v3178
    %v3311 = vunpack.c.l.b16 %v3179
    %v3312 = vunpack.c.l.b16 %v3180
    %v3313 = vunpack.c.l.b16 %v3181
    %v3314 = vunpack.c.l.b16 %v3182
    %v3315 = vunpack.c.l.b16 %v3183
    %v3316 = vunpack.c.l.b16 %v3184
    %v3317 = vunpack.c.l.b16 %v3185
    %v3318 = vunpack.c.l.b16 %v3186
    %v3319 = vunpack.c.l.b16 %v3187
    %v3320 = vunpack.c.l.b16 %v3188
    %v3321 = vunpack.c.l.b16 %v3189
    %v3322 = vunpack.c.l.b16 %v3190
    %v3323 = vunpack.c.l.b16 %v3191
    %v3324 = vunpack.c.l.b16 %v3192
    %v3325 = vunpack.c.l.b16 %v3193
    %v3326 = vunpack.c.l.b16 %v3194
    %v3327 = vunpack.c.l.b16 %v3195
    %v3328 = vunpack.c.l.b16 %v3196
    %v3329 = vunpack.c.l.b16 %v3197
    %v3330 = vunpack.c.l.b16 %v3198
    %v3331 = vunpack.c.l.b16 %v3199
    %v3332 = vunpack.c.l.b16 %v3200
    %v3333 = vunpack.c.l.b16 %v3201
    %v3334 = vunpack.c.l.b16 %v3202
    %v3335 = vunpack.c.l.b16 %v3203
    %v3336 = vunpack.c.l.b16 %v3204
    %v3337 = vunpack.c.l.b16 %v3205
    %v3338 = vunpack.c.l.b16 %v3206
    %v3339 = vunpack.c.l.b16 %v3207
    %v3340 = vunpack.c.l.b16 %v3208
    %v3341 = vunpack.c.l.b16 %v3209
    %v3342 = vunpack.c.l.b16 %v3210
    %v3343 = vunpack.c.l.b16 %v3211
    %v3344 = vunpack.c.l.b16 %v3212
    %v3345 = vunpack.c.l.b16 %v3213
    %v3346 = vunpack.c.l.b16 %v3214
    %v3347 = vunpack.c.l.b16 %v3215
    %v3348 = vunpack.c.l.b16 %v3216
    %v3349 = vunpack.c.l.b16 %v3217
    %v3350 = vunpack.c.l.b16 %v3218
    %v3351 = vunpack.c.l.b16 %v3219
    %v3352 = vunpack.c.l.b16 %v3220
    %v3353 = vunpack.c.l.b16 %v3221
    %v3354 = vunpack.c.l.b16 %v3222
    %v3355 = vunpack.c.l.b16 %v3223
    %v3356 = vunpack.c.l.b16 %v3224
    %v3357 = vunpack.c.l.b16 %v3225
    %v3358 = vunpack.c.l.b16 %v3226
    %v3359 = vunpack.c.l.b16 %v3227
    %v3360 = vunpack.c.l.b16 %v3228
    %v3361 = vunpack.c.l.b16 %v3229
    %v3362 = vunpack.c.l.b16 %v3230
    %v3363 = vunpack.c.l.b16 %v3231
    %v3364 = vunpack.c.l.b16 %v3232
    %v3365 = vunpack.c.l.b16 %v3233
    %v3366 = vunpack.c.l.b16 %v3234
    %v3367 = vunpack.c.l.b16 %v3235
    %v3368 = vpack.c.b16 %v3305, %v3304
    %v3369 = vpack.c.b16 %v3307, %v3306
    %v3370 = vpack.c.b16 %v3309, %v3308
    %v3371 = vpack.c.b16 %v3311, %v3310
    %v3372 = vpack.c.b16 %v3313, %v3312
    %v3373 = vpack.c.b16 %v3315, %v3314
    %v3374 = vpack.c.b16 %v3317, %v3316
    %v3375 = vpack.c.b16 %v3319, %v3318
    %v3376 = vpack.c.b16 %v3321, %v3320
    %v3377 = vpack.c.b16 %v3323, %v3322
    %v3378 = vpack.c.b16 %v3325, %v3324
    %v3379 = vpack.c.b16 %v3327, %v3326
    %v3380 = vpack.c.b16 %v3329, %v3328
    %v3381 = vpack.c.b16 %v3331, %v3330
    %v3382 = vpack.c.b16 %v3333, %v3332
    %v3383 = vpack.c.b16 %v3335, %v3334
    %v3384 = vpack.c.b16 %v3337, %v3336
    %v3385 = vpack.c.b16 %v3339, %v3338
    %v3386 = vpack.c.b16 %v3341, %v3340
    %v3387 = vpack.c.b16 %v3343, %v3342
    %v3388 = vpack.c.b16 %v3345, %v3344
    %v3389 = vpack.c.b16 %v3347, %v3346
    %v3390 = vpack.c.b16 %v3349, %v3348
    %v3391 = vpack.c.b16 %v3351, %v3350
    %v3392 = vpack.c.b16 %v3353, %v3352
    %v3393 = vpack.c.b16 %v3355, %v3354
    %v3394 = vpack.c.b16 %v3357, %v3356
    %v3395 = vpack.c.b16 %v3359, %v3358
    %v3396 = vpack.c.b16 %v3361, %v3360
    %v3397 = vpack.c.b16 %v3363, %v3362
    %v3398 = vpack.c.b16 %v3365, %v3364
    %v3399 = vpack.c.b16 %v3367, %v3366
    %3432 = vmatprep.subr.bf16.mxu0 0
    %3433 = vmatpush1.bf16.msra.mxu0 %v3368
    %3434 = vmatprep.subr.bf16.mxu0 0
    %3435 = vmatpush1.bf16.msra.mxu0 %v3369
    %3436 = vmatprep.subr.bf16.mxu0 0
    %3437 = vmatpush1.bf16.msra.mxu0 %v3370
    %3438 = vmatprep.subr.bf16.mxu0 0
    %3439 = vmatpush1.bf16.msra.mxu0 %v3371
    %3440 = vmatprep.subr.bf16.mxu0 0
    %3441 = vmatpush1.bf16.msra.mxu0 %v3372
    %3442 = vmatprep.subr.bf16.mxu0 0
    %3443 = vmatpush1.bf16.msra.mxu0 %v3373
    %3444 = vmatprep.subr.bf16.mxu0 0
    %3445 = vmatpush1.bf16.msra.mxu0 %v3374
    %3446 = vmatprep.subr.bf16.mxu0 0
    %3447 = vmatpush1.bf16.msra.mxu0 %v3375
    %3448 = vmatprep.subr.bf16.mxu0 0
    %3449 = vmatpush1.bf16.msra.mxu0 %v3376
    %3450 = vmatprep.subr.bf16.mxu0 0
    %3451 = vmatpush1.bf16.msra.mxu0 %v3377
    %3452 = vmatprep.subr.bf16.mxu0 0
    %3453 = vmatpush1.bf16.msra.mxu0 %v3378
    %3454 = vmatprep.subr.bf16.mxu0 0
    %3455 = vmatpush1.bf16.msra.mxu0 %v3379
    %3456 = vmatprep.subr.bf16.mxu0 0
    %3457 = vmatpush1.bf16.msra.mxu0 %v3380
    %3458 = vmatprep.subr.bf16.mxu0 0
    %3459 = vmatpush1.bf16.msra.mxu0 %v3381
    %3460 = vmatprep.subr.bf16.mxu0 0
    %3461 = vmatpush1.bf16.msra.mxu0 %v3382
    %3462 = vmatprep.subr.bf16.mxu0 0
    %3463 = vmatpush1.bf16.msra.mxu0 %v3383
    %3464 = vmatprep.mubr.f32.mxu0 %v3168
    %3465 = vmatmul.mubr.f32.gmra.mrb[0].mxu0 %v3167
    %v3466 = vpop.f32.mrb[0].mxu0
    %v3467 = vadd.f32 %v3239, %v3466
    %v3468 = vpop.f32.mrb[0].mxu0
    %3469 = vdwg.mxu0
    %3470 = vmatprep.subr.bf16.mxu0 0
    %3471 = vmatpush1.bf16.msra.mxu0 %v3384
    %3472 = vmatprep.subr.bf16.mxu0 0
    %3473 = vmatpush1.bf16.msra.mxu0 %v3385
    %3474 = vmatprep.subr.bf16.mxu0 0
    %3475 = vmatpush1.bf16.msra.mxu0 %v3386
    %3476 = vmatprep.subr.bf16.mxu0 0
    %3477 = vmatpush1.bf16.msra.mxu0 %v3387
    %3478 = vmatprep.subr.bf16.mxu0 0
    %3479 = vmatpush1.bf16.msra.mxu0 %v3388
    %3480 = vmatprep.subr.bf16.mxu0 0
    %3481 = vmatpush1.bf16.msra.mxu0 %v3389
    %3482 = vmatprep.subr.bf16.mxu0 0
    %3483 = vmatpush1.bf16.msra.mxu0 %v3390
    %3484 = vmatprep.subr.bf16.mxu0 0
    %3485 = vmatpush1.bf16.msra.mxu0 %v3391
    %3486 = vmatprep.subr.bf16.mxu0 0
    %3487 = vmatpush1.bf16.msra.mxu0 %v3392
    %3488 = vmatprep.subr.bf16.mxu0 0
    %3489 = vmatpush1.bf16.msra.mxu0 %v3393
    %3490 = vmatprep.subr.bf16.mxu0 0
    %3491 = vmatpush1.bf16.msra.mxu0 %v3394
    %3492 = vmatprep.subr.bf16.mxu0 0
    %3493 = vmatpush1.bf16.msra.mxu0 %v3395
    %3494 = vmatprep.subr.bf16.mxu0 0
    %3495 = vmatpush1.bf16.msra.mxu0 %v3396
    %3496 = vmatprep.subr.bf16.mxu0 0
    %3497 = vmatpush1.bf16.msra.mxu0 %v3397
    %3498 = vmatprep.subr.bf16.mxu0 0
    %3499 = vmatpush1.bf16.msra.mxu0 %v3398
    %3500 = vmatprep.subr.bf16.mxu0 0
    %3501 = vmatpush1.bf16.msra.mxu0 %v3399
    %3502 = vmatprep.mubr.f32.mxu0 %v3170
    %3503 = vmatmul.mubr.f32.gmra.mrb[0].mxu0 %v3169
    %v3504 = vpop.f32.mrb[0].mxu0
    %v3505 = vadd.f32 %v3467, %v3504
    %v3506 = vpop.f32.mrb[0].mxu0
    %3507 = vdwg.mxu0
    %v3508 = vadd.f32 %v2856, %v3505
    %3509 = vadd.xlane.f32.xlu0 %v3508
    %v3510 = vpop.xlane.xlu0 %3509
    %v3511 = vmul.f32 %v3510, %v428
    %v3512 = vsub.f32 %v3508, %v3511
    %v3513 = vmul.f32 %v3512, %v3512
    %3514 = vadd.xlane.f32.xlu0 %v3513
    %v3515 = vpop.xlane.xlu0 %3514
    %v3516 = vmul.f32 %v3515, %v428
    %v3517 = vadd.f32 %v3516, 1e-05
    %v3518 = vrsqrt.pop %v3517
    %v3519 = vmul.f32 %v3512, %v3518
    %v3520 = vlaneseq
    %v3521 = vshrl.u32 %v3520, 7
    %v3522 = vsub.s32 4, %v3521
    %v3523 = vrot.slane %v2727, %v3522
    %v3524 = vmul.f32 %v3519, %v3523
    %v3525 = vlaneseq
    %v3526 = vshrl.u32 %v3525, 7
    %v3527 = vsub.s32 5, %v3526
    %v3528 = vrot.slane %v2727, %v3527
    %v3529 = vadd.f32 %v3524, %v3528
    %s3530 = scalar_lea.vmem %s9, 32
    %v3531 = vld [vmem:[%s3530] sm:$0x3f]
    %s3532 = scalar_lea.vmem [#allocation8], 256
    %v3533 = vld [vmem:[%s3532] sm:$0xf]
    %v3534 = vld [vmem:[%s3532 + $0x4] sm:$0xf]
    %v3535 = vld [vmem:[%s3532 + $0x8] sm:$0xf]
    %v3536 = vld [vmem:[%s3532 + $0xc] sm:$0xf]
    %v3537 = vld [vmem:[%s3532 + $0x10] sm:$0xf]
    %v3538 = vld [vmem:[%s3532 + $0x14] sm:$0xf]
    %v3539 = vld [vmem:[%s3532 + $0x18] sm:$0xf]
    %v3540 = vld [vmem:[%s3532 + $0x1c] sm:$0xf]
    %v3541 = vld [vmem:[%s3532 + $0x20] sm:$0xf]
    %v3542 = vld [vmem:[%s3532 + $0x24] sm:$0xf]
    %v3543 = vld [vmem:[%s3532 + $0x28] sm:$0xf]
    %v3544 = vld [vmem:[%s3532 + $0x2c] sm:$0xf]
    %v3545 = vld [vmem:[%s3532 + $0x30] sm:$0xf]
    %v3546 = vld [vmem:[%s3532 + $0x34] sm:$0xf]
    %v3547 = vld [vmem:[%s3532 + $0x38] sm:$0xf]
    %v3548 = vld [vmem:[%s3532 + $0x3c] sm:$0xf]
    %v3549 = vlaneseq
    %v3550 = vshrl.u32 %v3549, 7
    %v3551 = vsub.s32 0, %v3550
    %v3552 = vrot.slane %v3531, %v3551
    %v3569 = vunpack.c.l.b16 %v3533
    %v3570 = vunpack.c.l.b16 %v3534
    %v3571 = vunpack.c.l.b16 %v3535
    %v3572 = vunpack.c.l.b16 %v3536
    %v3573 = vunpack.c.l.b16 %v3537
    %v3574 = vunpack.c.l.b16 %v3538
    %v3575 = vunpack.c.l.b16 %v3539
    %v3576 = vunpack.c.l.b16 %v3540
    %v3577 = vunpack.c.l.b16 %v3541
    %v3578 = vunpack.c.l.b16 %v3542
    %v3579 = vunpack.c.l.b16 %v3543
    %v3580 = vunpack.c.l.b16 %v3544
    %v3581 = vunpack.c.l.b16 %v3545
    %v3582 = vunpack.c.l.b16 %v3546
    %v3583 = vunpack.c.l.b16 %v3547
    %v3584 = vunpack.c.l.b16 %v3548
    %v3585 = vpack.c.b16 %v3570, %v3569
    %v3586 = vpack.c.b16 %v3572, %v3571
    %v3587 = vpack.c.b16 %v3574, %v3573
    %v3588 = vpack.c.b16 %v3576, %v3575
    %v3589 = vpack.c.b16 %v3578, %v3577
    %v3590 = vpack.c.b16 %v3580, %v3579
    %v3591 = vpack.c.b16 %v3582, %v3581
    %v3592 = vpack.c.b16 %v3584, %v3583
    %3601 = vmatprep.subr.bf16.mxu0 0
    %3602 = vmatpush1.bf16.msra.mxu0 %v3585
    %3603 = vmatprep.subr.bf16.mxu0 0
    %3604 = vmatpush1.bf16.msra.mxu0 %v3586
    %3605 = vmatprep.subr.bf16.mxu0 0
    %3606 = vmatpush1.bf16.msra.mxu0 %v3587
    %3607 = vmatprep.subr.bf16.mxu0 0
    %3608 = vmatpush1.bf16.msra.mxu0 %v3588
    %3609 = vmatprep.subr.bf16.mxu0 0
    %3610 = vmatpush1.bf16.msra.mxu0 %v3589
    %3611 = vmatprep.subr.bf16.mxu0 0
    %3612 = vmatpush1.bf16.msra.mxu0 %v3590
    %3613 = vmatprep.subr.bf16.mxu0 0
    %3614 = vmatpush1.bf16.msra.mxu0 %v3591
    %3615 = vmatprep.subr.bf16.mxu0 0
    %3616 = vmatpush1.bf16.msra.mxu0 %v3592
    %3617 = vmatprep.subr.bf16.mxu0 0
    %3618 = vmatpush1.bf16.msra.mxu0 0
    %3619 = vmatprep.subr.bf16.mxu0 0
    %3620 = vmatpush1.bf16.msra.mxu0 0
    %3621 = vmatprep.subr.bf16.mxu0 0
    %3622 = vmatpush1.bf16.msra.mxu0 0
    %3623 = vmatprep.subr.bf16.mxu0 0
    %3624 = vmatpush1.bf16.msra.mxu0 0
    %3625 = vmatprep.subr.bf16.mxu0 0
    %3626 = vmatpush1.bf16.msra.mxu0 0
    %3627 = vmatprep.subr.bf16.mxu0 0
    %3628 = vmatpush1.bf16.msra.mxu0 0
    %3629 = vmatprep.subr.bf16.mxu0 0
    %3630 = vmatpush1.bf16.msra.mxu0 0
    %3631 = vmatprep.subr.bf16.mxu0 0
    %3632 = vmatpush1.bf16.msra.mxu0 0
    %3633 = vmatprep.mubr.f32.mxu0 0.0
    %3634 = vmatmul.mubr.f32.gmra.mrb[0].mxu0 %v3529
    %v3635 = vpop.f32.mrb[0].mxu0
    %v3636 = vadd.f32 %v3552, %v3635
    %v3637 = vpop.f32.mrb[0].mxu0
    %3638 = vdwg.mxu0
    %v3639 = vadd.f32 %v3529, %v3636
    %3640 = vadd.xlane.f32.xlu0 %v3639
    %v3641 = vpop.xlane.xlu0 %3640
    %v3642 = vmul.f32 %v3641, %v428
    %v3643 = vsub.f32 %v3639, %v3642
    %v3644 = vmul.f32 %v3643, %v3643
    %3645 = vadd.xlane.f32.xlu0 %v3644
    %v3646 = vpop.xlane.xlu0 %3645
    %v3647 = vmul.f32 %v3646, %v428
    %v3648 = vadd.f32 %v3647, 1e-05
    %v3649 = vrsqrt.pop %v3648
    %v3650 = vmul.f32 %v3643, %v3649
    %v3651 = vlaneseq
    %v3652 = vshrl.u32 %v3651, 7
    %v3653 = vsub.s32 2, %v3652
    %v3654 = vrot.slane %v3531, %v3653
    %v3655 = vmul.f32 %v3650, %v3654
    %v3656 = vlaneseq
    %v3657 = vshrl.u32 %v3656, 7
    %v3658 = vsub.s32 3, %v3657
    %v3659 = vrot.slane %v3531, %v3658
    %v3660 = vadd.f32 %v3655, %v3659
    %s3661 = scalar_lea.vmem [#allocation10], 1024
    %v3662 = vld [vmem:[%s3661] sm:$0xff]
    %v3663 = vld [vmem:[%s3661 + $0x8] sm:$0xff]
    %v3664 = vld [vmem:[%s3661 + $0x10] sm:$0xff]
    %v3665 = vld [vmem:[%s3661 + $0x18] sm:$0xff]
    %v3666 = vld [vmem:[%s3661 + $0x20] sm:$0xff]
    %v3667 = vld [vmem:[%s3661 + $0x28] sm:$0xff]
    %v3668 = vld [vmem:[%s3661 + $0x30] sm:$0xff]
    %v3669 = vld [vmem:[%s3661 + $0x38] sm:$0xff]
    %v3670 = vld [vmem:[%s3661 + $0x40] sm:$0xff]
    %v3671 = vld [vmem:[%s3661 + $0x48] sm:$0xff]
    %v3672 = vld [vmem:[%s3661 + $0x50] sm:$0xff]
    %v3673 = vld [vmem:[%s3661 + $0x58] sm:$0xff]
    %v3674 = vld [vmem:[%s3661 + $0x60] sm:$0xff]
    %v3675 = vld [vmem:[%s3661 + $0x68] sm:$0xff]
    %v3676 = vld [vmem:[%s3661 + $0x70] sm:$0xff]
    %v3677 = vld [vmem:[%s3661 + $0x78] sm:$0xff]
    %v3678 = vld [vmem:[%s3661 + $0x80] sm:$0xff]
    %v3679 = vld [vmem:[%s3661 + $0x88] sm:$0xff]
    %v3680 = vld [vmem:[%s3661 + $0x90] sm:$0xff]
    %v3681 = vld [vmem:[%s3661 + $0x98] sm:$0xff]
    %v3682 = vld [vmem:[%s3661 + $0xa0] sm:$0xff]
    %v3683 = vld [vmem:[%s3661 + $0xa8] sm:$0xff]
    %v3684 = vld [vmem:[%s3661 + $0xb0] sm:$0xff]
    %v3685 = vld [vmem:[%s3661 + $0xb8] sm:$0xff]
    %v3686 = vld [vmem:[%s3661 + $0xc0] sm:$0xff]
    %v3687 = vld [vmem:[%s3661 + $0xc8] sm:$0xff]
    %v3688 = vld [vmem:[%s3661 + $0xd0] sm:$0xff]
    %v3689 = vld [vmem:[%s3661 + $0xd8] sm:$0xff]
    %v3690 = vld [vmem:[%s3661 + $0xe0] sm:$0xff]
    %v3691 = vld [vmem:[%s3661 + $0xe8] sm:$0xff]
    %v3692 = vld [vmem:[%s3661 + $0xf0] sm:$0xff]
    %v3693 = vld [vmem:[%s3661 + $0xf8] sm:$0xff]
    %s3694 = scalar_lea.vmem [#allocation11], 16
    %v3695 = vld [vmem:[%s3694] sm:$0xf]
    %v3697 = vlaneseq
    %v3698 = vshrl.u32 %v3697, 7
    %v3699 = vsub.s32 0, %v3698
    %v3700 = vrot.slane %v3695, %v3699
    %v3701 = vlaneseq
    %v3702 = vshrl.u32 %v3701, 7
    %v3703 = vsub.s32 1, %v3702
    %v3704 = vrot.slane %v3695, %v3703
    %v3705 = vlaneseq
    %v3706 = vshrl.u32 %v3705, 7
    %v3707 = vsub.s32 2, %v3706
    %v3708 = vrot.slane %v3695, %v3707
    %v3709 = vlaneseq
    %v3710 = vshrl.u32 %v3709, 7
    %v3711 = vsub.s32 3, %v3710
    %v3712 = vrot.slane %v3695, %v3711
    %v3749 = vunpack.c.l.b16 %v3662
    %v3750 = vunpack.c.h.b16 %v3662
    %v3751 = vunpack.c.l.b16 %v3663
    %v3752 = vunpack.c.h.b16 %v3663
    %v3753 = vunpack.c.l.b16 %v3664
    %v3754 = vunpack.c.h.b16 %v3664
    %v3755 = vunpack.c.l.b16 %v3665
    %v3756 = vunpack.c.h.b16 %v3665
    %v3757 = vunpack.c.l.b16 %v3666
    %v3758 = vunpack.c.h.b16 %v3666
    %v3759 = vunpack.c.l.b16 %v3667
    %v3760 = vunpack.c.h.b16 %v3667
    %v3761 = vunpack.c.l.b16 %v3668
    %v3762 = vunpack.c.h.b16 %v3668
    %v3763 = vunpack.c.l.b16 %v3669
    %v3764 = vunpack.c.h.b16 %v3669
    %v3765 = vunpack.c.l.b16 %v3670
    %v3766 = vunpack.c.h.b16 %v3670
    %v3767 = vunpack.c.l.b16 %v3671
    %v3768 = vunpack.c.h.b16 %v3671
    %v3769 = vunpack.c.l.b16 %v3672
    %v3770 = vunpack.c.h.b16 %v3672
    %v3771 = vunpack.c.l.b16 %v3673
    %v3772 = vunpack.c.h.b16 %v3673
    %v3773 = vunpack.c.l.b16 %v3674
    %v3774 = vunpack.c.h.b16 %v3674
    %v3775 = vunpack.c.l.b16 %v3675
    %v3776 = vunpack.c.h.b16 %v3675
    %v3777 = vunpack.c.l.b16 %v3676
    %v3778 = vunpack.c.h.b16 %v3676
    %v3779 = vunpack.c.l.b16 %v3677
    %v3780 = vunpack.c.h.b16 %v3677
    %v3781 = vunpack.c.l.b16 %v3678
    %v3782 = vunpack.c.h.b16 %v3678
    %v3783 = vunpack.c.l.b16 %v3679
    %v3784 = vunpack.c.h.b16 %v3679
    %v3785 = vunpack.c.l.b16 %v3680
    %v3786 = vunpack.c.h.b16 %v3680
    %v3787 = vunpack.c.l.b16 %v3681
    %v3788 = vunpack.c.h.b16 %v3681
    %v3789 = vunpack.c.l.b16 %v3682
    %v3790 = vunpack.c.h.b16 %v3682
    %v3791 = vunpack.c.l.b16 %v3683
    %v3792 = vunpack.c.h.b16 %v3683
    %v3793 = vunpack.c.l.b16 %v3684
    %v3794 = vunpack.c.h.b16 %v3684
    %v3795 = vunpack.c.l.b16 %v3685
    %v3796 = vunpack.c.h.b16 %v3685
    %v3797 = vunpack.c.l.b16 %v3686
    %v3798 = vunpack.c.h.b16 %v3686
    %v3799 = vunpack.c.l.b16 %v3687
    %v3800 = vunpack.c.h.b16 %v3687
    %v3801 = vunpack.c.l.b16 %v3688
    %v3802 = vunpack.c.h.b16 %v3688
    %v3803 = vunpack.c.l.b16 %v3689
    %v3804 = vunpack.c.h.b16 %v3689
    %v3805 = vunpack.c.l.b16 %v3690
    %v3806 = vunpack.c.h.b16 %v3690
    %v3807 = vunpack.c.l.b16 %v3691
    %v3808 = vunpack.c.h.b16 %v3691
    %v3809 = vunpack.c.l.b16 %v3692
    %v3810 = vunpack.c.h.b16 %v3692
    %v3811 = vunpack.c.l.b16 %v3693
    %v3812 = vunpack.c.h.b16 %v3693
    %v3813 = vpack.c.b16 %v3753, %v3749
    %v3814 = vpack.c.b16 %v3754, %v3750
    %v3815 = vpack.c.b16 %v3755, %v3751
    %v3816 = vpack.c.b16 %v3756, %v3752
    %v3817 = vpack.c.b16 %v3761, %v3757
    %v3818 = vpack.c.b16 %v3762, %v3758
    %v3819 = vpack.c.b16 %v3763, %v3759
    %v3820 = vpack.c.b16 %v3764, %v3760
    %v3821 = vpack.c.b16 %v3769, %v3765
    %v3822 = vpack.c.b16 %v3770, %v3766
    %v3823 = vpack.c.b16 %v3771, %v3767
    %v3824 = vpack.c.b16 %v3772, %v3768
    %v3825 = vpack.c.b16 %v3777, %v3773
    %v3826 = vpack.c.b16 %v3778, %v3774
    %v3827 = vpack.c.b16 %v3779, %v3775
    %v3828 = vpack.c.b16 %v3780, %v3776
    %v3829 = vpack.c.b16 %v3785, %v3781
    %v3830 = vpack.c.b16 %v3786, %v3782
    %v3831 = vpack.c.b16 %v3787, %v3783
    %v3832 = vpack.c.b16 %v3788, %v3784
    %v3833 = vpack.c.b16 %v3793, %v3789
    %v3834 = vpack.c.b16 %v3794, %v3790
    %v3835 = vpack.c.b16 %v3795, %v3791
    %v3836 = vpack.c.b16 %v3796, %v3792
    %v3837 = vpack.c.b16 %v3801, %v3797
    %v3838 = vpack.c.b16 %v3802, %v3798
    %v3839 = vpack.c.b16 %v3803, %v3799
    %v3840 = vpack.c.b16 %v3804, %v3800
    %v3841 = vpack.c.b16 %v3809, %v3805
    %v3842 = vpack.c.b16 %v3810, %v3806
    %v3843 = vpack.c.b16 %v3811, %v3807
    %v3844 = vpack.c.b16 %v3812, %v3808
    %3877 = vmatprep.subr.bf16.mxu0 %v3814
    %3878 = vmatpush1.bf16.msra.mxu0 %v3813
    %3879 = vmatprep.subr.bf16.mxu0 %v3818
    %3880 = vmatpush1.bf16.msra.mxu0 %v3817
    %3881 = vmatprep.subr.bf16.mxu0 %v3822
    %3882 = vmatpush1.bf16.msra.mxu0 %v3821
    %3883 = vmatprep.subr.bf16.mxu0 %v3826
    %3884 = vmatpush1.bf16.msra.mxu0 %v3825
    %3885 = vmatprep.subr.bf16.mxu0 %v3830
    %3886 = vmatpush1.bf16.msra.mxu0 %v3829
    %3887 = vmatprep.subr.bf16.mxu0 %v3834
    %3888 = vmatpush1.bf16.msra.mxu0 %v3833
    %3889 = vmatprep.subr.bf16.mxu0 %v3838
    %3890 = vmatpush1.bf16.msra.mxu0 %v3837
    %3891 = vmatprep.subr.bf16.mxu0 %v3842
    %3892 = vmatpush1.bf16.msra.mxu0 %v3841
    %3893 = vmatprep.subr.bf16.mxu0 0
    %3894 = vmatpush1.bf16.msra.mxu0 0
    %3895 = vmatprep.subr.bf16.mxu0 0
    %3896 = vmatpush1.bf16.msra.mxu0 0
    %3897 = vmatprep.subr.bf16.mxu0 0
    %3898 = vmatpush1.bf16.msra.mxu0 0
    %3899 = vmatprep.subr.bf16.mxu0 0
    %3900 = vmatpush1.bf16.msra.mxu0 0
    %3901 = vmatprep.subr.bf16.mxu0 0
    %3902 = vmatpush1.bf16.msra.mxu0 0
    %3903 = vmatprep.subr.bf16.mxu0 0
    %3904 = vmatpush1.bf16.msra.mxu0 0
    %3905 = vmatprep.subr.bf16.mxu0 0
    %3906 = vmatpush1.bf16.msra.mxu0 0
    %3907 = vmatprep.subr.bf16.mxu0 0
    %3908 = vmatpush1.bf16.msra.mxu0 0
    %3909 = vmatprep.mubr.f32.mxu0 0.0
    %3910 = vmatmul.mubr.f32.gmra.mrb[0].mxu0 %v3660
    %v3911 = vpop.f32.mrb[0].mxu0
    %v3912 = vadd.f32 %v3700, %v3911
    %v3913 = vpop.f32.mrb[0].mxu0
    %v3914 = vadd.f32 %v3704, %v3913
    %3915 = vdwg.mxu0
    %3916 = vmatprep.subr.bf16.mxu0 %v3816
    %3917 = vmatpush1.bf16.msra.mxu0 %v3815
    %3918 = vmatprep.subr.bf16.mxu0 %v3820
    %3919 = vmatpush1.bf16.msra.mxu0 %v3819
    %3920 = vmatprep.subr.bf16.mxu0 %v3824
    %3921 = vmatpush1.bf16.msra.mxu0 %v3823
    %3922 = vmatprep.subr.bf16.mxu0 %v3828
    %3923 = vmatpush1.bf16.msra.mxu0 %v3827
    %3924 = vmatprep.subr.bf16.mxu0 %v3832
    %3925 = vmatpush1.bf16.msra.mxu0 %v3831
    %3926 = vmatprep.subr.bf16.mxu0 %v3836
    %3927 = vmatpush1.bf16.msra.mxu0 %v3835
    %3928 = vmatprep.subr.bf16.mxu0 %v3840
    %3929 = vmatpush1.bf16.msra.mxu0 %v3839
    %3930 = vmatprep.subr.bf16.mxu0 %v3844
    %3931 = vmatpush1.bf16.msra.mxu0 %v3843
    %3932 = vmatprep.subr.bf16.mxu0 0
    %3933 = vmatpush1.bf16.msra.mxu0 0
    %3934 = vmatprep.subr.bf16.mxu0 0
    %3935 = vmatpush1.bf16.msra.mxu0 0
    %3936 = vmatprep.subr.bf16.mxu0 0
    %3937 = vmatpush1.bf16.msra.mxu0 0
    %3938 = vmatprep.subr.bf16.mxu0 0
    %3939 = vmatpush1.bf16.msra.mxu0 0
    %3940 = vmatprep.subr.bf16.mxu0 0
    %3941 = vmatpush1.bf16.msra.mxu0 0
    %3942 = vmatprep.subr.bf16.mxu0 0
    %3943 = vmatpush1.bf16.msra.mxu0 0
    %3944 = vmatprep.subr.bf16.mxu0 0
    %3945 = vmatpush1.bf16.msra.mxu0 0
    %3946 = vmatprep.subr.bf16.mxu0 0
    %3947 = vmatpush1.bf16.msra.mxu0 0
    %3948 = vmatprep.mubr.f32.mxu0 0.0
    %3949 = vmatmul.mubr.f32.gmra.mrb[0].mxu0 %v3660
    %v3950 = vpop.f32.mrb[0].mxu0
    %v3951 = vadd.f32 %v3708, %v3950
    %v3952 = vpop.f32.mrb[0].mxu0
    %v3953 = vadd.f32 %v3712, %v3952
    %3954 = vdwg.mxu0
    %v3955 = vmul.f32 %v3912, 0.5
    %v3956 = vmul.f32 %v3914, 0.5
    %v3957 = vmul.f32 %v3951, 0.5
    %v3958 = vmul.f32 %v3953, 0.5
    %v3959 = vmul.f32 %v3912, 0.70710677
    %v3960 = vmul.f32 %v3914, 0.70710677
    %v3961 = vmul.f32 %v3951, 0.70710677
    %v3962 = vmul.f32 %v3953, 0.70710677
    %v3963 = verf.f32.pop %v3959
    %v3964 = verf.f32.pop %v3960
    %v3965 = verf.f32.pop %v3961
    %v3966 = verf.f32.pop %v3962
    %v3967 = vadd.f32 %v3963, 1.0
    %v3968 = vadd.f32 %v3964, 1.0
    %v3969 = vadd.f32 %v3965, 1.0
    %v3970 = vadd.f32 %v3966, 1.0
    %v3971 = vmul.f32 %v3955, %v3967
    %v3972 = vmul.f32 %v3956, %v3968
    %v3973 = vmul.f32 %v3957, %v3969
    %v3974 = vmul.f32 %v3958, %v3970
    %s3975 = scalar_lea.vmem [#allocation13], 1024
    %v3976 = vld [vmem:[%s3975] sm:$0xf]
    %v3977 = vld [vmem:[%s3975 + $0x4] sm:$0xf]
    %v3978 = vld [vmem:[%s3975 + $0x8] sm:$0xf]
    %v3979 = vld [vmem:[%s3975 + $0xc] sm:$0xf]
    %v3980 = vld [vmem:[%s3975 + $0x10] sm:$0xf]
    %v3981 = vld [vmem:[%s3975 + $0x14] sm:$0xf]
    %v3982 = vld [vmem:[%s3975 + $0x18] sm:$0xf]
    %v3983 = vld [vmem:[%s3975 + $0x1c] sm:$0xf]
    %v3984 = vld [vmem:[%s3975 + $0x20] sm:$0xf]
    %v3985 = vld [vmem:[%s3975 + $0x24] sm:$0xf]
    %v3986 = vld [vmem:[%s3975 + $0x28] sm:$0xf]
    %v3987 = vld [vmem:[%s3975 + $0x2c] sm:$0xf]
    %v3988 = vld [vmem:[%s3975 + $0x30] sm:$0xf]
    %v3989 = vld [vmem:[%s3975 + $0x34] sm:$0xf]
    %v3990 = vld [vmem:[%s3975 + $0x38] sm:$0xf]
    %v3991 = vld [vmem:[%s3975 + $0x3c] sm:$0xf]
    %v3992 = vld [vmem:[%s3975 + $0x40] sm:$0xf]
    %v3993 = vld [vmem:[%s3975 + $0x44] sm:$0xf]
    %v3994 = vld [vmem:[%s3975 + $0x48] sm:$0xf]
    %v3995 = vld [vmem:[%s3975 + $0x4c] sm:$0xf]
    %v3996 = vld [vmem:[%s3975 + $0x50] sm:$0xf]
    %v3997 = vld [vmem:[%s3975 + $0x54] sm:$0xf]
    %v3998 = vld [vmem:[%s3975 + $0x58] sm:$0xf]
    %v3999 = vld [vmem:[%s3975 + $0x5c] sm:$0xf]
    %v4000 = vld [vmem:[%s3975 + $0x60] sm:$0xf]
    %v4001 = vld [vmem:[%s3975 + $0x64] sm:$0xf]
    %v4002 = vld [vmem:[%s3975 + $0x68] sm:$0xf]
    %v4003 = vld [vmem:[%s3975 + $0x6c] sm:$0xf]
    %v4004 = vld [vmem:[%s3975 + $0x70] sm:$0xf]
    %v4005 = vld [vmem:[%s3975 + $0x74] sm:$0xf]
    %v4006 = vld [vmem:[%s3975 + $0x78] sm:$0xf]
    %v4007 = vld [vmem:[%s3975 + $0x7c] sm:$0xf]
    %v4008 = vld [vmem:[%s3975 + $0x80] sm:$0xf]
    %v4009 = vld [vmem:[%s3975 + $0x84] sm:$0xf]
    %v4010 = vld [vmem:[%s3975 + $0x88] sm:$0xf]
    %v4011 = vld [vmem:[%s3975 + $0x8c] sm:$0xf]
    %v4012 = vld [vmem:[%s3975 + $0x90] sm:$0xf]
    %v4013 = vld [vmem:[%s3975 + $0x94] sm:$0xf]
    %v4014 = vld [vmem:[%s3975 + $0x98] sm:$0xf]
    %v4015 = vld [vmem:[%s3975 + $0x9c] sm:$0xf]
    %v4016 = vld [vmem:[%s3975 + $0xa0] sm:$0xf]
    %v4017 = vld [vmem:[%s3975 + $0xa4] sm:$0xf]
    %v4018 = vld [vmem:[%s3975 + $0xa8] sm:$0xf]
    %v4019 = vld [vmem:[%s3975 + $0xac] sm:$0xf]
    %v4020 = vld [vmem:[%s3975 + $0xb0] sm:$0xf]
    %v4021 = vld [vmem:[%s3975 + $0xb4] sm:$0xf]
    %v4022 = vld [vmem:[%s3975 + $0xb8] sm:$0xf]
    %v4023 = vld [vmem:[%s3975 + $0xbc] sm:$0xf]
    %v4024 = vld [vmem:[%s3975 + $0xc0] sm:$0xf]
    %v4025 = vld [vmem:[%s3975 + $0xc4] sm:$0xf]
    %v4026 = vld [vmem:[%s3975 + $0xc8] sm:$0xf]
    %v4027 = vld [vmem:[%s3975 + $0xcc] sm:$0xf]
    %v4028 = vld [vmem:[%s3975 + $0xd0] sm:$0xf]
    %v4029 = vld [vmem:[%s3975 + $0xd4] sm:$0xf]
    %v4030 = vld [vmem:[%s3975 + $0xd8] sm:$0xf]
    %v4031 = vld [vmem:[%s3975 + $0xdc] sm:$0xf]
    %v4032 = vld [vmem:[%s3975 + $0xe0] sm:$0xf]
    %v4033 = vld [vmem:[%s3975 + $0xe4] sm:$0xf]
    %v4034 = vld [vmem:[%s3975 + $0xe8] sm:$0xf]
    %v4035 = vld [vmem:[%s3975 + $0xec] sm:$0xf]
    %v4036 = vld [vmem:[%s3975 + $0xf0] sm:$0xf]
    %v4037 = vld [vmem:[%s3975 + $0xf4] sm:$0xf]
    %v4038 = vld [vmem:[%s3975 + $0xf8] sm:$0xf]
    %v4039 = vld [vmem:[%s3975 + $0xfc] sm:$0xf]
    %v4040 = vlaneseq
    %v4041 = vshrl.u32 %v4040, 7
    %v4042 = vsub.s32 1, %v4041
    %v4043 = vrot.slane %v3531, %v4042
    %v4108 = vunpack.c.l.b16 %v3976
    %v4109 = vunpack.c.l.b16 %v3977
    %v4110 = vunpack.c.l.b16 %v3978
    %v4111 = vunpack.c.l.b16 %v3979
    %v4112 = vunpack.c.l.b16 %v3980
    %v4113 = vunpack.c.l.b16 %v3981
    %v4114 = vunpack.c.l.b16 %v3982
    %v4115 = vunpack.c.l.b16 %v3983
    %v4116 = vunpack.c.l.b16 %v3984
    %v4117 = vunpack.c.l.b16 %v3985
    %v4118 = vunpack.c.l.b16 %v3986
    %v4119 = vunpack.c.l.b16 %v3987
    %v4120 = vunpack.c.l.b16 %v3988
    %v4121 = vunpack.c.l.b16 %v3989
    %v4122 = vunpack.c.l.b16 %v3990
    %v4123 = vunpack.c.l.b16 %v3991
    %v4124 = vunpack.c.l.b16 %v3992
    %v4125 = vunpack.c.l.b16 %v3993
    %v4126 = vunpack.c.l.b16 %v3994
    %v4127 = vunpack.c.l.b16 %v3995
    %v4128 = vunpack.c.l.b16 %v3996
    %v4129 = vunpack.c.l.b16 %v3997
    %v4130 = vunpack.c.l.b16 %v3998
    %v4131 = vunpack.c.l.b16 %v3999
    %v4132 = vunpack.c.l.b16 %v4000
    %v4133 = vunpack.c.l.b16 %v4001
    %v4134 = vunpack.c.l.b16 %v4002
    %v4135 = vunpack.c.l.b16 %v4003
    %v4136 = vunpack.c.l.b16 %v4004
    %v4137 = vunpack.c.l.b16 %v4005
    %v4138 = vunpack.c.l.b16 %v4006
    %v4139 = vunpack.c.l.b16 %v4007
    %v4140 = vunpack.c.l.b16 %v4008
    %v4141 = vunpack.c.l.b16 %v4009
    %v4142 = vunpack.c.l.b16 %v4010
    %v4143 = vunpack.c.l.b16 %v4011
    %v4144 = vunpack.c.l.b16 %v4012
    %v4145 = vunpack.c.l.b16 %v4013
    %v4146 = vunpack.c.l.b16 %v4014
    %v4147 = vunpack.c.l.b16 %v4015
    %v4148 = vunpack.c.l.b16 %v4016
    %v4149 = vunpack.c.l.b16 %v4017
    %v4150 = vunpack.c.l.b16 %v4018
    %v4151 = vunpack.c.l.b16 %v4019
    %v4152 = vunpack.c.l.b16 %v4020
    %v4153 = vunpack.c.l.b16 %v4021
    %v4154 = vunpack.c.l.b16 %v4022
    %v4155 = vunpack.c.l.b16 %v4023
    %v4156 = vunpack.c.l.b16 %v4024
    %v4157 = vunpack.c.l.b16 %v4025
    %v4158 = vunpack.c.l.b16 %v4026
    %v4159 = vunpack.c.l.b16 %v4027
    %v4160 = vunpack.c.l.b16 %v4028
    %v4161 = vunpack.c.l.b16 %v4029
    %v4162 = vunpack.c.l.b16 %v4030
    %v4163 = vunpack.c.l.b16 %v4031
    %v4164 = vunpack.c.l.b16 %v4032
    %v4165 = vunpack.c.l.b16 %v4033
    %v4166 = vunpack.c.l.b16 %v4034
    %v4167 = vunpack.c.l.b16 %v4035
    %v4168 = vunpack.c.l.b16 %v4036
    %v4169 = vunpack.c.l.b16 %v4037
    %v4170 = vunpack.c.l.b16 %v4038
    %v4171 = vunpack.c.l.b16 %v4039
    %v4172 = vpack.c.b16 %v4109, %v4108
    %v4173 = vpack.c.b16 %v4111, %v4110
    %v4174 = vpack.c.b16 %v4113, %v4112
    %v4175 = vpack.c.b16 %v4115, %v4114
    %v4176 = vpack.c.b16 %v4117, %v4116
    %v4177 = vpack.c.b16 %v4119, %v4118
    %v4178 = vpack.c.b16 %v4121, %v4120
    %v4179 = vpack.c.b16 %v4123, %v4122
    %v4180 = vpack.c.b16 %v4125, %v4124
    %v4181 = vpack.c.b16 %v4127, %v4126
    %v4182 = vpack.c.b16 %v4129, %v4128
    %v4183 = vpack.c.b16 %v4131, %v4130
    %v4184 = vpack.c.b16 %v4133, %v4132
    %v4185 = vpack.c.b16 %v4135, %v4134
    %v4186 = vpack.c.b16 %v4137, %v4136
    %v4187 = vpack.c.b16 %v4139, %v4138
    %v4188 = vpack.c.b16 %v4141, %v4140
    %v4189 = vpack.c.b16 %v4143, %v4142
    %v4190 = vpack.c.b16 %v4145, %v4144
    %v4191 = vpack.c.b16 %v4147, %v4146
    %v4192 = vpack.c.b16 %v4149, %v4148
    %v4193 = vpack.c.b16 %v4151, %v4150
    %v4194 = vpack.c.b16 %v4153, %v4152
    %v4195 = vpack.c.b16 %v4155, %v4154
    %v4196 = vpack.c.b16 %v4157, %v4156
    %v4197 = vpack.c.b16 %v4159, %v4158
    %v4198 = vpack.c.b16 %v4161, %v4160
    %v4199 = vpack.c.b16 %v4163, %v4162
    %v4200 = vpack.c.b16 %v4165, %v4164
    %v4201 = vpack.c.b16 %v4167, %v4166
    %v4202 = vpack.c.b16 %v4169, %v4168
    %v4203 = vpack.c.b16 %v4171, %v4170
    %4236 = vmatprep.subr.bf16.mxu0 0
    %4237 = vmatpush1.bf16.msra.mxu0 %v4172
    %4238 = vmatprep.subr.bf16.mxu0 0
    %4239 = vmatpush1.bf16.msra.mxu0 %v4173
    %4240 = vmatprep.subr.bf16.mxu0 0
    %4241 = vmatpush1.bf16.msra.mxu0 %v4174
    %4242 = vmatprep.subr.bf16.mxu0 0
    %4243 = vmatpush1.bf16.msra.mxu0 %v4175
    %4244 = vmatprep.subr.bf16.mxu0 0
    %4245 = vmatpush1.bf16.msra.mxu0 %v4176
    %4246 = vmatprep.subr.bf16.mxu0 0
    %4247 = vmatpush1.bf16.msra.mxu0 %v4177
    %4248 = vmatprep.subr.bf16.mxu0 0
    %4249 = vmatpush1.bf16.msra.mxu0 %v4178
    %4250 = vmatprep.subr.bf16.mxu0 0
    %4251 = vmatpush1.bf16.msra.mxu0 %v4179
    %4252 = vmatprep.subr.bf16.mxu0 0
    %4253 = vmatpush1.bf16.msra.mxu0 %v4180
    %4254 = vmatprep.subr.bf16.mxu0 0
    %4255 = vmatpush1.bf16.msra.mxu0 %v4181
    %4256 = vmatprep.subr.bf16.mxu0 0
    %4257 = vmatpush1.bf16.msra.mxu0 %v4182
    %4258 = vmatprep.subr.bf16.mxu0 0
    %4259 = vmatpush1.bf16.msra.mxu0 %v4183
    %4260 = vmatprep.subr.bf16.mxu0 0
    %4261 = vmatpush1.bf16.msra.mxu0 %v4184
    %4262 = vmatprep.subr.bf16.mxu0 0
    %4263 = vmatpush1.bf16.msra.mxu0 %v4185
    %4264 = vmatprep.subr.bf16.mxu0 0
    %4265 = vmatpush1.bf16.msra.mxu0 %v4186
    %4266 = vmatprep.subr.bf16.mxu0 0
    %4267 = vmatpush1.bf16.msra.mxu0 %v4187
    %4268 = vmatprep.mubr.f32.mxu0 %v3972
    %4269 = vmatmul.mubr.f32.gmra.mrb[0].mxu0 %v3971
    %v4270 = vpop.f32.mrb[0].mxu0
    %v4271 = vadd.f32 %v4043, %v4270
    %v4272 = vpop.f32.mrb[0].mxu0
    %4273 = vdwg.mxu0
    %4274 = vmatprep.subr.bf16.mxu0 0
    %4275 = vmatpush1.bf16.msra.mxu0 %v4188
    %4276 = vmatprep.subr.bf16.mxu0 0
    %4277 = vmatpush1.bf16.msra.mxu0 %v4189
    %4278 = vmatprep.subr.bf16.mxu0 0
    %4279 = vmatpush1.bf16.msra.mxu0 %v4190
    %4280 = vmatprep.subr.bf16.mxu0 0
    %4281 = vmatpush1.bf16.msra.mxu0 %v4191
    %4282 = vmatprep.subr.bf16.mxu0 0
    %4283 = vmatpush1.bf16.msra.mxu0 %v4192
    %4284 = vmatprep.subr.bf16.mxu0 0
    %4285 = vmatpush1.bf16.msra.mxu0 %v4193
    %4286 = vmatprep.subr.bf16.mxu0 0
    %4287 = vmatpush1.bf16.msra.mxu0 %v4194
    %4288 = vmatprep.subr.bf16.mxu0 0
    %4289 = vmatpush1.bf16.msra.mxu0 %v4195
    %4290 = vmatprep.subr.bf16.mxu0 0
    %4291 = vmatpush1.bf16.msra.mxu0 %v4196
    %4292 = vmatprep.subr.bf16.mxu0 0
    %4293 = vmatpush1.bf16.msra.mxu0 %v4197
    %4294 = vmatprep.subr.bf16.mxu0 0
    %4295 = vmatpush1.bf16.msra.mxu0 %v4198
    %4296 = vmatprep.subr.bf16.mxu0 0
    %4297 = vmatpush1.bf16.msra.mxu0 %v4199
    %4298 = vmatprep.subr.bf16.mxu0 0
    %4299 = vmatpush1.bf16.msra.mxu0 %v4200
    %4300 = vmatprep.subr.bf16.mxu0 0
    %4301 = vmatpush1.bf16.msra.mxu0 %v4201
    %4302 = vmatprep.subr.bf16.mxu0 0
    %4303 = vmatpush1.bf16.msra.mxu0 %v4202
    %4304 = vmatprep.subr.bf16.mxu0 0
    %4305 = vmatpush1.bf16.msra.mxu0 %v4203
    %4306 = vmatprep.mubr.f32.mxu0 %v3974
    %4307 = vmatmul.mubr.f32.gmra.mrb[0].mxu0 %v3973
    %v4308 = vpop.f32.mrb[0].mxu0
    %v4309 = vadd.f32 %v4271, %v4308
    %v4310 = vpop.f32.mrb[0].mxu0
    %4311 = vdwg.mxu0
    %v4312 = vadd.f32 %v3660, %v4309
    %4313 = vadd.xlane.f32.xlu0 %v4312
    %v4314 = vpop.xlane.xlu0 %4313
    %v4315 = vmul.f32 %v4314, %v428
    %v4316 = vsub.f32 %v4312, %v4315
    %v4317 = vmul.f32 %v4316, %v4316
    %4318 = vadd.xlane.f32.xlu0 %v4317
    %v4319 = vpop.xlane.xlu0 %4318
    %v4320 = vmul.f32 %v4319, %v428
    %v4321 = vadd.f32 %v4320, 1e-05
    %v4322 = vrsqrt.pop %v4321
    %v4323 = vmul.f32 %v4316, %v4322
    %v4324 = vlaneseq
    %v4325 = vshrl.u32 %v4324, 7
    %v4326 = vsub.s32 4, %v4325
    %v4327 = vrot.slane %v3531, %v4326
    %v4328 = vmul.f32 %v4323, %v4327
    %v4329 = vlaneseq
    %v4330 = vshrl.u32 %v4329, 7
    %v4331 = vsub.s32 5, %v4330
    %v4332 = vrot.slane %v3531, %v4331
    %v4333 = vadd.f32 %v4328, %v4332
    %s4334 = scalar_lea.vmem %s9, 40
    %v4335 = vld [vmem:[%s4334] sm:$0x3f]
    %s4336 = scalar_lea.vmem [#allocation8], 320
    %v4337 = vld [vmem:[%s4336] sm:$0xf]
    %v4338 = vld [vmem:[%s4336 + $0x4] sm:$0xf]
    %v4339 = vld [vmem:[%s4336 + $0x8] sm:$0xf]
    %v4340 = vld [vmem:[%s4336 + $0xc] sm:$0xf]
    %v4341 = vld [vmem:[%s4336 + $0x10] sm:$0xf]
    %v4342 = vld [vmem:[%s4336 + $0x14] sm:$0xf]
    %v4343 = vld [vmem:[%s4336 + $0x18] sm:$0xf]
    %v4344 = vld [vmem:[%s4336 + $0x1c] sm:$0xf]
    %v4345 = vld [vmem:[%s4336 + $0x20] sm:$0xf]
    %v4346 = vld [vmem:[%s4336 + $0x24] sm:$0xf]
    %v4347 = vld [vmem:[%s4336 + $0x28] sm:$0xf]
    %v4348 = vld [vmem:[%s4336 + $0x2c] sm:$0xf]
    %v4349 = vld [vmem:[%s4336 + $0x30] sm:$0xf]
    %v4350 = vld [vmem:[%s4336 + $0x34] sm:$0xf]
    %v4351 = vld [vmem:[%s4336 + $0x38] sm:$0xf]
    %v4352 = vld [vmem:[%s4336 + $0x3c] sm:$0xf]
    %v4353 = vlaneseq
    %v4354 = vshrl.u32 %v4353, 7
    %v4355 = vsub.s32 0, %v4354
    %v4356 = vrot.slane %v4335, %v4355
    %v4373 = vunpack.c.l.b16 %v4337
    %v4374 = vunpack.c.l.b16 %v4338
    %v4375 = vunpack.c.l.b16 %v4339
    %v4376 = vunpack.c.l.b16 %v4340
    %v4377 = vunpack.c.l.b16 %v4341
    %v4378 = vunpack.c.l.b16 %v4342
    %v4379 = vunpack.c.l.b16 %v4343
    %v4380 = vunpack.c.l.b16 %v4344
    %v4381 = vunpack.c.l.b16 %v4345
    %v4382 = vunpack.c.l.b16 %v4346
    %v4383 = vunpack.c.l.b16 %v4347
    %v4384 = vunpack.c.l.b16 %v4348
    %v4385 = vunpack.c.l.b16 %v4349
    %v4386 = vunpack.c.l.b16 %v4350
    %v4387 = vunpack.c.l.b16 %v4351
    %v4388 = vunpack.c.l.b16 %v4352
    %v4389 = vpack.c.b16 %v4374, %v4373
    %v4390 = vpack.c.b16 %v4376, %v4375
    %v4391 = vpack.c.b16 %v4378, %v4377
    %v4392 = vpack.c.b16 %v4380, %v4379
    %v4393 = vpack.c.b16 %v4382, %v4381
    %v4394 = vpack.c.b16 %v4384, %v4383
    %v4395 = vpack.c.b16 %v4386, %v4385
    %v4396 = vpack.c.b16 %v4388, %v4387
    %4405 = vmatprep.subr.bf16.mxu0 0
    %4406 = vmatpush1.bf16.msra.mxu0 %v4389
    %4407 = vmatprep.subr.bf16.mxu0 0
    %4408 = vmatpush1.bf16.msra.mxu0 %v4390
    %4409 = vmatprep.subr.bf16.mxu0 0
    %4410 = vmatpush1.bf16.msra.mxu0 %v4391
    %4411 = vmatprep.subr.bf16.mxu0 0
    %4412 = vmatpush1.bf16.msra.mxu0 %v4392
    %4413 = vmatprep.subr.bf16.mxu0 0
    %4414 = vmatpush1.bf16.msra.mxu0 %v4393
    %4415 = vmatprep.subr.bf16.mxu0 0
    %4416 = vmatpush1.bf16.msra.mxu0 %v4394
    %4417 = vmatprep.subr.bf16.mxu0 0
    %4418 = vmatpush1.bf16.msra.mxu0 %v4395
    %4419 = vmatprep.subr.bf16.mxu0 0
    %4420 = vmatpush1.bf16.msra.mxu0 %v4396
    %4421 = vmatprep.subr.bf16.mxu0 0
    %4422 = vmatpush1.bf16.msra.mxu0 0
    %4423 = vmatprep.subr.bf16.mxu0 0
    %4424 = vmatpush1.bf16.msra.mxu0 0
    %4425 = vmatprep.subr.bf16.mxu0 0
    %4426 = vmatpush1.bf16.msra.mxu0 0
    %4427 = vmatprep.subr.bf16.mxu0 0
    %4428 = vmatpush1.bf16.msra.mxu0 0
    %4429 = vmatprep.subr.bf16.mxu0 0
    %4430 = vmatpush1.bf16.msra.mxu0 0
    %4431 = vmatprep.subr.bf16.mxu0 0
    %4432 = vmatpush1.bf16.msra.mxu0 0
    %4433 = vmatprep.subr.bf16.mxu0 0
    %4434 = vmatpush1.bf16.msra.mxu0 0
    %4435 = vmatprep.subr.bf16.mxu0 0
    %4436 = vmatpush1.bf16.msra.mxu0 0
    %4437 = vmatprep.mubr.f32.mxu0 0.0
    %4438 = vmatmul.mubr.f32.gmra.mrb[0].mxu0 %v4333
    %v4439 = vpop.f32.mrb[0].mxu0
    %v4440 = vadd.f32 %v4356, %v4439
    %v4441 = vpop.f32.mrb[0].mxu0
    %4442 = vdwg.mxu0
    %v4443 = vadd.f32 %v4333, %v4440
    %4444 = vadd.xlane.f32.xlu0 %v4443
    %v4445 = vpop.xlane.xlu0 %4444
    %v4446 = vmul.f32 %v4445, %v428
    %v4447 = vsub.f32 %v4443, %v4446
    %v4448 = vmul.f32 %v4447, %v4447
    %4449 = vadd.xlane.f32.xlu0 %v4448
    %v4450 = vpop.xlane.xlu0 %4449
    %v4451 = vmul.f32 %v4450, %v428
    %v4452 = vadd.f32 %v4451, 1e-05
    %v4453 = vrsqrt.pop %v4452
    %v4454 = vmul.f32 %v4447, %v4453
    %v4455 = vlaneseq
    %v4456 = vshrl.u32 %v4455, 7
    %v4457 = vsub.s32 2, %v4456
    %v4458 = vrot.slane %v4335, %v4457
    %v4459 = vmul.f32 %v4454, %v4458
    %v4460 = vlaneseq
    %v4461 = vshrl.u32 %v4460, 7
    %v4462 = vsub.s32 3, %v4461
    %v4463 = vrot.slane %v4335, %v4462
    %v4464 = vadd.f32 %v4459, %v4463
    %s4465 = scalar_lea.vmem [#allocation10], 1280
    %v4466 = vld [vmem:[%s4465] sm:$0xff]
    %v4467 = vld [vmem:[%s4465 + $0x8] sm:$0xff]
    %v4468 = vld [vmem:[%s4465 + $0x10] sm:$0xff]
    %v4469 = vld [vmem:[%s4465 + $0x18] sm:$0xff]
    %v4470 = vld [vmem:[%s4465 + $0x20] sm:$0xff]
    %v4471 = vld [vmem:[%s4465 + $0x28] sm:$0xff]
    %v4472 = vld [vmem:[%s4465 + $0x30] sm:$0xff]
    %v4473 = vld [vmem:[%s4465 + $0x38] sm:$0xff]
    %v4474 = vld [vmem:[%s4465 + $0x40] sm:$0xff]
    %v4475 = vld [vmem:[%s4465 + $0x48] sm:$0xff]
    %v4476 = vld [vmem:[%s4465 + $0x50] sm:$0xff]
    %v4477 = vld [vmem:[%s4465 + $0x58] sm:$0xff]
    %v4478 = vld [vmem:[%s4465 + $0x60] sm:$0xff]
    %v4479 = vld [vmem:[%s4465 + $0x68] sm:$0xff]
    %v4480 = vld [vmem:[%s4465 + $0x70] sm:$0xff]
    %v4481 = vld [vmem:[%s4465 + $0x78] sm:$0xff]
    %v4482 = vld [vmem:[%s4465 + $0x80] sm:$0xff]
    %v4483 = vld [vmem:[%s4465 + $0x88] sm:$0xff]
    %v4484 = vld [vmem:[%s4465 + $0x90] sm:$0xff]
    %v4485 = vld [vmem:[%s4465 + $0x98] sm:$0xff]
    %v4486 = vld [vmem:[%s4465 + $0xa0] sm:$0xff]
    %v4487 = vld [vmem:[%s4465 + $0xa8] sm:$0xff]
    %v4488 = vld [vmem:[%s4465 + $0xb0] sm:$0xff]
    %v4489 = vld [vmem:[%s4465 + $0xb8] sm:$0xff]
    %v4490 = vld [vmem:[%s4465 + $0xc0] sm:$0xff]
    %v4491 = vld [vmem:[%s4465 + $0xc8] sm:$0xff]
    %v4492 = vld [vmem:[%s4465 + $0xd0] sm:$0xff]
    %v4493 = vld [vmem:[%s4465 + $0xd8] sm:$0xff]
    %v4494 = vld [vmem:[%s4465 + $0xe0] sm:$0xff]
    %v4495 = vld [vmem:[%s4465 + $0xe8] sm:$0xff]
    %v4496 = vld [vmem:[%s4465 + $0xf0] sm:$0xff]
    %v4497 = vld [vmem:[%s4465 + $0xf8] sm:$0xff]
    %s4498 = scalar_lea.vmem [#allocation11], 20
    %v4499 = vld [vmem:[%s4498] sm:$0xf]
    %v4501 = vlaneseq
    %v4502 = vshrl.u32 %v4501, 7
    %v4503 = vsub.s32 0, %v4502
    %v4504 = vrot.slane %v4499, %v4503
    %v4505 = vlaneseq
    %v4506 = vshrl.u32 %v4505, 7
    %v4507 = vsub.s32 1, %v4506
    %v4508 = vrot.slane %v4499, %v4507
    %v4509 = vlaneseq
    %v4510 = vshrl.u32 %v4509, 7
    %v4511 = vsub.s32 2, %v4510
    %v4512 = vrot.slane %v4499, %v4511
    %v4513 = vlaneseq
    %v4514 = vshrl.u32 %v4513, 7
    %v4515 = vsub.s32 3, %v4514
    %v4516 = vrot.slane %v4499, %v4515
    %v4553 = vunpack.c.l.b16 %v4466
    %v4554 = vunpack.c.h.b16 %v4466
    %v4555 = vunpack.c.l.b16 %v4467
    %v4556 = vunpack.c.h.b16 %v4467
    %v4557 = vunpack.c.l.b16 %v4468
    %v4558 = vunpack.c.h.b16 %v4468
    %v4559 = vunpack.c.l.b16 %v4469
    %v4560 = vunpack.c.h.b16 %v4469
    %v4561 = vunpack.c.l.b16 %v4470
    %v4562 = vunpack.c.h.b16 %v4470
    %v4563 = vunpack.c.l.b16 %v4471
    %v4564 = vunpack.c.h.b16 %v4471
    %v4565 = vunpack.c.l.b16 %v4472
    %v4566 = vunpack.c.h.b16 %v4472
    %v4567 = vunpack.c.l.b16 %v4473
    %v4568 = vunpack.c.h.b16 %v4473
    %v4569 = vunpack.c.l.b16 %v4474
    %v4570 = vunpack.c.h.b16 %v4474
    %v4571 = vunpack.c.l.b16 %v4475
    %v4572 = vunpack.c.h.b16 %v4475
    %v4573 = vunpack.c.l.b16 %v4476
    %v4574 = vunpack.c.h.b16 %v4476
    %v4575 = vunpack.c.l.b16 %v4477
    %v4576 = vunpack.c.h.b16 %v4477
    %v4577 = vunpack.c.l.b16 %v4478
    %v4578 = vunpack.c.h.b16 %v4478
    %v4579 = vunpack.c.l.b16 %v4479
    %v4580 = vunpack.c.h.b16 %v4479
    %v4581 = vunpack.c.l.b16 %v4480
    %v4582 = vunpack.c.h.b16 %v4480
    %v4583 = vunpack.c.l.b16 %v4481
    %v4584 = vunpack.c.h.b16 %v4481
    %v4585 = vunpack.c.l.b16 %v4482
    %v4586 = vunpack.c.h.b16 %v4482
    %v4587 = vunpack.c.l.b16 %v4483
    %v4588 = vunpack.c.h.b16 %v4483
    %v4589 = vunpack.c.l.b16 %v4484
    %v4590 = vunpack.c.h.b16 %v4484
    %v4591 = vunpack.c.l.b16 %v4485
    %v4592 = vunpack.c.h.b16 %v4485
    %v4593 = vunpack.c.l.b16 %v4486
    %v4594 = vunpack.c.h.b16 %v4486
    %v4595 = vunpack.c.l.b16 %v4487
    %v4596 = vunpack.c.h.b16 %v4487
    %v4597 = vunpack.c.l.b16 %v4488
    %v4598 = vunpack.c.h.b16 %v4488
    %v4599 = vunpack.c.l.b16 %v4489
    %v4600 = vunpack.c.h.b16 %v4489
    %v4601 = vunpack.c.l.b16 %v4490
    %v4602 = vunpack.c.h.b16 %v4490
    %v4603 = vunpack.c.l.b16 %v4491
    %v4604 = vunpack.c.h.b16 %v4491
    %v4605 = vunpack.c.l.b16 %v4492
    %v4606 = vunpack.c.h.b16 %v4492
    %v4607 = vunpack.c.l.b16 %v4493
    %v4608 = vunpack.c.h.b16 %v4493
    %v4609 = vunpack.c.l.b16 %v4494
    %v4610 = vunpack.c.h.b16 %v4494
    %v4611 = vunpack.c.l.b16 %v4495
    %v4612 = vunpack.c.h.b16 %v4495
    %v4613 = vunpack.c.l.b16 %v4496
    %v4614 = vunpack.c.h.b16 %v4496
    %v4615 = vunpack.c.l.b16 %v4497
    %v4616 = vunpack.c.h.b16 %v4497
    %v4617 = vpack.c.b16 %v4557, %v4553
    %v4618 = vpack.c.b16 %v4558, %v4554
    %v4619 = vpack.c.b16 %v4559, %v4555
    %v4620 = vpack.c.b16 %v4560, %v4556
    %v4621 = vpack.c.b16 %v4565, %v4561
    %v4622 = vpack.c.b16 %v4566, %v4562
    %v4623 = vpack.c.b16 %v4567, %v4563
    %v4624 = vpack.c.b16 %v4568, %v4564
    %v4625 = vpack.c.b16 %v4573, %v4569
    %v4626 = vpack.c.b16 %v4574, %v4570
    %v4627 = vpack.c.b16 %v4575, %v4571
    %v4628 = vpack.c.b16 %v4576, %v4572
    %v4629 = vpack.c.b16 %v4581, %v4577
    %v4630 = vpack.c.b16 %v4582, %v4578
    %v4631 = vpack.c.b16 %v4583, %v4579
    %v4632 = vpack.c.b16 %v4584, %v4580
    %v4633 = vpack.c.b16 %v4589, %v4585
    %v4634 = vpack.c.b16 %v4590, %v4586
    %v4635 = vpack.c.b16 %v4591, %v4587
    %v4636 = vpack.c.b16 %v4592, %v4588
    %v4637 = vpack.c.b16 %v4597, %v4593
    %v4638 = vpack.c.b16 %v4598, %v4594
    %v4639 = vpack.c.b16 %v4599, %v4595
    %v4640 = vpack.c.b16 %v4600, %v4596
    %v4641 = vpack.c.b16 %v4605, %v4601
    %v4642 = vpack.c.b16 %v4606, %v4602
    %v4643 = vpack.c.b16 %v4607, %v4603
    %v4644 = vpack.c.b16 %v4608, %v4604
    %v4645 = vpack.c.b16 %v4613, %v4609
    %v4646 = vpack.c.b16 %v4614, %v4610
    %v4647 = vpack.c.b16 %v4615, %v4611
    %v4648 = vpack.c.b16 %v4616, %v4612
    %4681 = vmatprep.subr.bf16.mxu0 %v4618
    %4682 = vmatpush1.bf16.msra.mxu0 %v4617
    %4683 = vmatprep.subr.bf16.mxu0 %v4622
    %4684 = vmatpush1.bf16.msra.mxu0 %v4621
    %4685 = vmatprep.subr.bf16.mxu0 %v4626
    %4686 = vmatpush1.bf16.msra.mxu0 %v4625
    %4687 = vmatprep.subr.bf16.mxu0 %v4630
    %4688 = vmatpush1.bf16.msra.mxu0 %v4629
    %4689 = vmatprep.subr.bf16.mxu0 %v4634
    %4690 = vmatpush1.bf16.msra.mxu0 %v4633
    %4691 = vmatprep.subr.bf16.mxu0 %v4638
    %4692 = vmatpush1.bf16.msra.mxu0 %v4637
    %4693 = vmatprep.subr.bf16.mxu0 %v4642
    %4694 = vmatpush1.bf16.msra.mxu0 %v4641
    %4695 = vmatprep.subr.bf16.mxu0 %v4646
    %4696 = vmatpush1.bf16.msra.mxu0 %v4645
    %4697 = vmatprep.subr.bf16.mxu0 0
    %4698 = vmatpush1.bf16.msra.mxu0 0
    %4699 = vmatprep.subr.bf16.mxu0 0
    %4700 = vmatpush1.bf16.msra.mxu0 0
    %4701 = vmatprep.subr.bf16.mxu0 0
    %4702 = vmatpush1.bf16.msra.mxu0 0
    %4703 = vmatprep.subr.bf16.mxu0 0
    %4704 = vmatpush1.bf16.msra.mxu0 0
    %4705 = vmatprep.subr.bf16.mxu0 0
    %4706 = vmatpush1.bf16.msra.mxu0 0
    %4707 = vmatprep.subr.bf16.mxu0 0
    %4708 = vmatpush1.bf16.msra.mxu0 0
    %4709 = vmatprep.subr.bf16.mxu0 0
    %4710 = vmatpush1.bf16.msra.mxu0 0
    %4711 = vmatprep.subr.bf16.mxu0 0
    %4712 = vmatpush1.bf16.msra.mxu0 0
    %4713 = vmatprep.mubr.f32.mxu0 0.0
    %4714 = vmatmul.mubr.f32.gmra.mrb[0].mxu0 %v4464
    %v4715 = vpop.f32.mrb[0].mxu0
    %v4716 = vadd.f32 %v4504, %v4715
    %v4717 = vpop.f32.mrb[0].mxu0
    %v4718 = vadd.f32 %v4508, %v4717
    %4719 = vdwg.mxu0
    %4720 = vmatprep.subr.bf16.mxu0 %v4620
    %4721 = vmatpush1.bf16.msra.mxu0 %v4619
    %4722 = vmatprep.subr.bf16.mxu0 %v4624
    %4723 = vmatpush1.bf16.msra.mxu0 %v4623
    %4724 = vmatprep.subr.bf16.mxu0 %v4628
    %4725 = vmatpush1.bf16.msra.mxu0 %v4627
    %4726 = vmatprep.subr.bf16.mxu0 %v4632
    %4727 = vmatpush1.bf16.msra.mxu0 %v4631
    %4728 = vmatprep.subr.bf16.mxu0 %v4636
    %4729 = vmatpush1.bf16.msra.mxu0 %v4635
    %4730 = vmatprep.subr.bf16.mxu0 %v4640
    %4731 = vmatpush1.bf16.msra.mxu0 %v4639
    %4732 = vmatprep.subr.bf16.mxu0 %v4644
    %4733 = vmatpush1.bf16.msra.mxu0 %v4643
    %4734 = vmatprep.subr.bf16.mxu0 %v4648
    %4735 = vmatpush1.bf16.msra.mxu0 %v4647
    %4736 = vmatprep.subr.bf16.mxu0 0
    %4737 = vmatpush1.bf16.msra.mxu0 0
    %4738 = vmatprep.subr.bf16.mxu0 0
    %4739 = vmatpush1.bf16.msra.mxu0 0
    %4740 = vmatprep.subr.bf16.mxu0 0
    %4741 = vmatpush1.bf16.msra.mxu0 0
    %4742 = vmatprep.subr.bf16.mxu0 0
    %4743 = vmatpush1.bf16.msra.mxu0 0
    %4744 = vmatprep.subr.bf16.mxu0 0
    %4745 = vmatpush1.bf16.msra.mxu0 0
    %4746 = vmatprep.subr.bf16.mxu0 0
    %4747 = vmatpush1.bf16.msra.mxu0 0
    %4748 = vmatprep.subr.bf16.mxu0 0
    %4749 = vmatpush1.bf16.msra.mxu0 0
    %4750 = vmatprep.subr.bf16.mxu0 0
    %4751 = vmatpush1.bf16.msra.mxu0 0
    %4752 = vmatprep.mubr.f32.mxu0 0.0
    %4753 = vmatmul.mubr.f32.gmra.mrb[0].mxu0 %v4464
    %v4754 = vpop.f32.mrb[0].mxu0
    %v4755 = vadd.f32 %v4512, %v4754
    %v4756 = vpop.f32.mrb[0].mxu0
    %v4757 = vadd.f32 %v4516, %v4756
    %4758 = vdwg.mxu0
    %v4759 = vmul.f32 %v4716, 0.5
    %v4760 = vmul.f32 %v4718, 0.5
    %v4761 = vmul.f32 %v4755, 0.5
    %v4762 = vmul.f32 %v4757, 0.5
    %v4763 = vmul.f32 %v4716, 0.70710677
    %v4764 = vmul.f32 %v4718, 0.70710677
    %v4765 = vmul.f32 %v4755, 0.70710677
    %v4766 = vmul.f32 %v4757, 0.70710677
    %v4767 = verf.f32.pop %v4763
    %v4768 = verf.f32.pop %v4764
    %v4769 = verf.f32.pop %v4765
    %v4770 = verf.f32.pop %v4766
    %v4771 = vadd.f32 %v4767, 1.0
    %v4772 = vadd.f32 %v4768, 1.0
    %v4773 = vadd.f32 %v4769, 1.0
    %v4774 = vadd.f32 %v4770, 1.0
    %v4775 = vmul.f32 %v4759, %v4771
    %v4776 = vmul.f32 %v4760, %v4772
    %v4777 = vmul.f32 %v4761, %v4773
    %v4778 = vmul.f32 %v4762, %v4774
    %s4779 = scalar_lea.vmem [#allocation13], 1280
    %v4780 = vld [vmem:[%s4779] sm:$0xf]
    %v4781 = vld [vmem:[%s4779 + $0x4] sm:$0xf]
    %v4782 = vld [vmem:[%s4779 + $0x8] sm:$0xf]
    %v4783 = vld [vmem:[%s4779 + $0xc] sm:$0xf]
    %v4784 = vld [vmem:[%s4779 + $0x10] sm:$0xf]
    %v4785 = vld [vmem:[%s4779 + $0x14] sm:$0xf]
    %v4786 = vld [vmem:[%s4779 + $0x18] sm:$0xf]
    %v4787 = vld [vmem:[%s4779 + $0x1c] sm:$0xf]
    %v4788 = vld [vmem:[%s4779 + $0x20] sm:$0xf]
    %v4789 = vld [vmem:[%s4779 + $0x24] sm:$0xf]
    %v4790 = vld [vmem:[%s4779 + $0x28] sm:$0xf]
    %v4791 = vld [vmem:[%s4779 + $0x2c] sm:$0xf]
    %v4792 = vld [vmem:[%s4779 + $0x30] sm:$0xf]
    %v4793 = vld [vmem:[%s4779 + $0x34] sm:$0xf]
    %v4794 = vld [vmem:[%s4779 + $0x38] sm:$0xf]
    %v4795 = vld [vmem:[%s4779 + $0x3c] sm:$0xf]
    %v4796 = vld [vmem:[%s4779 + $0x40] sm:$0xf]
    %v4797 = vld [vmem:[%s4779 + $0x44] sm:$0xf]
    %v4798 = vld [vmem:[%s4779 + $0x48] sm:$0xf]
    %v4799 = vld [vmem:[%s4779 + $0x4c] sm:$0xf]
    %v4800 = vld [vmem:[%s4779 + $0x50] sm:$0xf]
    %v4801 = vld [vmem:[%s4779 + $0x54] sm:$0xf]
    %v4802 = vld [vmem:[%s4779 + $0x58] sm:$0xf]
    %v4803 = vld [vmem:[%s4779 + $0x5c] sm:$0xf]
    %v4804 = vld [vmem:[%s4779 + $0x60] sm:$0xf]
    %v4805 = vld [vmem:[%s4779 + $0x64] sm:$0xf]
    %v4806 = vld [vmem:[%s4779 + $0x68] sm:$0xf]
    %v4807 = vld [vmem:[%s4779 + $0x6c] sm:$0xf]
    %v4808 = vld [vmem:[%s4779 + $0x70] sm:$0xf]
    %v4809 = vld [vmem:[%s4779 + $0x74] sm:$0xf]
    %v4810 = vld [vmem:[%s4779 + $0x78] sm:$0xf]
    %v4811 = vld [vmem:[%s4779 + $0x7c] sm:$0xf]
    %v4812 = vld [vmem:[%s4779 + $0x80] sm:$0xf]
    %v4813 = vld [vmem:[%s4779 + $0x84] sm:$0xf]
    %v4814 = vld [vmem:[%s4779 + $0x88] sm:$0xf]
    %v4815 = vld [vmem:[%s4779 + $0x8c] sm:$0xf]
    %v4816 = vld [vmem:[%s4779 + $0x90] sm:$0xf]
    %v4817 = vld [vmem:[%s4779 + $0x94] sm:$0xf]
    %v4818 = vld [vmem:[%s4779 + $0x98] sm:$0xf]
    %v4819 = vld [vmem:[%s4779 + $0x9c] sm:$0xf]
    %v4820 = vld [vmem:[%s4779 + $0xa0] sm:$0xf]
    %v4821 = vld [vmem:[%s4779 + $0xa4] sm:$0xf]
    %v4822 = vld [vmem:[%s4779 + $0xa8] sm:$0xf]
    %v4823 = vld [vmem:[%s4779 + $0xac] sm:$0xf]
    %v4824 = vld [vmem:[%s4779 + $0xb0] sm:$0xf]
    %v4825 = vld [vmem:[%s4779 + $0xb4] sm:$0xf]
    %v4826 = vld [vmem:[%s4779 + $0xb8] sm:$0xf]
    %v4827 = vld [vmem:[%s4779 + $0xbc] sm:$0xf]
    %v4828 = vld [vmem:[%s4779 + $0xc0] sm:$0xf]
    %v4829 = vld [vmem:[%s4779 + $0xc4] sm:$0xf]
    %v4830 = vld [vmem:[%s4779 + $0xc8] sm:$0xf]
    %v4831 = vld [vmem:[%s4779 + $0xcc] sm:$0xf]
    %v4832 = vld [vmem:[%s4779 + $0xd0] sm:$0xf]
    %v4833 = vld [vmem:[%s4779 + $0xd4] sm:$0xf]
    %v4834 = vld [vmem:[%s4779 + $0xd8] sm:$0xf]
    %v4835 = vld [vmem:[%s4779 + $0xdc] sm:$0xf]
    %v4836 = vld [vmem:[%s4779 + $0xe0] sm:$0xf]
    %v4837 = vld [vmem:[%s4779 + $0xe4] sm:$0xf]
    %v4838 = vld [vmem:[%s4779 + $0xe8] sm:$0xf]
    %v4839 = vld [vmem:[%s4779 + $0xec] sm:$0xf]
    %v4840 = vld [vmem:[%s4779 + $0xf0] sm:$0xf]
    %v4841 = vld [vmem:[%s4779 + $0xf4] sm:$0xf]
    %v4842 = vld [vmem:[%s4779 + $0xf8] sm:$0xf]
    %v4843 = vld [vmem:[%s4779 + $0xfc] sm:$0xf]
    %v4844 = vlaneseq
    %v4845 = vshrl.u32 %v4844, 7
    %v4846 = vsub.s32 1, %v4845
    %v4847 = vrot.slane %v4335, %v4846
    %v4912 = vunpack.c.l.b16 %v4780
    %v4913 = vunpack.c.l.b16 %v4781
    %v4914 = vunpack.c.l.b16 %v4782
    %v4915 = vunpack.c.l.b16 %v4783
    %v4916 = vunpack.c.l.b16 %v4784
    %v4917 = vunpack.c.l.b16 %v4785
    %v4918 = vunpack.c.l.b16 %v4786
    %v4919 = vunpack.c.l.b16 %v4787
    %v4920 = vunpack.c.l.b16 %v4788
    %v4921 = vunpack.c.l.b16 %v4789
    %v4922 = vunpack.c.l.b16 %v4790
    %v4923 = vunpack.c.l.b16 %v4791
    %v4924 = vunpack.c.l.b16 %v4792
    %v4925 = vunpack.c.l.b16 %v4793
    %v4926 = vunpack.c.l.b16 %v4794
    %v4927 = vunpack.c.l.b16 %v4795
    %v4928 = vunpack.c.l.b16 %v4796
    %v4929 = vunpack.c.l.b16 %v4797
    %v4930 = vunpack.c.l.b16 %v4798
    %v4931 = vunpack.c.l.b16 %v4799
    %v4932 = vunpack.c.l.b16 %v4800
    %v4933 = vunpack.c.l.b16 %v4801
    %v4934 = vunpack.c.l.b16 %v4802
    %v4935 = vunpack.c.l.b16 %v4803
    %v4936 = vunpack.c.l.b16 %v4804
    %v4937 = vunpack.c.l.b16 %v4805
    %v4938 = vunpack.c.l.b16 %v4806
    %v4939 = vunpack.c.l.b16 %v4807
    %v4940 = vunpack.c.l.b16 %v4808
    %v4941 = vunpack.c.l.b16 %v4809
    %v4942 = vunpack.c.l.b16 %v4810
    %v4943 = vunpack.c.l.b16 %v4811
    %v4944 = vunpack.c.l.b16 %v4812
    %v4945 = vunpack.c.l.b16 %v4813
    %v4946 = vunpack.c.l.b16 %v4814
    %v4947 = vunpack.c.l.b16 %v4815
    %v4948 = vunpack.c.l.b16 %v4816
    %v4949 = vunpack.c.l.b16 %v4817
    %v4950 = vunpack.c.l.b16 %v4818
    %v4951 = vunpack.c.l.b16 %v4819
    %v4952 = vunpack.c.l.b16 %v4820
    %v4953 = vunpack.c.l.b16 %v4821
    %v4954 = vunpack.c.l.b16 %v4822
    %v4955 = vunpack.c.l.b16 %v4823
    %v4956 = vunpack.c.l.b16 %v4824
    %v4957 = vunpack.c.l.b16 %v4825
    %v4958 = vunpack.c.l.b16 %v4826
    %v4959 = vunpack.c.l.b16 %v4827
    %v4960 = vunpack.c.l.b16 %v4828
    %v4961 = vunpack.c.l.b16 %v4829
    %v4962 = vunpack.c.l.b16 %v4830
    %v4963 = vunpack.c.l.b16 %v4831
    %v4964 = vunpack.c.l.b16 %v4832
    %v4965 = vunpack.c.l.b16 %v4833
    %v4966 = vunpack.c.l.b16 %v4834
    %v4967 = vunpack.c.l.b16 %v4835
    %v4968 = vunpack.c.l.b16 %v4836
    %v4969 = vunpack.c.l.b16 %v4837
    %v4970 = vunpack.c.l.b16 %v4838
    %v4971 = vunpack.c.l.b16 %v4839
    %v4972 = vunpack.c.l.b16 %v4840
    %v4973 = vunpack.c.l.b16 %v4841
    %v4974 = vunpack.c.l.b16 %v4842
    %v4975 = vunpack.c.l.b16 %v4843
    %v4976 = vpack.c.b16 %v4913, %v4912
    %v4977 = vpack.c.b16 %v4915, %v4914
    %v4978 = vpack.c.b16 %v4917, %v4916
    %v4979 = vpack.c.b16 %v4919, %v4918
    %v4980 = vpack.c.b16 %v4921, %v4920
    %v4981 = vpack.c.b16 %v4923, %v4922
    %v4982 = vpack.c.b16 %v4925, %v4924
    %v4983 = vpack.c.b16 %v4927, %v4926
    %v4984 = vpack.c.b16 %v4929, %v4928
    %v4985 = vpack.c.b16 %v4931, %v4930
    %v4986 = vpack.c.b16 %v4933, %v4932
    %v4987 = vpack.c.b16 %v4935, %v4934
    %v4988 = vpack.c.b16 %v4937, %v4936
    %v4989 = vpack.c.b16 %v4939, %v4938
    %v4990 = vpack.c.b16 %v4941, %v4940
    %v4991 = vpack.c.b16 %v4943, %v4942
    %v4992 = vpack.c.b16 %v4945, %v4944
    %v4993 = vpack.c.b16 %v4947, %v4946
    %v4994 = vpack.c.b16 %v4949, %v4948
    %v4995 = vpack.c.b16 %v4951, %v4950
    %v4996 = vpack.c.b16 %v4953, %v4952
    %v4997 = vpack.c.b16 %v4955, %v4954
    %v4998 = vpack.c.b16 %v4957, %v4956
    %v4999 = vpack.c.b16 %v4959, %v4958
    %v5000 = vpack.c.b16 %v4961, %v4960
    %v5001 = vpack.c.b16 %v4963, %v4962
    %v5002 = vpack.c.b16 %v4965, %v4964
    %v5003 = vpack.c.b16 %v4967, %v4966
    %v5004 = vpack.c.b16 %v4969, %v4968
    %v5005 = vpack.c.b16 %v4971, %v4970
    %v5006 = vpack.c.b16 %v4973, %v4972
    %v5007 = vpack.c.b16 %v4975, %v4974
    %5040 = vmatprep.subr.bf16.mxu0 0
    %5041 = vmatpush1.bf16.msra.mxu0 %v4976
    %5042 = vmatprep.subr.bf16.mxu0 0
    %5043 = vmatpush1.bf16.msra.mxu0 %v4977
    %5044 = vmatprep.subr.bf16.mxu0 0
    %5045 = vmatpush1.bf16.msra.mxu0 %v4978
    %5046 = vmatprep.subr.bf16.mxu0 0
    %5047 = vmatpush1.bf16.msra.mxu0 %v4979
    %5048 = vmatprep.subr.bf16.mxu0 0
    %5049 = vmatpush1.bf16.msra.mxu0 %v4980
    %5050 = vmatprep.subr.bf16.mxu0 0
    %5051 = vmatpush1.bf16.msra.mxu0 %v4981
    %5052 = vmatprep.subr.bf16.mxu0 0
    %5053 = vmatpush1.bf16.msra.mxu0 %v4982
    %5054 = vmatprep.subr.bf16.mxu0 0
    %5055 = vmatpush1.bf16.msra.mxu0 %v4983
    %5056 = vmatprep.subr.bf16.mxu0 0
    %5057 = vmatpush1.bf16.msra.mxu0 %v4984
    %5058 = vmatprep.subr.bf16.mxu0 0
    %5059 = vmatpush1.bf16.msra.mxu0 %v4985
    %5060 = vmatprep.subr.bf16.mxu0 0
    %5061 = vmatpush1.bf16.msra.mxu0 %v4986
    %5062 = vmatprep.subr.bf16.mxu0 0
    %5063 = vmatpush1.bf16.msra.mxu0 %v4987
    %5064 = vmatprep.subr.bf16.mxu0 0
    %5065 = vmatpush1.bf16.msra.mxu0 %v4988
    %5066 = vmatprep.subr.bf16.mxu0 0
    %5067 = vmatpush1.bf16.msra.mxu0 %v4989
    %5068 = vmatprep.subr.bf16.mxu0 0
    %5069 = vmatpush1.bf16.msra.mxu0 %v4990
    %5070 = vmatprep.subr.bf16.mxu0 0
    %5071 = vmatpush1.bf16.msra.mxu0 %v4991
    %5072 = vmatprep.mubr.f32.mxu0 %v4776
    %5073 = vmatmul.mubr.f32.gmra.mrb[0].mxu0 %v4775
    %v5074 = vpop.f32.mrb[0].mxu0
    %v5075 = vadd.f32 %v4847, %v5074
    %v5076 = vpop.f32.mrb[0].mxu0
    %5077 = vdwg.mxu0
    %5078 = vmatprep.subr.bf16.mxu0 0
    %5079 = vmatpush1.bf16.msra.mxu0 %v4992
    %5080 = vmatprep.subr.bf16.mxu0 0
    %5081 = vmatpush1.bf16.msra.mxu0 %v4993
    %5082 = vmatprep.subr.bf16.mxu0 0
    %5083 = vmatpush1.bf16.msra.mxu0 %v4994
    %5084 = vmatprep.subr.bf16.mxu0 0
    %5085 = vmatpush1.bf16.msra.mxu0 %v4995
    %5086 = vmatprep.subr.bf16.mxu0 0
    %5087 = vmatpush1.bf16.msra.mxu0 %v4996
    %5088 = vmatprep.subr.bf16.mxu0 0
    %5089 = vmatpush1.bf16.msra.mxu0 %v4997
    %5090 = vmatprep.subr.bf16.mxu0 0
    %5091 = vmatpush1.bf16.msra.mxu0 %v4998
    %5092 = vmatprep.subr.bf16.mxu0 0
    %5093 = vmatpush1.bf16.msra.mxu0 %v4999
    %5094 = vmatprep.subr.bf16.mxu0 0
    %5095 = vmatpush1.bf16.msra.mxu0 %v5000
    %5096 = vmatprep.subr.bf16.mxu0 0
    %5097 = vmatpush1.bf16.msra.mxu0 %v5001
    %5098 = vmatprep.subr.bf16.mxu0 0
    %5099 = vmatpush1.bf16.msra.mxu0 %v5002
    %5100 = vmatprep.subr.bf16.mxu0 0
    %5101 = vmatpush1.bf16.msra.mxu0 %v5003
    %5102 = vmatprep.subr.bf16.mxu0 0
    %5103 = vmatpush1.bf16.msra.mxu0 %v5004
    %5104 = vmatprep.subr.bf16.mxu0 0
    %5105 = vmatpush1.bf16.msra.mxu0 %v5005
    %5106 = vmatprep.subr.bf16.mxu0 0
    %5107 = vmatpush1.bf16.msra.mxu0 %v5006
    %5108 = vmatprep.subr.bf16.mxu0 0
    %5109 = vmatpush1.bf16.msra.mxu0 %v5007
    %5110 = vmatprep.mubr.f32.mxu0 %v4778
    %5111 = vmatmul.mubr.f32.gmra.mrb[0].mxu0 %v4777
    %v5112 = vpop.f32.mrb[0].mxu0
    %v5113 = vadd.f32 %v5075, %v5112
    %v5114 = vpop.f32.mrb[0].mxu0
    %5115 = vdwg.mxu0
    %v5116 = vadd.f32 %v4464, %v5113
    %5117 = vadd.xlane.f32.xlu0 %v5116
    %v5118 = vpop.xlane.xlu0 %5117
    %v5119 = vmul.f32 %v5118, %v428
    %v5120 = vsub.f32 %v5116, %v5119
    %v5121 = vmul.f32 %v5120, %v5120
    %5122 = vadd.xlane.f32.xlu0 %v5121
    %v5123 = vpop.xlane.xlu0 %5122
    %v5124 = vmul.f32 %v5123, %v428
    %v5125 = vadd.f32 %v5124, 1e-05
    %v5126 = vrsqrt.pop %v5125
    %v5127 = vmul.f32 %v5120, %v5126
    %v5128 = vlaneseq
    %v5129 = vshrl.u32 %v5128, 7
    %v5130 = vsub.s32 4, %v5129
    %v5131 = vrot.slane %v4335, %v5130
    %v5132 = vmul.f32 %v5127, %v5131
    %v5133 = vlaneseq
    %v5134 = vshrl.u32 %v5133, 7
    %v5135 = vsub.s32 5, %v5134
    %v5136 = vrot.slane %v4335, %v5135
    %v5137 = vadd.f32 %v5132, %v5136
    %v5138 = vld [vmem:[%s10] sm:$0xf]
    %v5139 = vld [vmem:[%s10 + $0x4] sm:$0xf]
    %v5140 = vld [vmem:[%s10 + $0x8] sm:$0xf]
    %v5141 = vld [vmem:[%s10 + $0xc] sm:$0xf]
    %v5142 = vld [vmem:[%s10 + $0x10] sm:$0xf]
    %v5143 = vld [vmem:[%s10 + $0x14] sm:$0xf]
    %v5144 = vld [vmem:[%s10 + $0x18] sm:$0xf]
    %v5145 = vld [vmem:[%s10 + $0x1c] sm:$0xf]
    %v5146 = vld [vmem:[%s10 + $0x20] sm:$0xf]
    %v5147 = vld [vmem:[%s10 + $0x24] sm:$0xf]
    %v5148 = vld [vmem:[%s10 + $0x28] sm:$0xf]
    %v5149 = vld [vmem:[%s10 + $0x2c] sm:$0xf]
    %v5150 = vld [vmem:[%s10 + $0x30] sm:$0xf]
    %v5151 = vld [vmem:[%s10 + $0x34] sm:$0xf]
    %v5152 = vld [vmem:[%s10 + $0x38] sm:$0xf]
    %v5153 = vld [vmem:[%s10 + $0x3c] sm:$0xf]
    %v5154 = vld [vmem:[%s11] sm:$0x1]
    %v5156 = vlaneseq
    %v5157 = vshrl.u32 %v5156, 7
    %v5158 = vsub.s32 0, %v5157
    %v5159 = vrot.slane %v5154, %v5158
    %v5177 = vunpack.c.l.b16 %v5138
    %v5178 = vunpack.c.l.b16 %v5139
    %v5179 = vunpack.c.l.b16 %v5140
    %v5180 = vunpack.c.l.b16 %v5141
    %v5181 = vunpack.c.l.b16 %v5142
    %v5182 = vunpack.c.l.b16 %v5143
    %v5183 = vunpack.c.l.b16 %v5144
    %v5184 = vunpack.c.l.b16 %v5145
    %v5185 = vunpack.c.l.b16 %v5146
    %v5186 = vunpack.c.l.b16 %v5147
    %v5187 = vunpack.c.l.b16 %v5148
    %v5188 = vunpack.c.l.b16 %v5149
    %v5189 = vunpack.c.l.b16 %v5150
    %v5190 = vunpack.c.l.b16 %v5151
    %v5191 = vunpack.c.l.b16 %v5152
    %v5192 = vunpack.c.l.b16 %v5153
    %v5193 = vpack.c.b16 %v5178, %v5177
    %v5194 = vpack.c.b16 %v5180, %v5179
    %v5195 = vpack.c.b16 %v5182, %v5181
    %v5196 = vpack.c.b16 %v5184, %v5183
    %v5197 = vpack.c.b16 %v5186, %v5185
    %v5198 = vpack.c.b16 %v5188, %v5187
    %v5199 = vpack.c.b16 %v5190, %v5189
    %v5200 = vpack.c.b16 %v5192, %v5191
    %5209 = vmatprep.subr.bf16.mxu0 0
    %5210 = vmatpush1.bf16.msra.mxu0 %v5193
    %5211 = vmatprep.subr.bf16.mxu0 0
    %5212 = vmatpush1.bf16.msra.mxu0 %v5194
    %5213 = vmatprep.subr.bf16.mxu0 0
    %5214 = vmatpush1.bf16.msra.mxu0 %v5195
    %5215 = vmatprep.subr.bf16.mxu0 0
    %5216 = vmatpush1.bf16.msra.mxu0 %v5196
    %5217 = vmatprep.subr.bf16.mxu0 0
    %5218 = vmatpush1.bf16.msra.mxu0 %v5197
    %5219 = vmatprep.subr.bf16.mxu0 0
    %5220 = vmatpush1.bf16.msra.mxu0 %v5198
    %5221 = vmatprep.subr.bf16.mxu0 0
    %5222 = vmatpush1.bf16.msra.mxu0 %v5199
    %5223 = vmatprep.subr.bf16.mxu0 0
    %5224 = vmatpush1.bf16.msra.mxu0 %v5200
    %5225 = vmatprep.subr.bf16.mxu0 0
    %5226 = vmatpush1.bf16.msra.mxu0 0
    %5227 = vmatprep.subr.bf16.mxu0 0
    %5228 = vmatpush1.bf16.msra.mxu0 0
    %5229 = vmatprep.subr.bf16.mxu0 0
    %5230 = vmatpush1.bf16.msra.mxu0 0
    %5231 = vmatprep.subr.bf16.mxu0 0
    %5232 = vmatpush1.bf16.msra.mxu0 0
    %5233 = vmatprep.subr.bf16.mxu0 0
    %5234 = vmatpush1.bf16.msra.mxu0 0
    %5235 = vmatprep.subr.bf16.mxu0 0
    %5236 = vmatpush1.bf16.msra.mxu0 0
    %5237 = vmatprep.subr.bf16.mxu0 0
    %5238 = vmatpush1.bf16.msra.mxu0 0
    %5239 = vmatprep.subr.bf16.mxu0 0
    %5240 = vmatpush1.bf16.msra.mxu0 0
    %5241 = vmatprep.mubr.f32.mxu0 0.0
    %5242 = vmatmul.mubr.f32.gmra.mrb[0].mxu0 %v5137
    %v5243 = vpop.f32.mrb[0].mxu0
    %v5244 = vadd.f32 %v5159, %v5243
    %v5245 = vpop.f32.mrb[0].mxu0
    %5246 = vdwg.mxu0
    %5247 = vst.msk [vmem:[#allocation14] sm:$0xff] %vm148, %v5244
    // Predicated region
    $region78: #{tpu_custom_call.1} parent=1 // pred_check
      _
    $region79: #{tpu_custom_call.1} parent=1 // pred_check_branch
      %5249 = sbr.rel (0) target = $region81
    $region80: #{tpu_custom_call.1} parent=1 // pred_region
      %s5251 = ssub.s32 128, 128
      %5252 = vsyncadd [#allocation4], %s5251
      %s5254 = sshll.u32 [#allocation14], 4
      %s5255 = int_to_ptr.vmem [resolvable:$true] %s5254
      %5257 = dma.vmem_to_hbm [thread:$0]  %s5255, 128, %s12, [#allocation4]
    $region81: #{tpu_custom_call.1} parent=1 // pred_fallthru
      _
    // Predicated region
    $region82: #{tpu_custom_call.1} parent=1 // pred_check
      _
    $region83: #{tpu_custom_call.1} parent=1 // pred_check_branch
      %5259 = sbr.rel (0) target = $region85
    $region84: #{tpu_custom_call.1} parent=1 // pred_region
      %5260 = dma.done [#allocation4], 128
    $region85: #{tpu_custom_call.1} parent=1 // pred_fallthru
      _
    %5261 = vsyncpa [#allocation3], 1
    %5262 = vsyncpa [#allocation6], 1
    %5263 = vsyncpa [#allocation9], 1
    %5264 = vsyncpa [#allocation12], 1
    %5265 = vsyncpa [#allocation4], 1

</llo_original>
